<compile_context>
chip_gen: v7x
topology: tpu7x:2x2x1
jax: 0.10.0
libtpu: 0.0.40
codegen_flags: <defaults>
</compile_context>

<pallas_src>
import functools

import jax
import jax.numpy as jnp
from jax.experimental import pallas as pl
from jax.experimental.pallas import tpu as pltpu


def _round_up(x, m):
    return (x + m - 1) // m * m


_COMPILER_PARAMS = pltpu.CompilerParams(
    dimension_semantics=("parallel",),
    vmem_limit_bytes=32 * 1024 * 1024,   # v7x has only 64 MiB VMEM / TC
)


def _choose_tm(m_rows, target=256):
    """Row tile: multiple of 8, ~target, and >= 2 grid steps when m_rows allows
    (so v7x can shard the 'parallel' grid axis across both TensorCores)."""
    tm = min(_round_up(m_rows, 8), target)
    if m_rows > 8:
        tm = min(tm, _round_up((m_rows + 1) // 2, 8))
    return max(tm, 8)


# ---------------------------------------------------------------------------
# Fused Conv2d (valid, stride 1) + ReLU + MaxPool2d(2, 2) as im2col matmul.
# ---------------------------------------------------------------------------
def _conv_relu_pool_kernel(x_ref, w_ref, b_ref, o_ref):
    # x_ref: (4, TM, Kp) — 4 pool-window elements of TM pooled output positions
    # w_ref: (Kp, Cp); b_ref: (1, Cp); o_ref: (TM, Cp) bf16
    w = w_ref[...]
    acc = jnp.dot(x_ref[0], w, preferred_element_type=jnp.float32)
    for t in range(1, 4):
        acc = jnp.maximum(acc, jnp.dot(x_ref[t], w, preferred_element_type=jnp.float32))
    o_ref[...] = jnp.maximum(acc + b_ref[...], 0.0).astype(o_ref.dtype)


def conv2d_relu_pool_nhwc(x, w, b, *, tm_target=256):
    """x: (N, H, W, Cin) NHWC; w: (Cout, Cin, k, k) PyTorch layout.

    Returns pooled activations (N, Ho//2, Wo//2, Cp) in bfloat16 with
    Cp = round_up(Cout, 128); channels >= Cout are exactly zero.
    """
    N, H, W, Cin = x.shape
    Cout, _, k, _ = w.shape
    Ho, Wo = H - k + 1, W - k + 1          # both even for this net
    Hp, Wp = Ho // 2, Wo // 2
    KK = k * k * Cin
    Kp = _round_up(KK, 128)
    Cp = _round_up(Cout, 128)

    xb = x.astype(jnp.bfloat16)
    # im2col with K ordered (kh, kw, cin); weight flattened to match.
    patches = [xb[:, di:di + Ho, dj:dj + Wo, :] for di in range(k) for dj in range(k)]
    cols = jnp.stack(patches, axis=3).reshape(N, Ho, Wo, KK)
    # Put the four 2x2-pool-window elements on a leading axis; rows are then
    # ordered (n, pooled_h, pooled_w) == NHWC flatten of the pooled output.
    cols4 = (cols.reshape(N, Hp, 2, Wp, 2, KK)
                 .transpose(2, 4, 0, 1, 3, 5)
                 .reshape(4, N * Hp * Wp, KK))

    m_pool = N * Hp * Wp
    TM = _choose_tm(m_pool, tm_target)
    G = pl.cdiv(m_pool, TM)
    Mp = G * TM

    cols4 = jnp.pad(cols4, ((0, 0), (0, Mp - m_pool), (0, Kp - KK)))
    w_mat = jnp.transpose(w, (2, 3, 1, 0)).reshape(KK, Cout).astype(jnp.bfloat16)
    w_mat = jnp.pad(w_mat, ((0, Kp - KK), (0, Cp - Cout)))
    b_row = jnp.pad(b.astype(jnp.float32), (0, Cp - Cout)).reshape(1, Cp)

    cost = pl.CostEstimate(
        flops=2 * 4 * Mp * Kp * Cp,
        transcendentals=0,
        bytes_accessed=4 * Mp * Kp * 2 + Kp * Cp * 2 + Cp * 4 + Mp * Cp * 2,
    )
    out = pl.pallas_call(
        _conv_relu_pool_kernel,
        out_shape=jax.ShapeDtypeStruct((Mp, Cp), jnp.bfloat16),
        grid=(G,),
        in_specs=[
            pl.BlockSpec((4, TM, Kp), lambda i: (0, i, 0)),
            pl.BlockSpec((Kp, Cp), lambda i: (0, 0)),
            pl.BlockSpec((1, Cp), lambda i: (0, 0)),
        ],
        out_specs=pl.BlockSpec((TM, Cp), lambda i: (i, 0)),
        compiler_params=_COMPILER_PARAMS,
        cost_estimate=cost,
    )(cols4, w_mat, b_row)
    return out[:m_pool].reshape(N, Hp, Wp, Cp)


# ---------------------------------------------------------------------------
# Fused fc1 -> ReLU -> fc2 -> ReLU -> fc3 in a single kernel.
# ---------------------------------------------------------------------------
def _fused_mlp_kernel(x_ref, w1_ref, b1_ref, w2_ref, b2_ref, w3_ref, b3_ref, o_ref):
    h = jnp.dot(x_ref[...], w1_ref[...], preferred_element_type=jnp.float32)
    h = jnp.maximum(h + b1_ref[...], 0.0).astype(w2_ref.dtype)
    h = jnp.dot(h, w2_ref[...], preferred_element_type=jnp.float32)
    h = jnp.maximum(h + b2_ref[...], 0.0).astype(w3_ref.dtype)
    o = jnp.dot(h, w3_ref[...], preferred_element_type=jnp.float32) + b3_ref[...]
    o_ref[...] = o.astype(o_ref.dtype)


def fused_mlp(x, w1, b1, w2, b2, w3, b3):
    """x: (M, K); w_i in torch (out, in) layout.  Returns (M, out3) float32."""
    M, K = x.shape
    H1, H2, O = w1.shape[0], w2.shape[0], w3.shape[0]
    Kp, H1p, H2p, Op = (_round_up(d, 128) for d in (K, H1, H2, O))
    TM = _choose_tm(M, 256)
    G = pl.cdiv(M, TM)
    Mp = G * TM

    xp = jnp.pad(x.astype(jnp.bfloat16), ((0, Mp - M), (0, Kp - K)))
    w1p = jnp.pad(w1.T.astype(jnp.bfloat16), ((0, Kp - K), (0, H1p - H1)))
    w2p = jnp.pad(w2.T.astype(jnp.bfloat16), ((0, H1p - H1), (0, H2p - H2)))
    w3p = jnp.pad(w3.T.astype(jnp.bfloat16), ((0, H2p - H2), (0, Op - O)))
    b1p = jnp.pad(b1.astype(jnp.float32), (0, H1p - H1)).reshape(1, H1p)
    b2p = jnp.pad(b2.astype(jnp.float32), (0, H2p - H2)).reshape(1, H2p)
    b3p = jnp.pad(b3.astype(jnp.float32), (0, Op - O)).reshape(1, Op)

    cost = pl.CostEstimate(
        flops=2 * Mp * (Kp * H1p + H1p * H2p + H2p * Op),
        transcendentals=0,
        bytes_accessed=(Mp * Kp * 2 + Kp * H1p * 2 + H1p * H2p * 2
                        + H2p * Op * 2 + Mp * Op * 4),
    )
    out = pl.pallas_call(
        _fused_mlp_kernel,
        out_shape=jax.ShapeDtypeStruct((Mp, Op), jnp.float32),
        grid=(G,),
        in_specs=[
            pl.BlockSpec((TM, Kp), lambda i: (i, 0)),
            pl.BlockSpec((Kp, H1p), lambda i: (0, 0)),
            pl.BlockSpec((1, H1p), lambda i: (0, 0)),
            pl.BlockSpec((H1p, H2p), lambda i: (0, 0)),
            pl.BlockSpec((1, H2p), lambda i: (0, 0)),
            pl.BlockSpec((H2p, Op), lambda i: (0, 0)),
            pl.BlockSpec((1, Op), lambda i: (0, 0)),
        ],
        out_specs=pl.BlockSpec((TM, Op), lambda i: (i, 0)),
        compiler_params=_COMPILER_PARAMS,
        cost_estimate=cost,
    )(xp, w1p, b1p, w2p, b2p, w3p, b3p)
    return out[:M, :O]


# ---------------------------------------------------------------------------
# Parameters (deterministic, PyTorch-default-style uniform init, torch layouts)
# ---------------------------------------------------------------------------
def _uniform(key, shape, bound):
    return jax.random.uniform(key, shape, jnp.float32, -bound, bound)


def init_params(key):
    ks = jax.random.split(key, 10)

    def conv_init(kw, kb, cout, cin, k):
        bound = 1.0 / float(cin * k * k) ** 0.5
        return _uniform(kw, (cout, cin, k, k), bound), _uniform(kb, (cout,), bound)

    def lin_init(kw, kb, out, inp):
        bound = 1.0 / float(inp) ** 0.5
        return _uniform(kw, (out, inp), bound), _uniform(kb, (out,), bound)

    p = {}
    p["conv1_w"], p["conv1_b"] = conv_init(ks[0], ks[1], 12, 3, 5)
    p["conv2_w"], p["conv2_b"] = conv_init(ks[2], ks[3], 16, 12, 5)
    p["fc1_w"], p["fc1_b"] = lin_init(ks[4], ks[5], 120, 16 * 5 * 5)
    p["fc2_w"], p["fc2_b"] = lin_init(ks[6], ks[7], 84, 120)
    p["fc3_w"], p["fc3_b"] = lin_init(ks[8], ks[9], 10, 84)
    return p


# ---------------------------------------------------------------------------
# Forward pass (matches PyTorch Net.forward)
# ---------------------------------------------------------------------------
def net_forward(params, x):
    # x: (N, 3, 32, 32) NCHW (PyTorch convention); bf16 NHWC inside the pipeline.
    x = jnp.transpose(x, (0, 2, 3, 1))                                    # (N,32,32,3)
    x = conv2d_relu_pool_nhwc(x, params["conv1_w"], params["conv1_b"])    # (N,14,14,128)
    x = x[..., :12]                                                       # drop channel pad
    x = conv2d_relu_pool_nhwc(x, params["conv2_w"], params["conv2_b"])    # (N,5,5,128)
    x = x[..., :16]                                                       # (N,5,5,16)
    N = x.shape[0]
    feats = x.reshape(N, 5 * 5 * 16)                                      # (h,w,c) flatten
    # Permute fc1 columns from torch's (c,h,w) flatten order to (h,w,c) so the
    # NHWC flatten reproduces torch's x.view(-1, 16*5*5) exactly.
    fc1_w = (
        params["fc1_w"].reshape(120, 16, 5, 5).transpose(0, 2, 3, 1).reshape(120, 400)
    )
    return fused_mlp(
        feats, fc1_w, params["fc1_b"],
        params["fc2_w"], params["fc2_b"],
        params["fc3_w"], params["fc3_b"],
    )  # (N, 10) float32


if __name__ == "__main__":
    key = jax.random.PRNGKey(0)
    pkey, xkey = jax.random.split(key)
    params = init_params(pkey)
    # fc1's 16*5*5 input implies 32x32x3 (CIFAR-10) inputs; batch = 2.
    x = jax.random.normal(xkey, (2, 3, 32, 32), dtype=jnp.float32)

    fwd = jax.jit(net_forward)
    out = jax.block_until_ready(fwd(params, x))
    assert out.shape == (2, 10), out.shape
    assert bool(jnp.all(jnp.isfinite(out)))
    print("KERNEL_OK")
</pallas_src>

<mosaic_0001>
module attributes {stable_mosaic.version = 11 : i64} {
  func.func @_conv_relu_pool_kernel(%arg0: i32, %arg1: memref<4x200x128xbf16, #tpu.memory_space<vmem>>, %arg2: memref<128x128xbf16, #tpu.memory_space<vmem>>, %arg3: memref<1x128xf32, #tpu.memory_space<vmem>>, %arg4: memref<200x128xbf16, #tpu.memory_space<vmem>>) attributes {dimension_semantics = [#tpu.dimension_semantics<parallel>], iteration_bounds = array<i64: 2>, scalar_prefetch = 0 : i64, scratch_operands = 0 : i64, tpu.core_type = #tpu.core_type<tc>, window_params = [{transform_indices = @transform_0, window_bounds = array<i64: 4, 200, 128>}, {pipeline_mode = #tpu.pipeline_mode<synchronous>, transform_indices = @transform_1, window_bounds = array<i64: 128, 128>}, {pipeline_mode = #tpu.pipeline_mode<synchronous>, transform_indices = @transform_2, window_bounds = array<i64: 1, 128>}, {transform_indices = @transform_3, window_bounds = array<i64: 200, 128>}]} {
    %c0 = arith.constant 0 : index
    %c0_0 = arith.constant 0 : index
    %0 = vector.load %arg2[%c0, %c0_0] : memref<128x128xbf16, #tpu.memory_space<vmem>>, vector<128x128xbf16>
    %c0_1 = arith.constant 0 : index
    %c0_2 = arith.constant 0 : index
    %c0_3 = arith.constant 0 : index
    %1 = vector.load %arg1[%c0_1, %c0_2, %c0_3] : memref<4x200x128xbf16, #tpu.memory_space<vmem>>, vector<1x200x128xbf16>
    %2 = vector.shape_cast %1 : vector<1x200x128xbf16> to vector<200x128xbf16>
    %cst = arith.constant dense<0.000000e+00> : vector<200x128xf32>
    %3 = tpu.matmul %2, %0, %cst {dimension_numbers = #tpu.dot_dimension_numbers<[1], [0], [0], [1], [0, 0, 1, 1], [], []>} : vector<200x128xbf16>, vector<128x128xbf16>, vector<200x128xf32> -> vector<200x128xf32>
    %c1 = arith.constant 1 : index
    %c0_4 = arith.constant 0 : index
    %c0_5 = arith.constant 0 : index
    %4 = vector.load %arg1[%c1, %c0_4, %c0_5] : memref<4x200x128xbf16, #tpu.memory_space<vmem>>, vector<1x200x128xbf16>
    %5 = vector.shape_cast %4 : vector<1x200x128xbf16> to vector<200x128xbf16>
    %cst_6 = arith.constant dense<0.000000e+00> : vector<200x128xf32>
    %6 = tpu.matmul %5, %0, %cst_6 {dimension_numbers = #tpu.dot_dimension_numbers<[1], [0], [0], [1], [0, 0, 1, 1], [], []>} : vector<200x128xbf16>, vector<128x128xbf16>, vector<200x128xf32> -> vector<200x128xf32>
    %7 = arith.maximumf %3, %6 : vector<200x128xf32>
    %c2 = arith.constant 2 : index
    %c0_7 = arith.constant 0 : index
    %c0_8 = arith.constant 0 : index
    %8 = vector.load %arg1[%c2, %c0_7, %c0_8] : memref<4x200x128xbf16, #tpu.memory_space<vmem>>, vector<1x200x128xbf16>
    %9 = vector.shape_cast %8 : vector<1x200x128xbf16> to vector<200x128xbf16>
    %cst_9 = arith.constant dense<0.000000e+00> : vector<200x128xf32>
    %10 = tpu.matmul %9, %0, %cst_9 {dimension_numbers = #tpu.dot_dimension_numbers<[1], [0], [0], [1], [0, 0, 1, 1], [], []>} : vector<200x128xbf16>, vector<128x128xbf16>, vector<200x128xf32> -> vector<200x128xf32>
    %11 = arith.maximumf %7, %10 : vector<200x128xf32>
    %c3 = arith.constant 3 : index
    %c0_10 = arith.constant 0 : index
    %c0_11 = arith.constant 0 : index
    %12 = vector.load %arg1[%c3, %c0_10, %c0_11] : memref<4x200x128xbf16, #tpu.memory_space<vmem>>, vector<1x200x128xbf16>
    %13 = vector.shape_cast %12 : vector<1x200x128xbf16> to vector<200x128xbf16>
    %cst_12 = arith.constant dense<0.000000e+00> : vector<200x128xf32>
    %14 = tpu.matmul %13, %0, %cst_12 {dimension_numbers = #tpu.dot_dimension_numbers<[1], [0], [0], [1], [0, 0, 1, 1], [], []>} : vector<200x128xbf16>, vector<128x128xbf16>, vector<200x128xf32> -> vector<200x128xf32>
    %15 = arith.maximumf %11, %14 : vector<200x128xf32>
    %c0_13 = arith.constant 0 : index
    %c0_14 = arith.constant 0 : index
    %16 = vector.load %arg3[%c0_13, %c0_14] : memref<1x128xf32, #tpu.memory_space<vmem>>, vector<1x128xf32>
    %17 = vector.broadcast %16 : vector<1x128xf32> to vector<200x128xf32>
    %18 = arith.addf %15, %17 : vector<200x128xf32>
    %cst_15 = arith.constant 0.000000e+00 : f32
    %19 = vector.broadcast %cst_15 : f32 to vector<200x128xf32>
    %20 = arith.maximumf %18, %19 : vector<200x128xf32>
    %21 = arith.truncf %20 : vector<200x128xf32> to vector<200x128xbf16>
    %c0_16 = arith.constant 0 : index
    %c0_17 = arith.constant 0 : index
    %22 = vector.load %arg4[%c0_16, %c0_17] : memref<200x128xbf16, #tpu.memory_space<vmem>>, vector<200x128xbf16>
    tpu.vector_store %arg4[%c0_16, %c0_17], %21 {strides = array<i32>} : memref<200x128xbf16, #tpu.memory_space<vmem>>, vector<200x128xbf16>,
    return
  }
  func.func @transform_0(%arg0: i32) -> (i32, i32, i32) {
    %c0_i32 = arith.constant 0 : i32
    %c0_i32_0 = arith.constant 0 : i32
    %c0_i32_1 = arith.constant 0 : i32
    return %c0_i32, %arg0, %c0_i32_0 : i32, i32, i32
  }
  func.func @transform_1(%arg0: i32) -> (i32, i32) {
    %c0_i32 = arith.constant 0 : i32
    %c0_i32_0 = arith.constant 0 : i32
    %c0_i32_1 = arith.constant 0 : i32
    return %c0_i32, %c0_i32_0 : i32, i32
  }
  func.func @transform_2(%arg0: i32) -> (i32, i32) {
    %c0_i32 = arith.constant 0 : i32
    %c0_i32_0 = arith.constant 0 : i32
    %c0_i32_1 = arith.constant 0 : i32
    return %c0_i32, %c0_i32_0 : i32, i32
  }
  func.func @transform_3(%arg0: i32) -> (i32, i32) {
    %c0_i32 = arith.constant 0 : i32
    %c0_i32_0 = arith.constant 0 : i32
    return %arg0, %c0_i32 : i32, i32
  }
}

module attributes {stable_mosaic.version = 11 : i64} {
  func.func @_conv_relu_pool_kernel(%arg0: i32, %arg1: memref<4x32x384xbf16, #tpu.memory_space<vmem>>, %arg2: memref<384x128xbf16, #tpu.memory_space<vmem>>, %arg3: memref<1x128xf32, #tpu.memory_space<vmem>>, %arg4: memref<32x128xbf16, #tpu.memory_space<vmem>>) attributes {dimension_semantics = [#tpu.dimension_semantics<parallel>], iteration_bounds = array<i64: 2>, scalar_prefetch = 0 : i64, scratch_operands = 0 : i64, tpu.core_type = #tpu.core_type<tc>, window_params = [{transform_indices = @transform_0, window_bounds = array<i64: 4, 32, 384>}, {pipeline_mode = #tpu.pipeline_mode<synchronous>, transform_indices = @transform_1, window_bounds = array<i64: 384, 128>}, {pipeline_mode = #tpu.pipeline_mode<synchronous>, transform_indices = @transform_2, window_bounds = array<i64: 1, 128>}, {transform_indices = @transform_3, window_bounds = array<i64: 32, 128>}]} {
    %c0 = arith.constant 0 : index
    %c0_0 = arith.constant 0 : index
    %0 = vector.load %arg2[%c0, %c0_0] : memref<384x128xbf16, #tpu.memory_space<vmem>>, vector<384x128xbf16>
    %c0_1 = arith.constant 0 : index
    %c0_2 = arith.constant 0 : index
    %c0_3 = arith.constant 0 : index
    %1 = vector.load %arg1[%c0_1, %c0_2, %c0_3] : memref<4x32x384xbf16, #tpu.memory_space<vmem>>, vector<1x32x384xbf16>
    %2 = vector.shape_cast %1 : vector<1x32x384xbf16> to vector<32x384xbf16>
    %cst = arith.constant dense<0.000000e+00> : vector<32x128xf32>
    %3 = tpu.matmul %2, %0, %cst {dimension_numbers = #tpu.dot_dimension_numbers<[1], [0], [0], [1], [0, 0, 1, 1], [], []>} : vector<32x384xbf16>, vector<384x128xbf16>, vector<32x128xf32> -> vector<32x128xf32>
    %c1 = arith.constant 1 : index
    %c0_4 = arith.constant 0 : index
    %c0_5 = arith.constant 0 : index
    %4 = vector.load %arg1[%c1, %c0_4, %c0_5] : memref<4x32x384xbf16, #tpu.memory_space<vmem>>, vector<1x32x384xbf16>
    %5 = vector.shape_cast %4 : vector<1x32x384xbf16> to vector<32x384xbf16>
    %cst_6 = arith.constant dense<0.000000e+00> : vector<32x128xf32>
    %6 = tpu.matmul %5, %0, %cst_6 {dimension_numbers = #tpu.dot_dimension_numbers<[1], [0], [0], [1], [0, 0, 1, 1], [], []>} : vector<32x384xbf16>, vector<384x128xbf16>, vector<32x128xf32> -> vector<32x128xf32>
    %7 = arith.maximumf %3, %6 : vector<32x128xf32>
    %c2 = arith.constant 2 : index
    %c0_7 = arith.constant 0 : index
    %c0_8 = arith.constant 0 : index
    %8 = vector.load %arg1[%c2, %c0_7, %c0_8] : memref<4x32x384xbf16, #tpu.memory_space<vmem>>, vector<1x32x384xbf16>
    %9 = vector.shape_cast %8 : vector<1x32x384xbf16> to vector<32x384xbf16>
    %cst_9 = arith.constant dense<0.000000e+00> : vector<32x128xf32>
    %10 = tpu.matmul %9, %0, %cst_9 {dimension_numbers = #tpu.dot_dimension_numbers<[1], [0], [0], [1], [0, 0, 1, 1], [], []>} : vector<32x384xbf16>, vector<384x128xbf16>, vector<32x128xf32> -> vector<32x128xf32>
    %11 = arith.maximumf %7, %10 : vector<32x128xf32>
    %c3 = arith.constant 3 : index
    %c0_10 = arith.constant 0 : index
    %c0_11 = arith.constant 0 : index
    %12 = vector.load %arg1[%c3, %c0_10, %c0_11] : memref<4x32x384xbf16, #tpu.memory_space<vmem>>, vector<1x32x384xbf16>
    %13 = vector.shape_cast %12 : vector<1x32x384xbf16> to vector<32x384xbf16>
    %cst_12 = arith.constant dense<0.000000e+00> : vector<32x128xf32>
    %14 = tpu.matmul %13, %0, %cst_12 {dimension_numbers = #tpu.dot_dimension_numbers<[1], [0], [0], [1], [0, 0, 1, 1], [], []>} : vector<32x384xbf16>, vector<384x128xbf16>, vector<32x128xf32> -> vector<32x128xf32>
    %15 = arith.maximumf %11, %14 : vector<32x128xf32>
    %c0_13 = arith.constant 0 : index
    %c0_14 = arith.constant 0 : index
    %16 = vector.load %arg3[%c0_13, %c0_14] : memref<1x128xf32, #tpu.memory_space<vmem>>, vector<1x128xf32>
    %17 = vector.broadcast %16 : vector<1x128xf32> to vector<32x128xf32>
    %18 = arith.addf %15, %17 : vector<32x128xf32>
    %cst_15 = arith.constant 0.000000e+00 : f32
    %19 = vector.broadcast %cst_15 : f32 to vector<32x128xf32>
    %20 = arith.maximumf %18, %19 : vector<32x128xf32>
    %21 = arith.truncf %20 : vector<32x128xf32> to vector<32x128xbf16>
    %c0_16 = arith.constant 0 : index
    %c0_17 = arith.constant 0 : index
    %22 = vector.load %arg4[%c0_16, %c0_17] : memref<32x128xbf16, #tpu.memory_space<vmem>>, vector<32x128xbf16>
    tpu.vector_store %arg4[%c0_16, %c0_17], %21 {strides = array<i32>} : memref<32x128xbf16, #tpu.memory_space<vmem>>, vector<32x128xbf16>,
    return
  }
  func.func @transform_0(%arg0: i32) -> (i32, i32, i32) {
    %c0_i32 = arith.constant 0 : i32
    %c0_i32_0 = arith.constant 0 : i32
    %c0_i32_1 = arith.constant 0 : i32
    return %c0_i32, %arg0, %c0_i32_0 : i32, i32, i32
  }
  func.func @transform_1(%arg0: i32) -> (i32, i32) {
    %c0_i32 = arith.constant 0 : i32
    %c0_i32_0 = arith.constant 0 : i32
    %c0_i32_1 = arith.constant 0 : i32
    return %c0_i32, %c0_i32_0 : i32, i32
  }
  func.func @transform_2(%arg0: i32) -> (i32, i32) {
    %c0_i32 = arith.constant 0 : i32
    %c0_i32_0 = arith.constant 0 : i32
    %c0_i32_1 = arith.constant 0 : i32
    return %c0_i32, %c0_i32_0 : i32, i32
  }
  func.func @transform_3(%arg0: i32) -> (i32, i32) {
    %c0_i32 = arith.constant 0 : i32
    %c0_i32_0 = arith.constant 0 : i32
    return %arg0, %c0_i32 : i32, i32
  }
}

module attributes {stable_mosaic.version = 11 : i64} {
  func.func @_fused_mlp_kernel(%arg0: i32, %arg1: memref<8x512xbf16, #tpu.memory_space<vmem>>, %arg2: memref<512x128xbf16, #tpu.memory_space<vmem>>, %arg3: memref<1x128xf32, #tpu.memory_space<vmem>>, %arg4: memref<128x128xbf16, #tpu.memory_space<vmem>>, %arg5: memref<1x128xf32, #tpu.memory_space<vmem>>, %arg6: memref<128x128xbf16, #tpu.memory_space<vmem>>, %arg7: memref<1x128xf32, #tpu.memory_space<vmem>>, %arg8: memref<8x128xf32, #tpu.memory_space<vmem>>) attributes {dimension_semantics = [#tpu.dimension_semantics<parallel>], iteration_bounds = array<i64: 1>, scalar_prefetch = 0 : i64, scratch_operands = 0 : i64, tpu.core_type = #tpu.core_type<tc>, window_params = [{transform_indices = @transform_0, window_bounds = array<i64: 8, 512>}, {pipeline_mode = #tpu.pipeline_mode<synchronous>, transform_indices = @transform_1, window_bounds = array<i64: 512, 128>}, {pipeline_mode = #tpu.pipeline_mode<synchronous>, transform_indices = @transform_2, window_bounds = array<i64: 1, 128>}, {pipeline_mode = #tpu.pipeline_mode<synchronous>, transform_indices = @transform_3, window_bounds = array<i64: 128, 128>}, {pipeline_mode = #tpu.pipeline_mode<synchronous>, transform_indices = @transform_4, window_bounds = array<i64: 1, 128>}, {pipeline_mode = #tpu.pipeline_mode<synchronous>, transform_indices = @transform_5, window_bounds = array<i64: 128, 128>}, {pipeline_mode = #tpu.pipeline_mode<synchronous>, transform_indices = @transform_6, window_bounds = array<i64: 1, 128>}, {transform_indices = @transform_7, window_bounds = array<i64: 8, 128>}]} {
    %c0 = arith.constant 0 : index
    %c0_0 = arith.constant 0 : index
    %0 = vector.load %arg1[%c0, %c0_0] : memref<8x512xbf16, #tpu.memory_space<vmem>>, vector<8x512xbf16>
    %c0_1 = arith.constant 0 : index
    %c0_2 = arith.constant 0 : index
    %1 = vector.load %arg2[%c0_1, %c0_2] : memref<512x128xbf16, #tpu.memory_space<vmem>>, vector<512x128xbf16>
    %cst = arith.constant dense<0.000000e+00> : vector<8x128xf32>
    %2 = tpu.matmul %0, %1, %cst {dimension_numbers = #tpu.dot_dimension_numbers<[1], [0], [0], [1], [0, 0, 1, 1], [], []>} : vector<8x512xbf16>, vector<512x128xbf16>, vector<8x128xf32> -> vector<8x128xf32>
    %c0_3 = arith.constant 0 : index
    %c0_4 = arith.constant 0 : index
    %3 = vector.load %arg3[%c0_3, %c0_4] : memref<1x128xf32, #tpu.memory_space<vmem>>, vector<1x128xf32>
    %4 = vector.broadcast %3 : vector<1x128xf32> to vector<8x128xf32>
    %5 = arith.addf %2, %4 : vector<8x128xf32>
    %cst_5 = arith.constant 0.000000e+00 : f32
    %6 = vector.broadcast %cst_5 : f32 to vector<8x128xf32>
    %7 = arith.maximumf %5, %6 : vector<8x128xf32>
    %8 = arith.truncf %7 : vector<8x128xf32> to vector<8x128xbf16>
    %c0_6 = arith.constant 0 : index
    %c0_7 = arith.constant 0 : index
    %9 = vector.load %arg4[%c0_6, %c0_7] : memref<128x128xbf16, #tpu.memory_space<vmem>>, vector<128x128xbf16>
    %cst_8 = arith.constant dense<0.000000e+00> : vector<8x128xf32>
    %10 = tpu.matmul %8, %9, %cst_8 {dimension_numbers = #tpu.dot_dimension_numbers<[1], [0], [0], [1], [0, 0, 1, 1], [], []>} : vector<8x128xbf16>, vector<128x128xbf16>, vector<8x128xf32> -> vector<8x128xf32>
    %c0_9 = arith.constant 0 : index
    %c0_10 = arith.constant 0 : index
    %11 = vector.load %arg5[%c0_9, %c0_10] : memref<1x128xf32, #tpu.memory_space<vmem>>, vector<1x128xf32>
    %12 = vector.broadcast %11 : vector<1x128xf32> to vector<8x128xf32>
    %13 = arith.addf %10, %12 : vector<8x128xf32>
    %cst_11 = arith.constant 0.000000e+00 : f32
    %14 = vector.broadcast %cst_11 : f32 to vector<8x128xf32>
    %15 = arith.maximumf %13, %14 : vector<8x128xf32>
    %16 = arith.truncf %15 : vector<8x128xf32> to vector<8x128xbf16>
    %c0_12 = arith.constant 0 : index
    %c0_13 = arith.constant 0 : index
    %17 = vector.load %arg6[%c0_12, %c0_13] : memref<128x128xbf16, #tpu.memory_space<vmem>>, vector<128x128xbf16>
    %cst_14 = arith.constant dense<0.000000e+00> : vector<8x128xf32>
    %18 = tpu.matmul %16, %17, %cst_14 {dimension_numbers = #tpu.dot_dimension_numbers<[1], [0], [0], [1], [0, 0, 1, 1], [], []>} : vector<8x128xbf16>, vector<128x128xbf16>, vector<8x128xf32> -> vector<8x128xf32>
    %c0_15 = arith.constant 0 : index
    %c0_16 = arith.constant 0 : index
    %19 = vector.load %arg7[%c0_15, %c0_16] : memref<1x128xf32, #tpu.memory_space<vmem>>, vector<1x128xf32>
    %20 = vector.broadcast %19 : vector<1x128xf32> to vector<8x128xf32>
    %21 = arith.addf %18, %20 : vector<8x128xf32>
    %c0_17 = arith.constant 0 : index
    %c0_18 = arith.constant 0 : index
    %22 = vector.load %arg8[%c0_17, %c0_18] : memref<8x128xf32, #tpu.memory_space<vmem>>, vector<8x128xf32>
    tpu.vector_store %arg8[%c0_17, %c0_18], %21 {strides = array<i32>} : memref<8x128xf32, #tpu.memory_space<vmem>>, vector<8x128xf32>,
    return
  }
  func.func @transform_0(%arg0: i32) -> (i32, i32) {
    %c0_i32 = arith.constant 0 : i32
    %c0_i32_0 = arith.constant 0 : i32
    return %arg0, %c0_i32 : i32, i32
  }
  func.func @transform_1(%arg0: i32) -> (i32, i32) {
    %c0_i32 = arith.constant 0 : i32
    %c0_i32_0 = arith.constant 0 : i32
    %c0_i32_1 = arith.constant 0 : i32
    return %c0_i32, %c0_i32_0 : i32, i32
  }
  func.func @transform_2(%arg0: i32) -> (i32, i32) {
    %c0_i32 = arith.constant 0 : i32
    %c0_i32_0 = arith.constant 0 : i32
    %c0_i32_1 = arith.constant 0 : i32
    return %c0_i32, %c0_i32_0 : i32, i32
  }
  func.func @transform_3(%arg0: i32) -> (i32, i32) {
    %c0_i32 = arith.constant 0 : i32
    %c0_i32_0 = arith.constant 0 : i32
    %c0_i32_1 = arith.constant 0 : i32
    return %c0_i32, %c0_i32_0 : i32, i32
  }
  func.func @transform_4(%arg0: i32) -> (i32, i32) {
    %c0_i32 = arith.constant 0 : i32
    %c0_i32_0 = arith.constant 0 : i32
    %c0_i32_1 = arith.constant 0 : i32
    return %c0_i32, %c0_i32_0 : i32, i32
  }
  func.func @transform_5(%arg0: i32) -> (i32, i32) {
    %c0_i32 = arith.constant 0 : i32
    %c0_i32_0 = arith.constant 0 : i32
    %c0_i32_1 = arith.constant 0 : i32
    return %c0_i32, %c0_i32_0 : i32, i32
  }
  func.func @transform_6(%arg0: i32) -> (i32, i32) {
    %c0_i32 = arith.constant 0 : i32
    %c0_i32_0 = arith.constant 0 : i32
    %c0_i32_1 = arith.constant 0 : i32
    return %c0_i32, %c0_i32_0 : i32, i32
  }
  func.func @transform_7(%arg0: i32) -> (i32, i32) {
    %c0_i32 = arith.constant 0 : i32
    %c0_i32_0 = arith.constant 0 : i32
    return %arg0, %c0_i32 : i32, i32
  }
}

</mosaic_0001>

<llo_original>
// kernel: net_forward.3
$region0: #{net_forward.3}
  #allocation0 [shape = 'u32[]', space=smem, size = 0x4, offset = 0x4, fixed_abs, tag = 'smem constant byte address 0x4 - core index']
  #allocation1 [shape = 'u32[144,128]{1,0:T(1,128)}', space=vmem, size = 0x12000, scoped, tag = 'internal scratch']
  %s0 = inlined_call_operand.vmem [shape: bf16[4,400,128], index: 0, kind: input, shape index: {}]
  %s1 = inlined_call_operand.vmem [shape: bf16[128,128], index: 1, kind: input, shape index: {}]
  %s2 = inlined_call_operand.vmem [shape: f32[1,128], index: 2, kind: input, shape index: {}]
  %s3 = inlined_call_operand.vmem [shape: bf16[400,128], index: 3, kind: output, shape index: {}]
  %s4 = sld [smem:[#allocation0]]
  $region86: #{net_forward.3} parent=0
    _
  %s6 = ssub.s32 1, %s4
  %s7 = scalar_select 0, %s6, %s4
  $region1: #{net_forward.3} parent=0
    #allocation2 [shape = 'u8[409600]{0}', space=vmem, size = 0x64000, scoped, tag = 'input window, operand 0']
    loop: start=0, step=1, limit=4
    $region2: #{net_forward.3} parent=1 // loop_pre_header
      _
    $region3: #{net_forward.3} parent=1 // loop_header
      %s9 = sphi 0, %s13
      %p10 = scmp.ge.s32.totalorder %s9, 4
      %s19 = sphi 0, %s21
      %s22 = sphi 0, %s19
      %s23 = sphi 0, %s22
      %s39 = sphi 0, %s23
      %s43 = sphi 0, %s43
      %s45 = sphi 0, %s43
      %s46 = sphi 0, %s45
      %s60 = sphi 0, %s46
      %s64 = sphi 0, %s64
      %s66 = sphi 0, %s64
      %s67 = sphi 0, %s66
      %s81 = sphi 0, %s67
      %s87 = sphi 0, %s89
      %s90 = sphi 0, %s87
      %s91 = sphi 0, %s90
      %s107 = sphi 0, %s91
    $region4: #{net_forward.3} parent=1 // loop_header_branch
      %12 = sbr.rel (%p10) target = $region8
    $region5: #{net_forward.3} parent=1 // loop_body
      %s14 = ssub.s32 %s9, 1
      %s15 = ssub.s32 %s9, 2
      %s16 = sadd.s32 %s9, 1
      %s17 = ssub.s32 %s9, %s16
      %p18 = scmp.eq.s32.totalorder %s17, 0
      %s20 = sadd.s32 %s19, 1
      %s21 = scalar_select %p18, %s19, %s20
      %p24 = pneg %p18
      %p25 = scmp.eq.s32.totalorder %s9, 1
      %p26 = por %p24, %p25
      %p27 = scmp.ne.s32.totalorder %s19, %s22
      %p28 = scmp.eq.s32.totalorder %s9, 0
      %p29 = por %p27, %p28
      %p30 = scmp.ne.s32.totalorder %s19, %s22
      %p31 = scmp.eq.s32.totalorder %s14, 1
      %p32 = por %p30, %p31
      %p33 = scmp.ne.s32.totalorder %s22, %s23
      %p34 = scmp.eq.s32.totalorder %s14, 0
      %p35 = por %p33, %p34
      %p36 = scmp.ne.s32.totalorder %s22, %s23
      %p37 = scmp.eq.s32.totalorder %s15, 1
      %p38 = por %p36, %p37
      %p40 = scmp.ne.s32.totalorder %s23, %s39
      %p41 = scmp.eq.s32.totalorder %s15, 0
      %p42 = por %p40, %p41
      %s44 = sadd.s32 %s43, 1
      %p47 = scmp.eq.s32.totalorder %s9, 1
      %p48 = scmp.ne.s32.totalorder %s43, %s45
      %p49 = scmp.eq.s32.totalorder %s9, 0
      %p50 = por %p48, %p49
      %p51 = scmp.ne.s32.totalorder %s43, %s45
      %p52 = scmp.eq.s32.totalorder %s14, 1
      %p53 = por %p51, %p52
      %p54 = scmp.ne.s32.totalorder %s45, %s46
      %p55 = scmp.eq.s32.totalorder %s14, 0
      %p56 = por %p54, %p55
      %p57 = scmp.ne.s32.totalorder %s45, %s46
      %p58 = scmp.eq.s32.totalorder %s15, 1
      %p59 = por %p57, %p58
      %p61 = scmp.ne.s32.totalorder %s46, %s60
      %p62 = scmp.eq.s32.totalorder %s15, 0
      %p63 = por %p61, %p62
      %s65 = sadd.s32 %s64, 1
      %p68 = scmp.eq.s32.totalorder %s9, 1
      %p69 = scmp.ne.s32.totalorder %s64, %s66
      %p70 = scmp.eq.s32.totalorder %s9, 0
      %p71 = por %p69, %p70
      %p72 = scmp.ne.s32.totalorder %s64, %s66
      %p73 = scmp.eq.s32.totalorder %s14, 1
      %p74 = por %p72, %p73
      %p75 = scmp.ne.s32.totalorder %s66, %s67
      %p76 = scmp.eq.s32.totalorder %s14, 0
      %p77 = por %p75, %p76
      %p78 = scmp.ne.s32.totalorder %s66, %s67
      %p79 = scmp.eq.s32.totalorder %s15, 1
      %p80 = por %p78, %p79
      %p82 = scmp.ne.s32.totalorder %s67, %s81
      %p83 = scmp.eq.s32.totalorder %s15, 0
      %p84 = por %p82, %p83
      %s85 = ssub.s32 %s9, %s16
      %p86 = scmp.eq.s32.totalorder %s85, 0
      %s88 = sadd.s32 %s87, 1
      %s89 = scalar_select %p86, %s87, %s88
      %p92 = pneg %p86
      %p93 = scmp.eq.s32.totalorder %s9, 1
      %p94 = por %p92, %p93
      %p95 = scmp.ne.s32.totalorder %s87, %s90
      %p96 = scmp.eq.s32.totalorder %s9, 0
      %p97 = por %p95, %p96
      %p98 = scmp.ne.s32.totalorder %s87, %s90
      %p99 = scmp.eq.s32.totalorder %s14, 1
      %p100 = por %p98, %p99
      %p101 = scmp.ne.s32.totalorder %s90, %s91
      %p102 = scmp.eq.s32.totalorder %s14, 0
      %p103 = por %p101, %p102
      %p104 = scmp.ne.s32.totalorder %s90, %s91
      %p105 = scmp.eq.s32.totalorder %s15, 1
      %p106 = por %p104, %p105
      %p108 = scmp.ne.s32.totalorder %s91, %s107
      %p109 = scmp.eq.s32.totalorder %s15, 0
      %p110 = por %p108, %p109
      %p111 = scmp.le.s32.totalorder 1, %s9
      %p112 = scmp.lt.s32.totalorder %s9, 3
      %p113 = pnand %p111, %p112
      %p114 = pneg %p113
      // Predicated region
      $region9: #{net_forward.3} parent=5 // pred_check
        _
      $region10: #{net_forward.3} parent=5 // pred_check_branch
        %116 = sbr.rel (%p113) target = $region12
      $region11: #{net_forward.3} parent=5 // pred_region
        %s117 = ssub.s32 %s9, 1
        // Predicated region
        $region13: #{net_forward.3} parent=11 // pred_check
          %p118 = pneg %p56
        $region14: #{net_forward.3} parent=11 // pred_check_branch
          %120 = sbr.rel (%p118) target = $region16
        $region15: #{net_forward.3} parent=11 // pred_region
          _
        $region16: #{net_forward.3} parent=11 // pred_fallthru
          _
        // Predicated region
        $region17: #{net_forward.3} parent=11 // pred_check
          %p121 = pneg %p77
        $region18: #{net_forward.3} parent=11 // pred_check_branch
          %123 = sbr.rel (%p121) target = $region20
        $region19: #{net_forward.3} parent=11 // pred_region
          _
        $region20: #{net_forward.3} parent=11 // pred_fallthru
          _
      $region12: #{net_forward.3} parent=5 // pred_fallthru
        _
      %p124 = scmp.lt.s32.totalorder %s9, 2
      // Predicated region
      $region21: #{net_forward.3} parent=5 // pred_check
        %p125 = pneg %p124
      $region22: #{net_forward.3} parent=5 // pred_check_branch
        %127 = sbr.rel (%p125) target = $region24
      $region23: #{net_forward.3} parent=5 // pred_region
        // Predicated region
        $region25: #{net_forward.3} parent=23 // pred_check
          %p128 = pneg %p29
        $region26: #{net_forward.3} parent=23 // pred_check_branch
          %130 = sbr.rel (%p128) target = $region28
        $region27: #{net_forward.3} parent=23 // pred_region
          %s131 = sand.u32 %s19, 1
          %s132 = sand.u32 %s19, 1
          %s133 = smul.addr %s132, 400
          %s134 = scalar_lea.vmem [#allocation2], %s133
          %s135 = smul.u32 25, %s9
          %s136 = smul.addr %s135, 4
          %s137 = scalar_lea.vmem %s0, %s136
          // Predicated region
          $region29: #{net_forward.3} parent=27 // pred_check
            _
          $region30: #{net_forward.3} parent=27 // pred_check_branch
            %139 = sbr.rel (0) target = $region32
          $region31: #{net_forward.3} parent=27 // pred_region
            // Predicated region
            $region33: #{net_forward.3} parent=31 // pred_check
              _
            $region34: #{net_forward.3} parent=31 // pred_check_branch
              %141 = sbr.rel target = $region36
            $region35: #{net_forward.3} parent=31 // pred_region
              // Predicated region
              $region48: #{net_forward.3} parent=35 // pred_check
                _
              $region49: #{net_forward.3} parent=35 // pred_check_branch
                %354 = sbr.rel (0) target = $region51
              $region50: #{net_forward.3} parent=35 // pred_region
                loop: start=0, step=1, limit=1
                $region52: #{net_forward.3} parent=50 // loop_pre_header
                  _
                $region53: #{net_forward.3} parent=50 // loop_header
                  %s356 = sphi 0, %s360
                  %p357 = scmp.ge.s32.totalorder %s356, 1
                  %s361 = sphi %s137, %s137
                  %s362 = sphi %s134, %s134
                $region54: #{net_forward.3} parent=50 // loop_header_branch
                  %359 = sbr.rel (%p357) target = $region58
                $region55: #{net_forward.3} parent=50 // loop_body
                  _
                $region56: #{net_forward.3} parent=50 // loop_footer
                  %s360 = sadd.s32 1, %s356
                $region57: #{net_forward.3} parent=50 // loop_footer_branch
                  %355 = sbr.rel target = $region53
                $region58: #{net_forward.3} parent=50 // loop_exit
                  _
                loop: start=0, step=1, limit=1
                $region59: #{net_forward.3} parent=50 // loop_pre_header
                  _
                $region60: #{net_forward.3} parent=50 // loop_header
                  %s365 = sphi 0, %s369
                  %p366 = scmp.ge.s32.totalorder %s365, 1
                  %s370 = sphi %s137, %s137
                  %s371 = sphi %s134, %s134
                $region61: #{net_forward.3} parent=50 // loop_header_branch
                  %368 = sbr.rel (%p366) target = $region65
                $region62: #{net_forward.3} parent=50 // loop_body
                  %v372 = vld [vmem:[%s370] sm:$0xf]
                  %373 = vst [vmem:[%s371] sm:$0xf] %v372
                  %v374 = vld [vmem:[%s370 + $0x4] sm:$0xf]
                  %375 = vst [vmem:[%s371 + $0x4] sm:$0xf] %v374
                  %v376 = vld [vmem:[%s370 + $0x8] sm:$0xf]
                  %377 = vst [vmem:[%s371 + $0x8] sm:$0xf] %v376
                  %v378 = vld [vmem:[%s370 + $0xc] sm:$0xf]
                  %379 = vst [vmem:[%s371 + $0xc] sm:$0xf] %v378
                  %v380 = vld [vmem:[%s370 + $0x10] sm:$0xf]
                  %381 = vst [vmem:[%s371 + $0x10] sm:$0xf] %v380
                  %v382 = vld [vmem:[%s370 + $0x14] sm:$0xf]
                  %383 = vst [vmem:[%s371 + $0x14] sm:$0xf] %v382
                  %v384 = vld [vmem:[%s370 + $0x18] sm:$0xf]
                  %385 = vst [vmem:[%s371 + $0x18] sm:$0xf] %v384
                  %v386 = vld [vmem:[%s370 + $0x1c] sm:$0xf]
                  %387 = vst [vmem:[%s371 + $0x1c] sm:$0xf] %v386
                  %v388 = vld [vmem:[%s370 + $0x20] sm:$0xf]
                  %389 = vst [vmem:[%s371 + $0x20] sm:$0xf] %v388
                  %v390 = vld [vmem:[%s370 + $0x24] sm:$0xf]
                  %391 = vst [vmem:[%s371 + $0x24] sm:$0xf] %v390
                  %v392 = vld [vmem:[%s370 + $0x28] sm:$0xf]
                  %393 = vst [vmem:[%s371 + $0x28] sm:$0xf] %v392
                  %v394 = vld [vmem:[%s370 + $0x2c] sm:$0xf]
                  %395 = vst [vmem:[%s371 + $0x2c] sm:$0xf] %v394
                  %v396 = vld [vmem:[%s370 + $0x30] sm:$0xf]
                  %397 = vst [vmem:[%s371 + $0x30] sm:$0xf] %v396
                  %v398 = vld [vmem:[%s370 + $0x34] sm:$0xf]
                  %399 = vst [vmem:[%s371 + $0x34] sm:$0xf] %v398
                  %v400 = vld [vmem:[%s370 + $0x38] sm:$0xf]
                  %401 = vst [vmem:[%s371 + $0x38] sm:$0xf] %v400
                  %v402 = vld [vmem:[%s370 + $0x3c] sm:$0xf]
                  %403 = vst [vmem:[%s371 + $0x3c] sm:$0xf] %v402
                  %v404 = vld [vmem:[%s370 + $0x40] sm:$0xf]
                  %405 = vst [vmem:[%s371 + $0x40] sm:$0xf] %v404
                  %v406 = vld [vmem:[%s370 + $0x44] sm:$0xf]
                  %407 = vst [vmem:[%s371 + $0x44] sm:$0xf] %v406
                  %v408 = vld [vmem:[%s370 + $0x48] sm:$0xf]
                  %409 = vst [vmem:[%s371 + $0x48] sm:$0xf] %v408
                  %v410 = vld [vmem:[%s370 + $0x4c] sm:$0xf]
                  %411 = vst [vmem:[%s371 + $0x4c] sm:$0xf] %v410
                  %v412 = vld [vmem:[%s370 + $0x50] sm:$0xf]
                  %413 = vst [vmem:[%s371 + $0x50] sm:$0xf] %v412
                  %v414 = vld [vmem:[%s370 + $0x54] sm:$0xf]
                  %415 = vst [vmem:[%s371 + $0x54] sm:$0xf] %v414
                  %v416 = vld [vmem:[%s370 + $0x58] sm:$0xf]
                  %417 = vst [vmem:[%s371 + $0x58] sm:$0xf] %v416
                  %v418 = vld [vmem:[%s370 + $0x5c] sm:$0xf]
                  %419 = vst [vmem:[%s371 + $0x5c] sm:$0xf] %v418
                  %v420 = vld [vmem:[%s370 + $0x60] sm:$0xf]
                  %421 = vst [vmem:[%s371 + $0x60] sm:$0xf] %v420
                  %v422 = vld [vmem:[%s370 + $0xc8] sm:$0xf]
                  %423 = vst [vmem:[%s371 + $0x64] sm:$0xf] %v422
                  %v424 = vld [vmem:[%s370 + $0xcc] sm:$0xf]
                  %425 = vst [vmem:[%s371 + $0x68] sm:$0xf] %v424
                  %v426 = vld [vmem:[%s370 + $0xd0] sm:$0xf]
                  %427 = vst [vmem:[%s371 + $0x6c] sm:$0xf] %v426
                  %v428 = vld [vmem:[%s370 + $0xd4] sm:$0xf]
                  %429 = vst [vmem:[%s371 + $0x70] sm:$0xf] %v428
                  %v430 = vld [vmem:[%s370 + $0xd8] sm:$0xf]
                  %431 = vst [vmem:[%s371 + $0x74] sm:$0xf] %v430
                  %v432 = vld [vmem:[%s370 + $0xdc] sm:$0xf]
                  %433 = vst [vmem:[%s371 + $0x78] sm:$0xf] %v432
                  %v434 = vld [vmem:[%s370 + $0xe0] sm:$0xf]
                  %435 = vst [vmem:[%s371 + $0x7c] sm:$0xf] %v434
                  %v436 = vld [vmem:[%s370 + $0xe4] sm:$0xf]
                  %437 = vst [vmem:[%s371 + $0x80] sm:$0xf] %v436
                  %v438 = vld [vmem:[%s370 + $0xe8] sm:$0xf]
                  %439 = vst [vmem:[%s371 + $0x84] sm:$0xf] %v438
                  %v440 = vld [vmem:[%s370 + $0xec] sm:$0xf]
                  %441 = vst [vmem:[%s371 + $0x88] sm:$0xf] %v440
                  %v442 = vld [vmem:[%s370 + $0xf0] sm:$0xf]
                  %443 = vst [vmem:[%s371 + $0x8c] sm:$0xf] %v442
                  %v444 = vld [vmem:[%s370 + $0xf4] sm:$0xf]
                  %445 = vst [vmem:[%s371 + $0x90] sm:$0xf] %v444
                  %v446 = vld [vmem:[%s370 + $0xf8] sm:$0xf]
                  %447 = vst [vmem:[%s371 + $0x94] sm:$0xf] %v446
                  %v448 = vld [vmem:[%s370 + $0xfc] sm:$0xf]
                  %449 = vst [vmem:[%s371 + $0x98] sm:$0xf] %v448
                  %v450 = vld [vmem:[%s370 + $0x100] sm:$0xf]
                  %451 = vst [vmem:[%s371 + $0x9c] sm:$0xf] %v450
                  %v452 = vld [vmem:[%s370 + $0x104] sm:$0xf]
                  %453 = vst [vmem:[%s371 + $0xa0] sm:$0xf] %v452
                  %v454 = vld [vmem:[%s370 + $0x108] sm:$0xf]
                  %455 = vst [vmem:[%s371 + $0xa4] sm:$0xf] %v454
                  %v456 = vld [vmem:[%s370 + $0x10c] sm:$0xf]
                  %457 = vst [vmem:[%s371 + $0xa8] sm:$0xf] %v456
                  %v458 = vld [vmem:[%s370 + $0x110] sm:$0xf]
                  %459 = vst [vmem:[%s371 + $0xac] sm:$0xf] %v458
                  %v460 = vld [vmem:[%s370 + $0x114] sm:$0xf]
                  %461 = vst [vmem:[%s371 + $0xb0] sm:$0xf] %v460
                  %v462 = vld [vmem:[%s370 + $0x118] sm:$0xf]
                  %463 = vst [vmem:[%s371 + $0xb4] sm:$0xf] %v462
                  %v464 = vld [vmem:[%s370 + $0x11c] sm:$0xf]
                  %465 = vst [vmem:[%s371 + $0xb8] sm:$0xf] %v464
                  %v466 = vld [vmem:[%s370 + $0x120] sm:$0xf]
                  %467 = vst [vmem:[%s371 + $0xbc] sm:$0xf] %v466
                  %v468 = vld [vmem:[%s370 + $0x124] sm:$0xf]
                  %469 = vst [vmem:[%s371 + $0xc0] sm:$0xf] %v468
                  %v470 = vld [vmem:[%s370 + $0x128] sm:$0xf]
                  %471 = vst [vmem:[%s371 + $0xc4] sm:$0xf] %v470
                  %v472 = vld [vmem:[%s370 + $0x190] sm:$0xf]
                  %473 = vst [vmem:[%s371 + $0xc8] sm:$0xf] %v472
                  %v474 = vld [vmem:[%s370 + $0x194] sm:$0xf]
                  %475 = vst [vmem:[%s371 + $0xcc] sm:$0xf] %v474
                  %v476 = vld [vmem:[%s370 + $0x198] sm:$0xf]
                  %477 = vst [vmem:[%s371 + $0xd0] sm:$0xf] %v476
                  %v478 = vld [vmem:[%s370 + $0x19c] sm:$0xf]
                  %479 = vst [vmem:[%s371 + $0xd4] sm:$0xf] %v478
                  %v480 = vld [vmem:[%s370 + $0x1a0] sm:$0xf]
                  %481 = vst [vmem:[%s371 + $0xd8] sm:$0xf] %v480
                  %v482 = vld [vmem:[%s370 + $0x1a4] sm:$0xf]
                  %483 = vst [vmem:[%s371 + $0xdc] sm:$0xf] %v482
                  %v484 = vld [vmem:[%s370 + $0x1a8] sm:$0xf]
                  %485 = vst [vmem:[%s371 + $0xe0] sm:$0xf] %v484
                  %v486 = vld [vmem:[%s370 + $0x1ac] sm:$0xf]
                  %487 = vst [vmem:[%s371 + $0xe4] sm:$0xf] %v486
                  %v488 = vld [vmem:[%s370 + $0x1b0] sm:$0xf]
                  %489 = vst [vmem:[%s371 + $0xe8] sm:$0xf] %v488
                  %v490 = vld [vmem:[%s370 + $0x1b4] sm:$0xf]
                  %491 = vst [vmem:[%s371 + $0xec] sm:$0xf] %v490
                  %v492 = vld [vmem:[%s370 + $0x1b8] sm:$0xf]
                  %493 = vst [vmem:[%s371 + $0xf0] sm:$0xf] %v492
                  %v494 = vld [vmem:[%s370 + $0x1bc] sm:$0xf]
                  %495 = vst [vmem:[%s371 + $0xf4] sm:$0xf] %v494
                  %v496 = vld [vmem:[%s370 + $0x1c0] sm:$0xf]
                  %497 = vst [vmem:[%s371 + $0xf8] sm:$0xf] %v496
                  %v498 = vld [vmem:[%s370 + $0x1c4] sm:$0xf]
                  %499 = vst [vmem:[%s371 + $0xfc] sm:$0xf] %v498
                  %v500 = vld [vmem:[%s370 + $0x1c8] sm:$0xf]
                  %501 = vst [vmem:[%s371 + $0x100] sm:$0xf] %v500
                  %v502 = vld [vmem:[%s370 + $0x1cc] sm:$0xf]
                  %503 = vst [vmem:[%s371 + $0x104] sm:$0xf] %v502
                  %v504 = vld [vmem:[%s370 + $0x1d0] sm:$0xf]
                  %505 = vst [vmem:[%s371 + $0x108] sm:$0xf] %v504
                  %v506 = vld [vmem:[%s370 + $0x1d4] sm:$0xf]
                  %507 = vst [vmem:[%s371 + $0x10c] sm:$0xf] %v506
                  %v508 = vld [vmem:[%s370 + $0x1d8] sm:$0xf]
                  %509 = vst [vmem:[%s371 + $0x110] sm:$0xf] %v508
                  %v510 = vld [vmem:[%s370 + $0x1dc] sm:$0xf]
                  %511 = vst [vmem:[%s371 + $0x114] sm:$0xf] %v510
                  %v512 = vld [vmem:[%s370 + $0x1e0] sm:$0xf]
                  %513 = vst [vmem:[%s371 + $0x118] sm:$0xf] %v512
                  %v514 = vld [vmem:[%s370 + $0x1e4] sm:$0xf]
                  %515 = vst [vmem:[%s371 + $0x11c] sm:$0xf] %v514
                  %v516 = vld [vmem:[%s370 + $0x1e8] sm:$0xf]
                  %517 = vst [vmem:[%s371 + $0x120] sm:$0xf] %v516
                  %v518 = vld [vmem:[%s370 + $0x1ec] sm:$0xf]
                  %519 = vst [vmem:[%s371 + $0x124] sm:$0xf] %v518
                  %v520 = vld [vmem:[%s370 + $0x1f0] sm:$0xf]
                  %521 = vst [vmem:[%s371 + $0x128] sm:$0xf] %v520
                  %v522 = vld [vmem:[%s370 + $0x258] sm:$0xf]
                  %523 = vst [vmem:[%s371 + $0x12c] sm:$0xf] %v522
                  %v524 = vld [vmem:[%s370 + $0x25c] sm:$0xf]
                  %525 = vst [vmem:[%s371 + $0x130] sm:$0xf] %v524
                  %v526 = vld [vmem:[%s370 + $0x260] sm:$0xf]
                  %527 = vst [vmem:[%s371 + $0x134] sm:$0xf] %v526
                  %v528 = vld [vmem:[%s370 + $0x264] sm:$0xf]
                  %529 = vst [vmem:[%s371 + $0x138] sm:$0xf] %v528
                  %v530 = vld [vmem:[%s370 + $0x268] sm:$0xf]
                  %531 = vst [vmem:[%s371 + $0x13c] sm:$0xf] %v530
                  %v532 = vld [vmem:[%s370 + $0x26c] sm:$0xf]
                  %533 = vst [vmem:[%s371 + $0x140] sm:$0xf] %v532
                  %v534 = vld [vmem:[%s370 + $0x270] sm:$0xf]
                  %535 = vst [vmem:[%s371 + $0x144] sm:$0xf] %v534
                  %v536 = vld [vmem:[%s370 + $0x274] sm:$0xf]
                  %537 = vst [vmem:[%s371 + $0x148] sm:$0xf] %v536
                  %v538 = vld [vmem:[%s370 + $0x278] sm:$0xf]
                  %539 = vst [vmem:[%s371 + $0x14c] sm:$0xf] %v538
                  %v540 = vld [vmem:[%s370 + $0x27c] sm:$0xf]
                  %541 = vst [vmem:[%s371 + $0x150] sm:$0xf] %v540
                  %v542 = vld [vmem:[%s370 + $0x280] sm:$0xf]
                  %543 = vst [vmem:[%s371 + $0x154] sm:$0xf] %v542
                  %v544 = vld [vmem:[%s370 + $0x284] sm:$0xf]
                  %545 = vst [vmem:[%s371 + $0x158] sm:$0xf] %v544
                  %v546 = vld [vmem:[%s370 + $0x288] sm:$0xf]
                  %547 = vst [vmem:[%s371 + $0x15c] sm:$0xf] %v546
                  %v548 = vld [vmem:[%s370 + $0x28c] sm:$0xf]
                  %549 = vst [vmem:[%s371 + $0x160] sm:$0xf] %v548
                  %v550 = vld [vmem:[%s370 + $0x290] sm:$0xf]
                  %551 = vst [vmem:[%s371 + $0x164] sm:$0xf] %v550
                  %v552 = vld [vmem:[%s370 + $0x294] sm:$0xf]
                  %553 = vst [vmem:[%s371 + $0x168] sm:$0xf] %v552
                  %v554 = vld [vmem:[%s370 + $0x298] sm:$0xf]
                  %555 = vst [vmem:[%s371 + $0x16c] sm:$0xf] %v554
                  %v556 = vld [vmem:[%s370 + $0x29c] sm:$0xf]
                  %557 = vst [vmem:[%s371 + $0x170] sm:$0xf] %v556
                  %v558 = vld [vmem:[%s370 + $0x2a0] sm:$0xf]
                  %559 = vst [vmem:[%s371 + $0x174] sm:$0xf] %v558
                  %v560 = vld [vmem:[%s370 + $0x2a4] sm:$0xf]
                  %561 = vst [vmem:[%s371 + $0x178] sm:$0xf] %v560
                  %v562 = vld [vmem:[%s370 + $0x2a8] sm:$0xf]
                  %563 = vst [vmem:[%s371 + $0x17c] sm:$0xf] %v562
                  %v564 = vld [vmem:[%s370 + $0x2ac] sm:$0xf]
                  %565 = vst [vmem:[%s371 + $0x180] sm:$0xf] %v564
                  %v566 = vld [vmem:[%s370 + $0x2b0] sm:$0xf]
                  %567 = vst [vmem:[%s371 + $0x184] sm:$0xf] %v566
                  %v568 = vld [vmem:[%s370 + $0x2b4] sm:$0xf]
                  %569 = vst [vmem:[%s371 + $0x188] sm:$0xf] %v568
                  %v570 = vld [vmem:[%s370 + $0x2b8] sm:$0xf]
                  %571 = vst [vmem:[%s371 + $0x18c] sm:$0xf] %v570
                $region63: #{net_forward.3} parent=50 // loop_footer
                  %s369 = sadd.s32 1, %s365
                $region64: #{net_forward.3} parent=50 // loop_footer_branch
                  %364 = sbr.rel target = $region60
                $region65: #{net_forward.3} parent=50 // loop_exit
                  _
              $region51: #{net_forward.3} parent=35 // pred_fallthru
                _
            $region36: #{net_forward.3} parent=31 // pred_fallthru
              _
            // Predicated region
            $region37: #{net_forward.3} parent=31 // pred_check
              _
            $region38: #{net_forward.3} parent=31 // pred_check_branch
              %143 = sbr.rel (0) target = $region40
            $region39: #{net_forward.3} parent=31 // pred_region
              loop: start=0, step=1, limit=1
              $region41: #{net_forward.3} parent=39 // loop_pre_header
                _
              $region42: #{net_forward.3} parent=39 // loop_header
                %s146 = sphi 0, %s150
                %p147 = scmp.ge.s32.totalorder %s146, 1
                %s151 = sphi %s137, %s137
                %s152 = sphi %s134, %s134
              $region43: #{net_forward.3} parent=39 // loop_header_branch
                %149 = sbr.rel (%p147) target = $region47
              $region44: #{net_forward.3} parent=39 // loop_body
                %v153 = vld [vmem:[%s151] sm:$0xf]
                %154 = vst [vmem:[%s152] sm:$0xf] %v153
                %v155 = vld [vmem:[%s151 + $0x4] sm:$0xf]
                %156 = vst [vmem:[%s152 + $0x4] sm:$0xf] %v155
                %v157 = vld [vmem:[%s151 + $0x8] sm:$0xf]
                %158 = vst [vmem:[%s152 + $0x8] sm:$0xf] %v157
                %v159 = vld [vmem:[%s151 + $0xc] sm:$0xf]
                %160 = vst [vmem:[%s152 + $0xc] sm:$0xf] %v159
                %v161 = vld [vmem:[%s151 + $0x10] sm:$0xf]
                %162 = vst [vmem:[%s152 + $0x10] sm:$0xf] %v161
                %v163 = vld [vmem:[%s151 + $0x14] sm:$0xf]
                %164 = vst [vmem:[%s152 + $0x14] sm:$0xf] %v163
                %v165 = vld [vmem:[%s151 + $0x18] sm:$0xf]
                %166 = vst [vmem:[%s152 + $0x18] sm:$0xf] %v165
                %v167 = vld [vmem:[%s151 + $0x1c] sm:$0xf]
                %168 = vst [vmem:[%s152 + $0x1c] sm:$0xf] %v167
                %v169 = vld [vmem:[%s151 + $0x20] sm:$0xf]
                %170 = vst [vmem:[%s152 + $0x20] sm:$0xf] %v169
                %v171 = vld [vmem:[%s151 + $0x24] sm:$0xf]
                %172 = vst [vmem:[%s152 + $0x24] sm:$0xf] %v171
                %v173 = vld [vmem:[%s151 + $0x28] sm:$0xf]
                %174 = vst [vmem:[%s152 + $0x28] sm:$0xf] %v173
                %v175 = vld [vmem:[%s151 + $0x2c] sm:$0xf]
                %176 = vst [vmem:[%s152 + $0x2c] sm:$0xf] %v175
                %v177 = vld [vmem:[%s151 + $0x30] sm:$0xf]
                %178 = vst [vmem:[%s152 + $0x30] sm:$0xf] %v177
                %v179 = vld [vmem:[%s151 + $0x34] sm:$0xf]
                %180 = vst [vmem:[%s152 + $0x34] sm:$0xf] %v179
                %v181 = vld [vmem:[%s151 + $0x38] sm:$0xf]
                %182 = vst [vmem:[%s152 + $0x38] sm:$0xf] %v181
                %v183 = vld [vmem:[%s151 + $0x3c] sm:$0xf]
                %184 = vst [vmem:[%s152 + $0x3c] sm:$0xf] %v183
                %v185 = vld [vmem:[%s151 + $0x40] sm:$0xf]
                %186 = vst [vmem:[%s152 + $0x40] sm:$0xf] %v185
                %v187 = vld [vmem:[%s151 + $0x44] sm:$0xf]
                %188 = vst [vmem:[%s152 + $0x44] sm:$0xf] %v187
                %v189 = vld [vmem:[%s151 + $0x48] sm:$0xf]
                %190 = vst [vmem:[%s152 + $0x48] sm:$0xf] %v189
                %v191 = vld [vmem:[%s151 + $0x4c] sm:$0xf]
                %192 = vst [vmem:[%s152 + $0x4c] sm:$0xf] %v191
                %v193 = vld [vmem:[%s151 + $0x50] sm:$0xf]
                %194 = vst [vmem:[%s152 + $0x50] sm:$0xf] %v193
                %v195 = vld [vmem:[%s151 + $0x54] sm:$0xf]
                %196 = vst [vmem:[%s152 + $0x54] sm:$0xf] %v195
                %v197 = vld [vmem:[%s151 + $0x58] sm:$0xf]
                %198 = vst [vmem:[%s152 + $0x58] sm:$0xf] %v197
                %v199 = vld [vmem:[%s151 + $0x5c] sm:$0xf]
                %200 = vst [vmem:[%s152 + $0x5c] sm:$0xf] %v199
                %v201 = vld [vmem:[%s151 + $0x60] sm:$0xf]
                %202 = vst [vmem:[%s152 + $0x60] sm:$0xf] %v201
                %v203 = vld [vmem:[%s151 + $0xc8] sm:$0xf]
                %204 = vst [vmem:[%s152 + $0x64] sm:$0xf] %v203
                %v205 = vld [vmem:[%s151 + $0xcc] sm:$0xf]
                %206 = vst [vmem:[%s152 + $0x68] sm:$0xf] %v205
                %v207 = vld [vmem:[%s151 + $0xd0] sm:$0xf]
                %208 = vst [vmem:[%s152 + $0x6c] sm:$0xf] %v207
                %v209 = vld [vmem:[%s151 + $0xd4] sm:$0xf]
                %210 = vst [vmem:[%s152 + $0x70] sm:$0xf] %v209
                %v211 = vld [vmem:[%s151 + $0xd8] sm:$0xf]
                %212 = vst [vmem:[%s152 + $0x74] sm:$0xf] %v211
                %v213 = vld [vmem:[%s151 + $0xdc] sm:$0xf]
                %214 = vst [vmem:[%s152 + $0x78] sm:$0xf] %v213
                %v215 = vld [vmem:[%s151 + $0xe0] sm:$0xf]
                %216 = vst [vmem:[%s152 + $0x7c] sm:$0xf] %v215
                %v217 = vld [vmem:[%s151 + $0xe4] sm:$0xf]
                %218 = vst [vmem:[%s152 + $0x80] sm:$0xf] %v217
                %v219 = vld [vmem:[%s151 + $0xe8] sm:$0xf]
                %220 = vst [vmem:[%s152 + $0x84] sm:$0xf] %v219
                %v221 = vld [vmem:[%s151 + $0xec] sm:$0xf]
                %222 = vst [vmem:[%s152 + $0x88] sm:$0xf] %v221
                %v223 = vld [vmem:[%s151 + $0xf0] sm:$0xf]
                %224 = vst [vmem:[%s152 + $0x8c] sm:$0xf] %v223
                %v225 = vld [vmem:[%s151 + $0xf4] sm:$0xf]
                %226 = vst [vmem:[%s152 + $0x90] sm:$0xf] %v225
                %v227 = vld [vmem:[%s151 + $0xf8] sm:$0xf]
                %228 = vst [vmem:[%s152 + $0x94] sm:$0xf] %v227
                %v229 = vld [vmem:[%s151 + $0xfc] sm:$0xf]
                %230 = vst [vmem:[%s152 + $0x98] sm:$0xf] %v229
                %v231 = vld [vmem:[%s151 + $0x100] sm:$0xf]
                %232 = vst [vmem:[%s152 + $0x9c] sm:$0xf] %v231
                %v233 = vld [vmem:[%s151 + $0x104] sm:$0xf]
                %234 = vst [vmem:[%s152 + $0xa0] sm:$0xf] %v233
                %v235 = vld [vmem:[%s151 + $0x108] sm:$0xf]
                %236 = vst [vmem:[%s152 + $0xa4] sm:$0xf] %v235
                %v237 = vld [vmem:[%s151 + $0x10c] sm:$0xf]
                %238 = vst [vmem:[%s152 + $0xa8] sm:$0xf] %v237
                %v239 = vld [vmem:[%s151 + $0x110] sm:$0xf]
                %240 = vst [vmem:[%s152 + $0xac] sm:$0xf] %v239
                %v241 = vld [vmem:[%s151 + $0x114] sm:$0xf]
                %242 = vst [vmem:[%s152 + $0xb0] sm:$0xf] %v241
                %v243 = vld [vmem:[%s151 + $0x118] sm:$0xf]
                %244 = vst [vmem:[%s152 + $0xb4] sm:$0xf] %v243
                %v245 = vld [vmem:[%s151 + $0x11c] sm:$0xf]
                %246 = vst [vmem:[%s152 + $0xb8] sm:$0xf] %v245
                %v247 = vld [vmem:[%s151 + $0x120] sm:$0xf]
                %248 = vst [vmem:[%s152 + $0xbc] sm:$0xf] %v247
                %v249 = vld [vmem:[%s151 + $0x124] sm:$0xf]
                %250 = vst [vmem:[%s152 + $0xc0] sm:$0xf] %v249
                %v251 = vld [vmem:[%s151 + $0x128] sm:$0xf]
                %252 = vst [vmem:[%s152 + $0xc4] sm:$0xf] %v251
                %v253 = vld [vmem:[%s151 + $0x190] sm:$0xf]
                %254 = vst [vmem:[%s152 + $0xc8] sm:$0xf] %v253
                %v255 = vld [vmem:[%s151 + $0x194] sm:$0xf]
                %256 = vst [vmem:[%s152 + $0xcc] sm:$0xf] %v255
                %v257 = vld [vmem:[%s151 + $0x198] sm:$0xf]
                %258 = vst [vmem:[%s152 + $0xd0] sm:$0xf] %v257
                %v259 = vld [vmem:[%s151 + $0x19c] sm:$0xf]
                %260 = vst [vmem:[%s152 + $0xd4] sm:$0xf] %v259
                %v261 = vld [vmem:[%s151 + $0x1a0] sm:$0xf]
                %262 = vst [vmem:[%s152 + $0xd8] sm:$0xf] %v261
                %v263 = vld [vmem:[%s151 + $0x1a4] sm:$0xf]
                %264 = vst [vmem:[%s152 + $0xdc] sm:$0xf] %v263
                %v265 = vld [vmem:[%s151 + $0x1a8] sm:$0xf]
                %266 = vst [vmem:[%s152 + $0xe0] sm:$0xf] %v265
                %v267 = vld [vmem:[%s151 + $0x1ac] sm:$0xf]
                %268 = vst [vmem:[%s152 + $0xe4] sm:$0xf] %v267
                %v269 = vld [vmem:[%s151 + $0x1b0] sm:$0xf]
                %270 = vst [vmem:[%s152 + $0xe8] sm:$0xf] %v269
                %v271 = vld [vmem:[%s151 + $0x1b4] sm:$0xf]
                %272 = vst [vmem:[%s152 + $0xec] sm:$0xf] %v271
                %v273 = vld [vmem:[%s151 + $0x1b8] sm:$0xf]
                %274 = vst [vmem:[%s152 + $0xf0] sm:$0xf] %v273
                %v275 = vld [vmem:[%s151 + $0x1bc] sm:$0xf]
                %276 = vst [vmem:[%s152 + $0xf4] sm:$0xf] %v275
                %v277 = vld [vmem:[%s151 + $0x1c0] sm:$0xf]
                %278 = vst [vmem:[%s152 + $0xf8] sm:$0xf] %v277
                %v279 = vld [vmem:[%s151 + $0x1c4] sm:$0xf]
                %280 = vst [vmem:[%s152 + $0xfc] sm:$0xf] %v279
                %v281 = vld [vmem:[%s151 + $0x1c8] sm:$0xf]
                %282 = vst [vmem:[%s152 + $0x100] sm:$0xf] %v281
                %v283 = vld [vmem:[%s151 + $0x1cc] sm:$0xf]
                %284 = vst [vmem:[%s152 + $0x104] sm:$0xf] %v283
                %v285 = vld [vmem:[%s151 + $0x1d0] sm:$0xf]
                %286 = vst [vmem:[%s152 + $0x108] sm:$0xf] %v285
                %v287 = vld [vmem:[%s151 + $0x1d4] sm:$0xf]
                %288 = vst [vmem:[%s152 + $0x10c] sm:$0xf] %v287
                %v289 = vld [vmem:[%s151 + $0x1d8] sm:$0xf]
                %290 = vst [vmem:[%s152 + $0x110] sm:$0xf] %v289
                %v291 = vld [vmem:[%s151 + $0x1dc] sm:$0xf]
                %292 = vst [vmem:[%s152 + $0x114] sm:$0xf] %v291
                %v293 = vld [vmem:[%s151 + $0x1e0] sm:$0xf]
                %294 = vst [vmem:[%s152 + $0x118] sm:$0xf] %v293
                %v295 = vld [vmem:[%s151 + $0x1e4] sm:$0xf]
                %296 = vst [vmem:[%s152 + $0x11c] sm:$0xf] %v295
                %v297 = vld [vmem:[%s151 + $0x1e8] sm:$0xf]
                %298 = vst [vmem:[%s152 + $0x120] sm:$0xf] %v297
                %v299 = vld [vmem:[%s151 + $0x1ec] sm:$0xf]
                %300 = vst [vmem:[%s152 + $0x124] sm:$0xf] %v299
                %v301 = vld [vmem:[%s151 + $0x1f0] sm:$0xf]
                %302 = vst [vmem:[%s152 + $0x128] sm:$0xf] %v301
                %v303 = vld [vmem:[%s151 + $0x258] sm:$0xf]
                %304 = vst [vmem:[%s152 + $0x12c] sm:$0xf] %v303
                %v305 = vld [vmem:[%s151 + $0x25c] sm:$0xf]
                %306 = vst [vmem:[%s152 + $0x130] sm:$0xf] %v305
                %v307 = vld [vmem:[%s151 + $0x260] sm:$0xf]
                %308 = vst [vmem:[%s152 + $0x134] sm:$0xf] %v307
                %v309 = vld [vmem:[%s151 + $0x264] sm:$0xf]
                %310 = vst [vmem:[%s152 + $0x138] sm:$0xf] %v309
                %v311 = vld [vmem:[%s151 + $0x268] sm:$0xf]
                %312 = vst [vmem:[%s152 + $0x13c] sm:$0xf] %v311
                %v313 = vld [vmem:[%s151 + $0x26c] sm:$0xf]
                %314 = vst [vmem:[%s152 + $0x140] sm:$0xf] %v313
                %v315 = vld [vmem:[%s151 + $0x270] sm:$0xf]
                %316 = vst [vmem:[%s152 + $0x144] sm:$0xf] %v315
                %v317 = vld [vmem:[%s151 + $0x274] sm:$0xf]
                %318 = vst [vmem:[%s152 + $0x148] sm:$0xf] %v317
                %v319 = vld [vmem:[%s151 + $0x278] sm:$0xf]
                %320 = vst [vmem:[%s152 + $0x14c] sm:$0xf] %v319
                %v321 = vld [vmem:[%s151 + $0x27c] sm:$0xf]
                %322 = vst [vmem:[%s152 + $0x150] sm:$0xf] %v321
                %v323 = vld [vmem:[%s151 + $0x280] sm:$0xf]
                %324 = vst [vmem:[%s152 + $0x154] sm:$0xf] %v323
                %v325 = vld [vmem:[%s151 + $0x284] sm:$0xf]
                %326 = vst [vmem:[%s152 + $0x158] sm:$0xf] %v325
                %v327 = vld [vmem:[%s151 + $0x288] sm:$0xf]
                %328 = vst [vmem:[%s152 + $0x15c] sm:$0xf] %v327
                %v329 = vld [vmem:[%s151 + $0x28c] sm:$0xf]
                %330 = vst [vmem:[%s152 + $0x160] sm:$0xf] %v329
                %v331 = vld [vmem:[%s151 + $0x290] sm:$0xf]
                %332 = vst [vmem:[%s152 + $0x164] sm:$0xf] %v331
                %v333 = vld [vmem:[%s151 + $0x294] sm:$0xf]
                %334 = vst [vmem:[%s152 + $0x168] sm:$0xf] %v333
                %v335 = vld [vmem:[%s151 + $0x298] sm:$0xf]
                %336 = vst [vmem:[%s152 + $0x16c] sm:$0xf] %v335
                %v337 = vld [vmem:[%s151 + $0x29c] sm:$0xf]
                %338 = vst [vmem:[%s152 + $0x170] sm:$0xf] %v337
                %v339 = vld [vmem:[%s151 + $0x2a0] sm:$0xf]
                %340 = vst [vmem:[%s152 + $0x174] sm:$0xf] %v339
                %v341 = vld [vmem:[%s151 + $0x2a4] sm:$0xf]
                %342 = vst [vmem:[%s152 + $0x178] sm:$0xf] %v341
                %v343 = vld [vmem:[%s151 + $0x2a8] sm:$0xf]
                %344 = vst [vmem:[%s152 + $0x17c] sm:$0xf] %v343
                %v345 = vld [vmem:[%s151 + $0x2ac] sm:$0xf]
                %346 = vst [vmem:[%s152 + $0x180] sm:$0xf] %v345
                %v347 = vld [vmem:[%s151 + $0x2b0] sm:$0xf]
                %348 = vst [vmem:[%s152 + $0x184] sm:$0xf] %v347
                %v349 = vld [vmem:[%s151 + $0x2b4] sm:$0xf]
                %350 = vst [vmem:[%s152 + $0x188] sm:$0xf] %v349
                %v351 = vld [vmem:[%s151 + $0x2b8] sm:$0xf]
                %352 = vst [vmem:[%s152 + $0x18c] sm:$0xf] %v351
              $region45: #{net_forward.3} parent=39 // loop_footer
                %s150 = sadd.s32 1, %s146
              $region46: #{net_forward.3} parent=39 // loop_footer_branch
                %145 = sbr.rel target = $region42
              $region47: #{net_forward.3} parent=39 // loop_exit
                _
            $region40: #{net_forward.3} parent=31 // pred_fallthru
              _
          $region32: #{net_forward.3} parent=27 // pred_fallthru
            _
          %572 = vnop
        $region28: #{net_forward.3} parent=23 // pred_fallthru
          _
      $region24: #{net_forward.3} parent=5 // pred_fallthru
        _
      %p573 = scmp.le.s32.totalorder 1, %s9
      %p574 = scmp.lt.s32.totalorder %s9, 3
      %p575 = pnand %p573, %p574
      %p576 = pneg %p575
      // Predicated region
      $region66: #{net_forward.3} parent=5 // pred_check
        _
      $region67: #{net_forward.3} parent=5 // pred_check_branch
        %578 = sbr.rel (%p575) target = $region69
      $region68: #{net_forward.3} parent=5 // pred_region
        %s579 = ssub.s32 %s9, 1
        %s580 = sand.u32 %s22, 1
        %s581 = sand.u32 %s22, 1
        %s582 = smul.addr %s581, 400
        %s583 = scalar_lea.vmem [#allocation2], %s582
        // Predicated region
        $region70: #{net_forward.3} parent=68 // pred_check
          %p584 = pneg %p35
        $region71: #{net_forward.3} parent=68 // pred_check_branch
          %586 = sbr.rel (%p584) target = $region73
        $region72: #{net_forward.3} parent=68 // pred_region
          _
        $region73: #{net_forward.3} parent=68 // pred_fallthru
          _
        %s587 = sand.u32 %s22, 1
        %s588 = sand.u32 %s22, 1
        %s589 = smul.addr %s588, 400
        %s590 = scalar_lea.vmem [#allocation2], %s589
        %p591 = pneg %p35
        %p592 = pneg %p32
        %p593 = pneg %p56
        %p594 = pneg %p53
        %p595 = pneg %p77
        %p596 = pneg %p74
        %p597 = pneg %p103
        %p598 = pneg %p100
        %s599 = smul.u32 25, %s14
        %p600 = scmp.lt.s32.totalorder %s599, 49
        %s601 = scalar_select %p600, %s599, 49
        %s602 = smul.addr %s601, 4
        %s603 = scalar_lea.vmem %s3, %s602
        %s604 = smul.u32 25, %s14
        %s605 = smul.u32 25, %s14
        %p606 = scmp.lt.s32.totalorder %s605, 49
        %s607 = scalar_select %p606, %s605, 49
        %s608 = smul.addr %s607, 4
        %s609 = scalar_lea.vmem %s3, %s608
        %s610 = smul.u32 25, %s14
        %v612 = vld [vmem:[%s1] sm:$0xf]
        %v613 = vld [vmem:[%s1 + $0x4] sm:$0xf]
        %v614 = vld [vmem:[%s1 + $0x8] sm:$0xf]
        %v615 = vld [vmem:[%s1 + $0xc] sm:$0xf]
        %v616 = vld [vmem:[%s1 + $0x10] sm:$0xf]
        %v617 = vld [vmem:[%s1 + $0x14] sm:$0xf]
        %v618 = vld [vmem:[%s1 + $0x18] sm:$0xf]
        %v619 = vld [vmem:[%s1 + $0x1c] sm:$0xf]
        %v620 = vld [vmem:[%s1 + $0x20] sm:$0xf]
        %v621 = vld [vmem:[%s1 + $0x24] sm:$0xf]
        %v622 = vld [vmem:[%s1 + $0x28] sm:$0xf]
        %v623 = vld [vmem:[%s1 + $0x2c] sm:$0xf]
        %v624 = vld [vmem:[%s1 + $0x30] sm:$0xf]
        %v625 = vld [vmem:[%s1 + $0x34] sm:$0xf]
        %v626 = vld [vmem:[%s1 + $0x38] sm:$0xf]
        %v627 = vld [vmem:[%s1 + $0x3c] sm:$0xf]
        %v628 = vld [vmem:[%s583] sm:$0xf]
        %v629 = vld [vmem:[%s583 + $0x4] sm:$0xf]
        %v630 = vld [vmem:[%s583 + $0x8] sm:$0xf]
        %v631 = vld [vmem:[%s583 + $0xc] sm:$0xf]
        %v632 = vld [vmem:[%s583 + $0x10] sm:$0xf]
        %v633 = vld [vmem:[%s583 + $0x14] sm:$0xf]
        %v634 = vld [vmem:[%s583 + $0x18] sm:$0xf]
        %v635 = vld [vmem:[%s583 + $0x1c] sm:$0xf]
        %v636 = vld [vmem:[%s583 + $0x20] sm:$0xf]
        %v637 = vld [vmem:[%s583 + $0x24] sm:$0xf]
        %v638 = vld [vmem:[%s583 + $0x28] sm:$0xf]
        %v639 = vld [vmem:[%s583 + $0x2c] sm:$0xf]
        %v640 = vld [vmem:[%s583 + $0x30] sm:$0xf]
        %v641 = vld [vmem:[%s583 + $0x34] sm:$0xf]
        %v642 = vld [vmem:[%s583 + $0x38] sm:$0xf]
        %v643 = vld [vmem:[%s583 + $0x3c] sm:$0xf]
        %v644 = vld [vmem:[%s583 + $0x40] sm:$0xf]
        %v645 = vld [vmem:[%s583 + $0x44] sm:$0xf]
        %v646 = vld [vmem:[%s583 + $0x48] sm:$0xf]
        %v647 = vld [vmem:[%s583 + $0x4c] sm:$0xf]
        %v648 = vld [vmem:[%s583 + $0x50] sm:$0xf]
        %v649 = vld [vmem:[%s583 + $0x54] sm:$0xf]
        %v650 = vld [vmem:[%s583 + $0x58] sm:$0xf]
        %v651 = vld [vmem:[%s583 + $0x5c] sm:$0xf]
        %v652 = vld [vmem:[%s583 + $0x60] sm:$0xf]
        %v678 = vunpack.c.l.b16 %v628
        %v679 = vunpack.c.l.b16 %v629
        %v680 = vunpack.c.l.b16 %v630
        %v681 = vunpack.c.l.b16 %v631
        %v682 = vunpack.c.l.b16 %v632
        %v683 = vunpack.c.l.b16 %v633
        %v684 = vunpack.c.l.b16 %v634
        %v685 = vunpack.c.l.b16 %v635
        %v686 = vunpack.c.l.b16 %v636
        %v687 = vunpack.c.l.b16 %v637
        %v688 = vunpack.c.l.b16 %v638
        %v689 = vunpack.c.l.b16 %v639
        %v690 = vunpack.c.l.b16 %v640
        %v691 = vunpack.c.l.b16 %v641
        %v692 = vunpack.c.l.b16 %v642
        %v693 = vunpack.c.l.b16 %v643
        %v694 = vunpack.c.l.b16 %v644
        %v695 = vunpack.c.l.b16 %v645
        %v696 = vunpack.c.l.b16 %v646
        %v697 = vunpack.c.l.b16 %v647
        %v698 = vunpack.c.l.b16 %v648
        %v699 = vunpack.c.l.b16 %v649
        %v700 = vunpack.c.l.b16 %v650
        %v701 = vunpack.c.l.b16 %v651
        %v702 = vunpack.c.l.b16 %v652
        %v703 = vpack.c.b16 %v679, %v678
        %v704 = vpack.c.b16 %v681, %v680
        %v705 = vpack.c.b16 %v683, %v682
        %v706 = vpack.c.b16 %v685, %v684
        %v707 = vpack.c.b16 %v687, %v686
        %v708 = vpack.c.b16 %v689, %v688
        %v709 = vpack.c.b16 %v691, %v690
        %v710 = vpack.c.b16 %v693, %v692
        %v711 = vpack.c.b16 %v695, %v694
        %v712 = vpack.c.b16 %v697, %v696
        %v713 = vpack.c.b16 %v699, %v698
        %v714 = vpack.c.b16 %v701, %v700
        %v715 = vpack.c.b16 %v702, %v702
        %v745 = vunpack.c.l.b16 %v612
        %v746 = vunpack.c.l.b16 %v613
        %v747 = vunpack.c.l.b16 %v614
        %v748 = vunpack.c.l.b16 %v615
        %v749 = vunpack.c.l.b16 %v616
        %v750 = vunpack.c.l.b16 %v617
        %v751 = vunpack.c.l.b16 %v618
        %v752 = vunpack.c.l.b16 %v619
        %v753 = vunpack.c.l.b16 %v620
        %v754 = vunpack.c.l.b16 %v621
        %v755 = vunpack.c.l.b16 %v622
        %v756 = vunpack.c.l.b16 %v623
        %v757 = vunpack.c.l.b16 %v624
        %v758 = vunpack.c.l.b16 %v625
        %v759 = vunpack.c.l.b16 %v626
        %v760 = vunpack.c.l.b16 %v627
        %v761 = vpack.c.b16 %v746, %v745
        %v762 = vpack.c.b16 %v748, %v747
        %v763 = vpack.c.b16 %v750, %v749
        %v764 = vpack.c.b16 %v752, %v751
        %v765 = vpack.c.b16 %v754, %v753
        %v766 = vpack.c.b16 %v756, %v755
        %v767 = vpack.c.b16 %v758, %v757
        %v768 = vpack.c.b16 %v760, %v759
        %777 = vmatprep.subr.bf16.mxu0 0
        %778 = vmatpush1.bf16.msra.mxu0 %v761
        %779 = vmatprep.subr.bf16.mxu0 0
        %780 = vmatpush1.bf16.msra.mxu0 %v762
        %781 = vmatprep.subr.bf16.mxu0 0
        %782 = vmatpush1.bf16.msra.mxu0 %v763
        %783 = vmatprep.subr.bf16.mxu0 0
        %784 = vmatpush1.bf16.msra.mxu0 %v764
        %785 = vmatprep.subr.bf16.mxu0 0
        %786 = vmatpush1.bf16.msra.mxu0 %v765
        %787 = vmatprep.subr.bf16.mxu0 0
        %788 = vmatpush1.bf16.msra.mxu0 %v766
        %789 = vmatprep.subr.bf16.mxu0 0
        %790 = vmatpush1.bf16.msra.mxu0 %v767
        %791 = vmatprep.subr.bf16.mxu0 0
        %792 = vmatpush1.bf16.msra.mxu0 %v768
        %793 = vmatprep.subr.bf16.mxu0 0
        %794 = vmatpush1.bf16.msra.mxu0 0
        %795 = vmatprep.subr.bf16.mxu0 0
        %796 = vmatpush1.bf16.msra.mxu0 0
        %797 = vmatprep.subr.bf16.mxu0 0
        %798 = vmatpush1.bf16.msra.mxu0 0
        %799 = vmatprep.subr.bf16.mxu0 0
        %800 = vmatpush1.bf16.msra.mxu0 0
        %801 = vmatprep.subr.bf16.mxu0 0
        %802 = vmatpush1.bf16.msra.mxu0 0
        %803 = vmatprep.subr.bf16.mxu0 0
        %804 = vmatpush1.bf16.msra.mxu0 0
        %805 = vmatprep.subr.bf16.mxu0 0
        %806 = vmatpush1.bf16.msra.mxu0 0
        %807 = vmatprep.subr.bf16.mxu0 0
        %808 = vmatpush1.bf16.msra.mxu0 0
        %809 = vmatprep.mubr.bf16.mxu0 0
        %810 = vmatmul.mubr.bf16.gmra.mrb[0].mxu0 %v703
        %v811 = vpop.f32.mrb[0].mxu0
        %v812 = vadd.f32 0.0, %v811
        %v813 = vpop.f32.mrb[0].mxu0
        %v814 = vpop.f32.mrb[0].mxu0
        %v815 = vadd.f32 0.0, %v814
        %v816 = vpop.f32.mrb[0].mxu0
        %817 = vmatprep.mubr.bf16.mxu0 0
        %818 = vmatmul.mubr.bf16.gmra.mrb[0].mxu0 %v704
        %v819 = vpop.f32.mrb[0].mxu0
        %v820 = vadd.f32 0.0, %v819
        %v821 = vpop.f32.mrb[0].mxu0
        %v822 = vpop.f32.mrb[0].mxu0
        %v823 = vadd.f32 0.0, %v822
        %v824 = vpop.f32.mrb[0].mxu0
        %825 = vmatprep.mubr.bf16.mxu0 0
        %826 = vmatmul.mubr.bf16.gmra.mrb[0].mxu0 %v705
        %v827 = vpop.f32.mrb[0].mxu0
        %v828 = vadd.f32 0.0, %v827
        %v829 = vpop.f32.mrb[0].mxu0
        %v830 = vpop.f32.mrb[0].mxu0
        %v831 = vadd.f32 0.0, %v830
        %v832 = vpop.f32.mrb[0].mxu0
        %833 = vmatprep.mubr.bf16.mxu0 0
        %834 = vmatmul.mubr.bf16.gmra.mrb[0].mxu0 %v706
        %v835 = vpop.f32.mrb[0].mxu0
        %v836 = vadd.f32 0.0, %v835
        %v837 = vpop.f32.mrb[0].mxu0
        %v838 = vpop.f32.mrb[0].mxu0
        %v839 = vadd.f32 0.0, %v838
        %v840 = vpop.f32.mrb[0].mxu0
        %841 = vmatprep.mubr.bf16.mxu0 0
        %842 = vmatmul.mubr.bf16.gmra.mrb[0].mxu0 %v707
        %v843 = vpop.f32.mrb[0].mxu0
        %v844 = vadd.f32 0.0, %v843
        %v845 = vpop.f32.mrb[0].mxu0
        %v846 = vpop.f32.mrb[0].mxu0
        %v847 = vadd.f32 0.0, %v846
        %v848 = vpop.f32.mrb[0].mxu0
        %849 = vmatprep.mubr.bf16.mxu0 0
        %850 = vmatmul.mubr.bf16.gmra.mrb[0].mxu0 %v708
        %v851 = vpop.f32.mrb[0].mxu0
        %v852 = vadd.f32 0.0, %v851
        %v853 = vpop.f32.mrb[0].mxu0
        %v854 = vpop.f32.mrb[0].mxu0
        %v855 = vadd.f32 0.0, %v854
        %v856 = vpop.f32.mrb[0].mxu0
        %857 = vmatprep.mubr.bf16.mxu0 0
        %858 = vmatmul.mubr.bf16.gmra.mrb[0].mxu0 %v709
        %v859 = vpop.f32.mrb[0].mxu0
        %v860 = vadd.f32 0.0, %v859
        %v861 = vpop.f32.mrb[0].mxu0
        %v862 = vpop.f32.mrb[0].mxu0
        %v863 = vadd.f32 0.0, %v862
        %v864 = vpop.f32.mrb[0].mxu0
        %865 = vmatprep.mubr.bf16.mxu0 0
        %866 = vmatmul.mubr.bf16.gmra.mrb[0].mxu0 %v710
        %v867 = vpop.f32.mrb[0].mxu0
        %v868 = vadd.f32 0.0, %v867
        %v869 = vpop.f32.mrb[0].mxu0
        %v870 = vpop.f32.mrb[0].mxu0
        %v871 = vadd.f32 0.0, %v870
        %v872 = vpop.f32.mrb[0].mxu0
        %873 = vmatprep.mubr.bf16.mxu0 0
        %874 = vmatmul.mubr.bf16.gmra.mrb[0].mxu0 %v711
        %v875 = vpop.f32.mrb[0].mxu0
        %v876 = vadd.f32 0.0, %v875
        %v877 = vpop.f32.mrb[0].mxu0
        %v878 = vpop.f32.mrb[0].mxu0
        %v879 = vadd.f32 0.0, %v878
        %v880 = vpop.f32.mrb[0].mxu0
        %881 = vmatprep.mubr.bf16.mxu0 0
        %882 = vmatmul.mubr.bf16.gmra.mrb[0].mxu0 %v712
        %v883 = vpop.f32.mrb[0].mxu0
        %v884 = vadd.f32 0.0, %v883
        %v885 = vpop.f32.mrb[0].mxu0
        %v886 = vpop.f32.mrb[0].mxu0
        %v887 = vadd.f32 0.0, %v886
        %v888 = vpop.f32.mrb[0].mxu0
        %889 = vmatprep.mubr.bf16.mxu0 0
        %890 = vmatmul.mubr.bf16.gmra.mrb[0].mxu0 %v713
        %v891 = vpop.f32.mrb[0].mxu0
        %v892 = vadd.f32 0.0, %v891
        %v893 = vpop.f32.mrb[0].mxu0
        %v894 = vpop.f32.mrb[0].mxu0
        %v895 = vadd.f32 0.0, %v894
        %v896 = vpop.f32.mrb[0].mxu0
        %897 = vmatprep.mubr.bf16.mxu0 0
        %898 = vmatmul.mubr.bf16.gmra.mrb[0].mxu0 %v714
        %v899 = vpop.f32.mrb[0].mxu0
        %v900 = vadd.f32 0.0, %v899
        %v901 = vpop.f32.mrb[0].mxu0
        %v902 = vpop.f32.mrb[0].mxu0
        %v903 = vadd.f32 0.0, %v902
        %v904 = vpop.f32.mrb[0].mxu0
        %905 = vmatprep.mubr.bf16.mxu0 0
        %906 = vmatmul.mubr.bf16.gmra.mrb[0].mxu0 %v715
        %v907 = vpop.f32.mrb[0].mxu0
        %v908 = vadd.f32 0.0, %v907
        %v909 = vpop.f32.mrb[0].mxu0
        %v910 = vpop.f32.mrb[0].mxu0
        %v911 = vpop.f32.mrb[0].mxu0
        %912 = vdwg.mxu0
        %s913 = scalar_lea.vmem %s583, 100 [#allocation2]
        %v914 = vld [vmem:[%s913] sm:$0xf]
        %v915 = vld [vmem:[%s913 + $0x4] sm:$0xf]
        %v916 = vld [vmem:[%s913 + $0x8] sm:$0xf]
        %v917 = vld [vmem:[%s913 + $0xc] sm:$0xf]
        %v918 = vld [vmem:[%s913 + $0x10] sm:$0xf]
        %v919 = vld [vmem:[%s913 + $0x14] sm:$0xf]
        %v920 = vld [vmem:[%s913 + $0x18] sm:$0xf]
        %v921 = vld [vmem:[%s913 + $0x1c] sm:$0xf]
        %v922 = vld [vmem:[%s913 + $0x20] sm:$0xf]
        %v923 = vld [vmem:[%s913 + $0x24] sm:$0xf]
        %v924 = vld [vmem:[%s913 + $0x28] sm:$0xf]
        %v925 = vld [vmem:[%s913 + $0x2c] sm:$0xf]
        %v926 = vld [vmem:[%s913 + $0x30] sm:$0xf]
        %v927 = vld [vmem:[%s913 + $0x34] sm:$0xf]
        %v928 = vld [vmem:[%s913 + $0x38] sm:$0xf]
        %v929 = vld [vmem:[%s913 + $0x3c] sm:$0xf]
        %v930 = vld [vmem:[%s913 + $0x40] sm:$0xf]
        %v931 = vld [vmem:[%s913 + $0x44] sm:$0xf]
        %v932 = vld [vmem:[%s913 + $0x48] sm:$0xf]
        %v933 = vld [vmem:[%s913 + $0x4c] sm:$0xf]
        %v934 = vld [vmem:[%s913 + $0x50] sm:$0xf]
        %v935 = vld [vmem:[%s913 + $0x54] sm:$0xf]
        %v936 = vld [vmem:[%s913 + $0x58] sm:$0xf]
        %v937 = vld [vmem:[%s913 + $0x5c] sm:$0xf]
        %v938 = vld [vmem:[%s913 + $0x60] sm:$0xf]
        %v964 = vunpack.c.l.b16 %v914
        %v965 = vunpack.c.l.b16 %v915
        %v966 = vunpack.c.l.b16 %v916
        %v967 = vunpack.c.l.b16 %v917
        %v968 = vunpack.c.l.b16 %v918
        %v969 = vunpack.c.l.b16 %v919
        %v970 = vunpack.c.l.b16 %v920
        %v971 = vunpack.c.l.b16 %v921
        %v972 = vunpack.c.l.b16 %v922
        %v973 = vunpack.c.l.b16 %v923
        %v974 = vunpack.c.l.b16 %v924
        %v975 = vunpack.c.l.b16 %v925
        %v976 = vunpack.c.l.b16 %v926
        %v977 = vunpack.c.l.b16 %v927
        %v978 = vunpack.c.l.b16 %v928
        %v979 = vunpack.c.l.b16 %v929
        %v980 = vunpack.c.l.b16 %v930
        %v981 = vunpack.c.l.b16 %v931
        %v982 = vunpack.c.l.b16 %v932
        %v983 = vunpack.c.l.b16 %v933
        %v984 = vunpack.c.l.b16 %v934
        %v985 = vunpack.c.l.b16 %v935
        %v986 = vunpack.c.l.b16 %v936
        %v987 = vunpack.c.l.b16 %v937
        %v988 = vunpack.c.l.b16 %v938
        %v989 = vpack.c.b16 %v965, %v964
        %v990 = vpack.c.b16 %v967, %v966
        %v991 = vpack.c.b16 %v969, %v968
        %v992 = vpack.c.b16 %v971, %v970
        %v993 = vpack.c.b16 %v973, %v972
        %v994 = vpack.c.b16 %v975, %v974
        %v995 = vpack.c.b16 %v977, %v976
        %v996 = vpack.c.b16 %v979, %v978
        %v997 = vpack.c.b16 %v981, %v980
        %v998 = vpack.c.b16 %v983, %v982
        %v999 = vpack.c.b16 %v985, %v984
        %v1000 = vpack.c.b16 %v987, %v986
        %v1001 = vpack.c.b16 %v988, %v988
        %1015 = vmatprep.subr.bf16.mxu0 0
        %1016 = vmatpush1.bf16.msra.mxu0 %v761
        %1017 = vmatprep.subr.bf16.mxu0 0
        %1018 = vmatpush1.bf16.msra.mxu0 %v762
        %1019 = vmatprep.subr.bf16.mxu0 0
        %1020 = vmatpush1.bf16.msra.mxu0 %v763
        %1021 = vmatprep.subr.bf16.mxu0 0
        %1022 = vmatpush1.bf16.msra.mxu0 %v764
        %1023 = vmatprep.subr.bf16.mxu0 0
        %1024 = vmatpush1.bf16.msra.mxu0 %v765
        %1025 = vmatprep.subr.bf16.mxu0 0
        %1026 = vmatpush1.bf16.msra.mxu0 %v766
        %1027 = vmatprep.subr.bf16.mxu0 0
        %1028 = vmatpush1.bf16.msra.mxu0 %v767
        %1029 = vmatprep.subr.bf16.mxu0 0
        %1030 = vmatpush1.bf16.msra.mxu0 %v768
        %1031 = vmatprep.subr.bf16.mxu0 0
        %1032 = vmatpush1.bf16.msra.mxu0 0
        %1033 = vmatprep.subr.bf16.mxu0 0
        %1034 = vmatpush1.bf16.msra.mxu0 0
        %1035 = vmatprep.subr.bf16.mxu0 0
        %1036 = vmatpush1.bf16.msra.mxu0 0
        %1037 = vmatprep.subr.bf16.mxu0 0
        %1038 = vmatpush1.bf16.msra.mxu0 0
        %1039 = vmatprep.subr.bf16.mxu0 0
        %1040 = vmatpush1.bf16.msra.mxu0 0
        %1041 = vmatprep.subr.bf16.mxu0 0
        %1042 = vmatpush1.bf16.msra.mxu0 0
        %1043 = vmatprep.subr.bf16.mxu0 0
        %1044 = vmatpush1.bf16.msra.mxu0 0
        %1045 = vmatprep.subr.bf16.mxu0 0
        %1046 = vmatpush1.bf16.msra.mxu0 0
        %1047 = vmatprep.mubr.bf16.mxu0 0
        %1048 = vmatmul.mubr.bf16.gmra.mrb[0].mxu0 %v989
        %v1049 = vpop.f32.mrb[0].mxu0
        %v1050 = vadd.f32 0.0, %v1049
        %v1051 = vpop.f32.mrb[0].mxu0
        %v1052 = vpop.f32.mrb[0].mxu0
        %v1053 = vadd.f32 0.0, %v1052
        %v1054 = vpop.f32.mrb[0].mxu0
        %1055 = vmatprep.mubr.bf16.mxu0 0
        %1056 = vmatmul.mubr.bf16.gmra.mrb[0].mxu0 %v990
        %v1057 = vpop.f32.mrb[0].mxu0
        %v1058 = vadd.f32 0.0, %v1057
        %v1059 = vpop.f32.mrb[0].mxu0
        %v1060 = vpop.f32.mrb[0].mxu0
        %v1061 = vadd.f32 0.0, %v1060
        %v1062 = vpop.f32.mrb[0].mxu0
        %1063 = vmatprep.mubr.bf16.mxu0 0
        %1064 = vmatmul.mubr.bf16.gmra.mrb[0].mxu0 %v991
        %v1065 = vpop.f32.mrb[0].mxu0
        %v1066 = vadd.f32 0.0, %v1065
        %v1067 = vpop.f32.mrb[0].mxu0
        %v1068 = vpop.f32.mrb[0].mxu0
        %v1069 = vadd.f32 0.0, %v1068
        %v1070 = vpop.f32.mrb[0].mxu0
        %1071 = vmatprep.mubr.bf16.mxu0 0
        %1072 = vmatmul.mubr.bf16.gmra.mrb[0].mxu0 %v992
        %v1073 = vpop.f32.mrb[0].mxu0
        %v1074 = vadd.f32 0.0, %v1073
        %v1075 = vpop.f32.mrb[0].mxu0
        %v1076 = vpop.f32.mrb[0].mxu0
        %v1077 = vadd.f32 0.0, %v1076
        %v1078 = vpop.f32.mrb[0].mxu0
        %1079 = vmatprep.mubr.bf16.mxu0 0
        %1080 = vmatmul.mubr.bf16.gmra.mrb[0].mxu0 %v993
        %v1081 = vpop.f32.mrb[0].mxu0
        %v1082 = vadd.f32 0.0, %v1081
        %v1083 = vpop.f32.mrb[0].mxu0
        %v1084 = vpop.f32.mrb[0].mxu0
        %v1085 = vadd.f32 0.0, %v1084
        %v1086 = vpop.f32.mrb[0].mxu0
        %1087 = vmatprep.mubr.bf16.mxu0 0
        %1088 = vmatmul.mubr.bf16.gmra.mrb[0].mxu0 %v994
        %v1089 = vpop.f32.mrb[0].mxu0
        %v1090 = vadd.f32 0.0, %v1089
        %v1091 = vpop.f32.mrb[0].mxu0
        %v1092 = vpop.f32.mrb[0].mxu0
        %v1093 = vadd.f32 0.0, %v1092
        %v1094 = vpop.f32.mrb[0].mxu0
        %1095 = vmatprep.mubr.bf16.mxu0 0
        %1096 = vmatmul.mubr.bf16.gmra.mrb[0].mxu0 %v995
        %v1097 = vpop.f32.mrb[0].mxu0
        %v1098 = vadd.f32 0.0, %v1097
        %v1099 = vpop.f32.mrb[0].mxu0
        %v1100 = vpop.f32.mrb[0].mxu0
        %v1101 = vadd.f32 0.0, %v1100
        %v1102 = vpop.f32.mrb[0].mxu0
        %1103 = vmatprep.mubr.bf16.mxu0 0
        %1104 = vmatmul.mubr.bf16.gmra.mrb[0].mxu0 %v996
        %v1105 = vpop.f32.mrb[0].mxu0
        %v1106 = vadd.f32 0.0, %v1105
        %v1107 = vpop.f32.mrb[0].mxu0
        %v1108 = vpop.f32.mrb[0].mxu0
        %v1109 = vadd.f32 0.0, %v1108
        %v1110 = vpop.f32.mrb[0].mxu0
        %1111 = vmatprep.mubr.bf16.mxu0 0
        %1112 = vmatmul.mubr.bf16.gmra.mrb[0].mxu0 %v997
        %v1113 = vpop.f32.mrb[0].mxu0
        %v1114 = vadd.f32 0.0, %v1113
        %v1115 = vpop.f32.mrb[0].mxu0
        %v1116 = vpop.f32.mrb[0].mxu0
        %v1117 = vadd.f32 0.0, %v1116
        %v1118 = vpop.f32.mrb[0].mxu0
        %1119 = vmatprep.mubr.bf16.mxu0 0
        %1120 = vmatmul.mubr.bf16.gmra.mrb[0].mxu0 %v998
        %v1121 = vpop.f32.mrb[0].mxu0
        %v1122 = vadd.f32 0.0, %v1121
        %v1123 = vpop.f32.mrb[0].mxu0
        %v1124 = vpop.f32.mrb[0].mxu0
        %v1125 = vadd.f32 0.0, %v1124
        %v1126 = vpop.f32.mrb[0].mxu0
        %1127 = vmatprep.mubr.bf16.mxu0 0
        %1128 = vmatmul.mubr.bf16.gmra.mrb[0].mxu0 %v999
        %v1129 = vpop.f32.mrb[0].mxu0
        %v1130 = vadd.f32 0.0, %v1129
        %v1131 = vpop.f32.mrb[0].mxu0
        %v1132 = vpop.f32.mrb[0].mxu0
        %v1133 = vadd.f32 0.0, %v1132
        %v1134 = vpop.f32.mrb[0].mxu0
        %1135 = vmatprep.mubr.bf16.mxu0 0
        %1136 = vmatmul.mubr.bf16.gmra.mrb[0].mxu0 %v1000
        %v1137 = vpop.f32.mrb[0].mxu0
        %v1138 = vadd.f32 0.0, %v1137
        %v1139 = vpop.f32.mrb[0].mxu0
        %v1140 = vpop.f32.mrb[0].mxu0
        %v1141 = vadd.f32 0.0, %v1140
        %v1142 = vpop.f32.mrb[0].mxu0
        %1143 = vmatprep.mubr.bf16.mxu0 0
        %1144 = vmatmul.mubr.bf16.gmra.mrb[0].mxu0 %v1001
        %v1145 = vpop.f32.mrb[0].mxu0
        %v1146 = vadd.f32 0.0, %v1145
        %v1147 = vpop.f32.mrb[0].mxu0
        %v1148 = vpop.f32.mrb[0].mxu0
        %v1149 = vpop.f32.mrb[0].mxu0
        %1150 = vdwg.mxu0
        %v1151 = vmax.f32 %v812, %v1050
        %v1152 = vmax.f32 %v815, %v1053
        %v1153 = vmax.f32 %v820, %v1058
        %v1154 = vmax.f32 %v823, %v1061
        %v1155 = vmax.f32 %v828, %v1066
        %v1156 = vmax.f32 %v831, %v1069
        %v1157 = vmax.f32 %v836, %v1074
        %v1158 = vmax.f32 %v839, %v1077
        %v1159 = vmax.f32 %v844, %v1082
        %v1160 = vmax.f32 %v847, %v1085
        %v1161 = vmax.f32 %v852, %v1090
        %v1162 = vmax.f32 %v855, %v1093
        %v1163 = vmax.f32 %v860, %v1098
        %v1164 = vmax.f32 %v863, %v1101
        %v1165 = vmax.f32 %v868, %v1106
        %v1166 = vmax.f32 %v871, %v1109
        %v1167 = vmax.f32 %v876, %v1114
        %v1168 = vmax.f32 %v879, %v1117
        %v1169 = vmax.f32 %v884, %v1122
        %v1170 = vmax.f32 %v887, %v1125
        %v1171 = vmax.f32 %v892, %v1130
        %v1172 = vmax.f32 %v895, %v1133
        %v1173 = vmax.f32 %v900, %v1138
        %v1174 = vmax.f32 %v903, %v1141
        %v1175 = vmax.f32 %v908, %v1146
        %s1176 = scalar_lea.vmem %s583, 200 [#allocation2]
        %v1177 = vld [vmem:[%s1176] sm:$0xf]
        %v1178 = vld [vmem:[%s1176 + $0x4] sm:$0xf]
        %v1179 = vld [vmem:[%s1176 + $0x8] sm:$0xf]
        %v1180 = vld [vmem:[%s1176 + $0xc] sm:$0xf]
        %v1181 = vld [vmem:[%s1176 + $0x10] sm:$0xf]
        %v1182 = vld [vmem:[%s1176 + $0x14] sm:$0xf]
        %v1183 = vld [vmem:[%s1176 + $0x18] sm:$0xf]
        %v1184 = vld [vmem:[%s1176 + $0x1c] sm:$0xf]
        %v1185 = vld [vmem:[%s1176 + $0x20] sm:$0xf]
        %v1186 = vld [vmem:[%s1176 + $0x24] sm:$0xf]
        %v1187 = vld [vmem:[%s1176 + $0x28] sm:$0xf]
        %v1188 = vld [vmem:[%s1176 + $0x2c] sm:$0xf]
        %v1189 = vld [vmem:[%s1176 + $0x30] sm:$0xf]
        %v1190 = vld [vmem:[%s1176 + $0x34] sm:$0xf]
        %v1191 = vld [vmem:[%s1176 + $0x38] sm:$0xf]
        %v1192 = vld [vmem:[%s1176 + $0x3c] sm:$0xf]
        %v1193 = vld [vmem:[%s1176 + $0x40] sm:$0xf]
        %v1194 = vld [vmem:[%s1176 + $0x44] sm:$0xf]
        %v1195 = vld [vmem:[%s1176 + $0x48] sm:$0xf]
        %v1196 = vld [vmem:[%s1176 + $0x4c] sm:$0xf]
        %v1197 = vld [vmem:[%s1176 + $0x50] sm:$0xf]
        %v1198 = vld [vmem:[%s1176 + $0x54] sm:$0xf]
        %v1199 = vld [vmem:[%s1176 + $0x58] sm:$0xf]
        %v1200 = vld [vmem:[%s1176 + $0x5c] sm:$0xf]
        %v1201 = vld [vmem:[%s1176 + $0x60] sm:$0xf]
        %v1227 = vunpack.c.l.b16 %v1177
        %v1228 = vunpack.c.l.b16 %v1178
        %v1229 = vunpack.c.l.b16 %v1179
        %v1230 = vunpack.c.l.b16 %v1180
        %v1231 = vunpack.c.l.b16 %v1181
        %v1232 = vunpack.c.l.b16 %v1182
        %v1233 = vunpack.c.l.b16 %v1183
        %v1234 = vunpack.c.l.b16 %v1184
        %v1235 = vunpack.c.l.b16 %v1185
        %v1236 = vunpack.c.l.b16 %v1186
        %v1237 = vunpack.c.l.b16 %v1187
        %v1238 = vunpack.c.l.b16 %v1188
        %v1239 = vunpack.c.l.b16 %v1189
        %v1240 = vunpack.c.l.b16 %v1190
        %v1241 = vunpack.c.l.b16 %v1191
        %v1242 = vunpack.c.l.b16 %v1192
        %v1243 = vunpack.c.l.b16 %v1193
        %v1244 = vunpack.c.l.b16 %v1194
        %v1245 = vunpack.c.l.b16 %v1195
        %v1246 = vunpack.c.l.b16 %v1196
        %v1247 = vunpack.c.l.b16 %v1197
        %v1248 = vunpack.c.l.b16 %v1198
        %v1249 = vunpack.c.l.b16 %v1199
        %v1250 = vunpack.c.l.b16 %v1200
        %v1251 = vunpack.c.l.b16 %v1201
        %v1252 = vpack.c.b16 %v1228, %v1227
        %v1253 = vpack.c.b16 %v1230, %v1229
        %v1254 = vpack.c.b16 %v1232, %v1231
        %v1255 = vpack.c.b16 %v1234, %v1233
        %v1256 = vpack.c.b16 %v1236, %v1235
        %v1257 = vpack.c.b16 %v1238, %v1237
        %v1258 = vpack.c.b16 %v1240, %v1239
        %v1259 = vpack.c.b16 %v1242, %v1241
        %v1260 = vpack.c.b16 %v1244, %v1243
        %v1261 = vpack.c.b16 %v1246, %v1245
        %v1262 = vpack.c.b16 %v1248, %v1247
        %v1263 = vpack.c.b16 %v1250, %v1249
        %v1264 = vpack.c.b16 %v1251, %v1251
        %1278 = vmatprep.subr.bf16.mxu0 0
        %1279 = vmatpush1.bf16.msra.mxu0 %v761
        %1280 = vmatprep.subr.bf16.mxu0 0
        %1281 = vmatpush1.bf16.msra.mxu0 %v762
        %1282 = vmatprep.subr.bf16.mxu0 0
        %1283 = vmatpush1.bf16.msra.mxu0 %v763
        %1284 = vmatprep.subr.bf16.mxu0 0
        %1285 = vmatpush1.bf16.msra.mxu0 %v764
        %1286 = vmatprep.subr.bf16.mxu0 0
        %1287 = vmatpush1.bf16.msra.mxu0 %v765
        %1288 = vmatprep.subr.bf16.mxu0 0
        %1289 = vmatpush1.bf16.msra.mxu0 %v766
        %1290 = vmatprep.subr.bf16.mxu0 0
        %1291 = vmatpush1.bf16.msra.mxu0 %v767
        %1292 = vmatprep.subr.bf16.mxu0 0
        %1293 = vmatpush1.bf16.msra.mxu0 %v768
        %1294 = vmatprep.subr.bf16.mxu0 0
        %1295 = vmatpush1.bf16.msra.mxu0 0
        %1296 = vmatprep.subr.bf16.mxu0 0
        %1297 = vmatpush1.bf16.msra.mxu0 0
        %1298 = vmatprep.subr.bf16.mxu0 0
        %1299 = vmatpush1.bf16.msra.mxu0 0
        %1300 = vmatprep.subr.bf16.mxu0 0
        %1301 = vmatpush1.bf16.msra.mxu0 0
        %1302 = vmatprep.subr.bf16.mxu0 0
        %1303 = vmatpush1.bf16.msra.mxu0 0
        %1304 = vmatprep.subr.bf16.mxu0 0
        %1305 = vmatpush1.bf16.msra.mxu0 0
        %1306 = vmatprep.subr.bf16.mxu0 0
        %1307 = vmatpush1.bf16.msra.mxu0 0
        %1308 = vmatprep.subr.bf16.mxu0 0
        %1309 = vmatpush1.bf16.msra.mxu0 0
        %1310 = vmatprep.mubr.bf16.mxu0 0
        %1311 = vmatmul.mubr.bf16.gmra.mrb[0].mxu0 %v1252
        %v1312 = vpop.f32.mrb[0].mxu0
        %v1313 = vadd.f32 0.0, %v1312
        %v1314 = vpop.f32.mrb[0].mxu0
        %v1315 = vpop.f32.mrb[0].mxu0
        %v1316 = vadd.f32 0.0, %v1315
        %v1317 = vpop.f32.mrb[0].mxu0
        %1318 = vmatprep.mubr.bf16.mxu0 0
        %1319 = vmatmul.mubr.bf16.gmra.mrb[0].mxu0 %v1253
        %v1320 = vpop.f32.mrb[0].mxu0
        %v1321 = vadd.f32 0.0, %v1320
        %v1322 = vpop.f32.mrb[0].mxu0
        %v1323 = vpop.f32.mrb[0].mxu0
        %v1324 = vadd.f32 0.0, %v1323
        %v1325 = vpop.f32.mrb[0].mxu0
        %1326 = vmatprep.mubr.bf16.mxu0 0
        %1327 = vmatmul.mubr.bf16.gmra.mrb[0].mxu0 %v1254
        %v1328 = vpop.f32.mrb[0].mxu0
        %v1329 = vadd.f32 0.0, %v1328
        %v1330 = vpop.f32.mrb[0].mxu0
        %v1331 = vpop.f32.mrb[0].mxu0
        %v1332 = vadd.f32 0.0, %v1331
        %v1333 = vpop.f32.mrb[0].mxu0
        %1334 = vmatprep.mubr.bf16.mxu0 0
        %1335 = vmatmul.mubr.bf16.gmra.mrb[0].mxu0 %v1255
        %v1336 = vpop.f32.mrb[0].mxu0
        %v1337 = vadd.f32 0.0, %v1336
        %v1338 = vpop.f32.mrb[0].mxu0
        %v1339 = vpop.f32.mrb[0].mxu0
        %v1340 = vadd.f32 0.0, %v1339
        %v1341 = vpop.f32.mrb[0].mxu0
        %1342 = vmatprep.mubr.bf16.mxu0 0
        %1343 = vmatmul.mubr.bf16.gmra.mrb[0].mxu0 %v1256
        %v1344 = vpop.f32.mrb[0].mxu0
        %v1345 = vadd.f32 0.0, %v1344
        %v1346 = vpop.f32.mrb[0].mxu0
        %v1347 = vpop.f32.mrb[0].mxu0
        %v1348 = vadd.f32 0.0, %v1347
        %v1349 = vpop.f32.mrb[0].mxu0
        %1350 = vmatprep.mubr.bf16.mxu0 0
        %1351 = vmatmul.mubr.bf16.gmra.mrb[0].mxu0 %v1257
        %v1352 = vpop.f32.mrb[0].mxu0
        %v1353 = vadd.f32 0.0, %v1352
        %v1354 = vpop.f32.mrb[0].mxu0
        %v1355 = vpop.f32.mrb[0].mxu0
        %v1356 = vadd.f32 0.0, %v1355
        %v1357 = vpop.f32.mrb[0].mxu0
        %1358 = vmatprep.mubr.bf16.mxu0 0
        %1359 = vmatmul.mubr.bf16.gmra.mrb[0].mxu0 %v1258
        %v1360 = vpop.f32.mrb[0].mxu0
        %v1361 = vadd.f32 0.0, %v1360
        %v1362 = vpop.f32.mrb[0].mxu0
        %v1363 = vpop.f32.mrb[0].mxu0
        %v1364 = vadd.f32 0.0, %v1363
        %v1365 = vpop.f32.mrb[0].mxu0
        %1366 = vmatprep.mubr.bf16.mxu0 0
        %1367 = vmatmul.mubr.bf16.gmra.mrb[0].mxu0 %v1259
        %v1368 = vpop.f32.mrb[0].mxu0
        %v1369 = vadd.f32 0.0, %v1368
        %v1370 = vpop.f32.mrb[0].mxu0
        %v1371 = vpop.f32.mrb[0].mxu0
        %v1372 = vadd.f32 0.0, %v1371
        %v1373 = vpop.f32.mrb[0].mxu0
        %1374 = vmatprep.mubr.bf16.mxu0 0
        %1375 = vmatmul.mubr.bf16.gmra.mrb[0].mxu0 %v1260
        %v1376 = vpop.f32.mrb[0].mxu0
        %v1377 = vadd.f32 0.0, %v1376
        %v1378 = vpop.f32.mrb[0].mxu0
        %v1379 = vpop.f32.mrb[0].mxu0
        %v1380 = vadd.f32 0.0, %v1379
        %v1381 = vpop.f32.mrb[0].mxu0
        %1382 = vmatprep.mubr.bf16.mxu0 0
        %1383 = vmatmul.mubr.bf16.gmra.mrb[0].mxu0 %v1261
        %v1384 = vpop.f32.mrb[0].mxu0
        %v1385 = vadd.f32 0.0, %v1384
        %v1386 = vpop.f32.mrb[0].mxu0
        %v1387 = vpop.f32.mrb[0].mxu0
        %v1388 = vadd.f32 0.0, %v1387
        %v1389 = vpop.f32.mrb[0].mxu0
        %1390 = vmatprep.mubr.bf16.mxu0 0
        %1391 = vmatmul.mubr.bf16.gmra.mrb[0].mxu0 %v1262
        %v1392 = vpop.f32.mrb[0].mxu0
        %v1393 = vadd.f32 0.0, %v1392
        %v1394 = vpop.f32.mrb[0].mxu0
        %v1395 = vpop.f32.mrb[0].mxu0
        %v1396 = vadd.f32 0.0, %v1395
        %v1397 = vpop.f32.mrb[0].mxu0
        %1398 = vmatprep.mubr.bf16.mxu0 0
        %1399 = vmatmul.mubr.bf16.gmra.mrb[0].mxu0 %v1263
        %v1400 = vpop.f32.mrb[0].mxu0
        %v1401 = vadd.f32 0.0, %v1400
        %v1402 = vpop.f32.mrb[0].mxu0
        %v1403 = vpop.f32.mrb[0].mxu0
        %v1404 = vadd.f32 0.0, %v1403
        %v1405 = vpop.f32.mrb[0].mxu0
        %1406 = vmatprep.mubr.bf16.mxu0 0
        %1407 = vmatmul.mubr.bf16.gmra.mrb[0].mxu0 %v1264
        %v1408 = vpop.f32.mrb[0].mxu0
        %v1409 = vadd.f32 0.0, %v1408
        %v1410 = vpop.f32.mrb[0].mxu0
        %v1411 = vpop.f32.mrb[0].mxu0
        %v1412 = vpop.f32.mrb[0].mxu0
        %1413 = vdwg.mxu0
        %v1414 = vmax.f32 %v1151, %v1313
        %v1415 = vmax.f32 %v1152, %v1316
        %v1416 = vmax.f32 %v1153, %v1321
        %v1417 = vmax.f32 %v1154, %v1324
        %v1418 = vmax.f32 %v1155, %v1329
        %v1419 = vmax.f32 %v1156, %v1332
        %v1420 = vmax.f32 %v1157, %v1337
        %v1421 = vmax.f32 %v1158, %v1340
        %v1422 = vmax.f32 %v1159, %v1345
        %v1423 = vmax.f32 %v1160, %v1348
        %v1424 = vmax.f32 %v1161, %v1353
        %v1425 = vmax.f32 %v1162, %v1356
        %v1426 = vmax.f32 %v1163, %v1361
        %v1427 = vmax.f32 %v1164, %v1364
        %v1428 = vmax.f32 %v1165, %v1369
        %v1429 = vmax.f32 %v1166, %v1372
        %v1430 = vmax.f32 %v1167, %v1377
        %v1431 = vmax.f32 %v1168, %v1380
        %v1432 = vmax.f32 %v1169, %v1385
        %v1433 = vmax.f32 %v1170, %v1388
        %v1434 = vmax.f32 %v1171, %v1393
        %v1435 = vmax.f32 %v1172, %v1396
        %v1436 = vmax.f32 %v1173, %v1401
        %v1437 = vmax.f32 %v1174, %v1404
        %v1438 = vmax.f32 %v1175, %v1409
        %s1439 = scalar_lea.vmem %s583, 300 [#allocation2]
        %v1440 = vld [vmem:[%s1439] sm:$0xf]
        %v1441 = vld [vmem:[%s1439 + $0x4] sm:$0xf]
        %v1442 = vld [vmem:[%s1439 + $0x8] sm:$0xf]
        %v1443 = vld [vmem:[%s1439 + $0xc] sm:$0xf]
        %v1444 = vld [vmem:[%s1439 + $0x10] sm:$0xf]
        %v1445 = vld [vmem:[%s1439 + $0x14] sm:$0xf]
        %v1446 = vld [vmem:[%s1439 + $0x18] sm:$0xf]
        %v1447 = vld [vmem:[%s1439 + $0x1c] sm:$0xf]
        %v1448 = vld [vmem:[%s1439 + $0x20] sm:$0xf]
        %v1449 = vld [vmem:[%s1439 + $0x24] sm:$0xf]
        %v1450 = vld [vmem:[%s1439 + $0x28] sm:$0xf]
        %v1451 = vld [vmem:[%s1439 + $0x2c] sm:$0xf]
        %v1452 = vld [vmem:[%s1439 + $0x30] sm:$0xf]
        %v1453 = vld [vmem:[%s1439 + $0x34] sm:$0xf]
        %v1454 = vld [vmem:[%s1439 + $0x38] sm:$0xf]
        %v1455 = vld [vmem:[%s1439 + $0x3c] sm:$0xf]
        %v1456 = vld [vmem:[%s1439 + $0x40] sm:$0xf]
        %v1457 = vld [vmem:[%s1439 + $0x44] sm:$0xf]
        %v1458 = vld [vmem:[%s1439 + $0x48] sm:$0xf]
        %v1459 = vld [vmem:[%s1439 + $0x4c] sm:$0xf]
        %v1460 = vld [vmem:[%s1439 + $0x50] sm:$0xf]
        %v1461 = vld [vmem:[%s1439 + $0x54] sm:$0xf]
        %v1462 = vld [vmem:[%s1439 + $0x58] sm:$0xf]
        %v1463 = vld [vmem:[%s1439 + $0x5c] sm:$0xf]
        %v1464 = vld [vmem:[%s1439 + $0x60] sm:$0xf]
        %v1490 = vunpack.c.l.b16 %v1440
        %v1491 = vunpack.c.l.b16 %v1441
        %v1492 = vunpack.c.l.b16 %v1442
        %v1493 = vunpack.c.l.b16 %v1443
        %v1494 = vunpack.c.l.b16 %v1444
        %v1495 = vunpack.c.l.b16 %v1445
        %v1496 = vunpack.c.l.b16 %v1446
        %v1497 = vunpack.c.l.b16 %v1447
        %v1498 = vunpack.c.l.b16 %v1448
        %v1499 = vunpack.c.l.b16 %v1449
        %v1500 = vunpack.c.l.b16 %v1450
        %v1501 = vunpack.c.l.b16 %v1451
        %v1502 = vunpack.c.l.b16 %v1452
        %v1503 = vunpack.c.l.b16 %v1453
        %v1504 = vunpack.c.l.b16 %v1454
        %v1505 = vunpack.c.l.b16 %v1455
        %v1506 = vunpack.c.l.b16 %v1456
        %v1507 = vunpack.c.l.b16 %v1457
        %v1508 = vunpack.c.l.b16 %v1458
        %v1509 = vunpack.c.l.b16 %v1459
        %v1510 = vunpack.c.l.b16 %v1460
        %v1511 = vunpack.c.l.b16 %v1461
        %v1512 = vunpack.c.l.b16 %v1462
        %v1513 = vunpack.c.l.b16 %v1463
        %v1514 = vunpack.c.l.b16 %v1464
        %v1515 = vpack.c.b16 %v1491, %v1490
        %v1516 = vpack.c.b16 %v1493, %v1492
        %v1517 = vpack.c.b16 %v1495, %v1494
        %v1518 = vpack.c.b16 %v1497, %v1496
        %v1519 = vpack.c.b16 %v1499, %v1498
        %v1520 = vpack.c.b16 %v1501, %v1500
        %v1521 = vpack.c.b16 %v1503, %v1502
        %v1522 = vpack.c.b16 %v1505, %v1504
        %v1523 = vpack.c.b16 %v1507, %v1506
        %v1524 = vpack.c.b16 %v1509, %v1508
        %v1525 = vpack.c.b16 %v1511, %v1510
        %v1526 = vpack.c.b16 %v1513, %v1512
        %v1527 = vpack.c.b16 %v1514, %v1514
        %1541 = vmatprep.subr.bf16.mxu0 0
        %1542 = vmatpush1.bf16.msra.mxu0 %v761
        %1543 = vmatprep.subr.bf16.mxu0 0
        %1544 = vmatpush1.bf16.msra.mxu0 %v762
        %1545 = vmatprep.subr.bf16.mxu0 0
        %1546 = vmatpush1.bf16.msra.mxu0 %v763
        %1547 = vmatprep.subr.bf16.mxu0 0
        %1548 = vmatpush1.bf16.msra.mxu0 %v764
        %1549 = vmatprep.subr.bf16.mxu0 0
        %1550 = vmatpush1.bf16.msra.mxu0 %v765
        %1551 = vmatprep.subr.bf16.mxu0 0
        %1552 = vmatpush1.bf16.msra.mxu0 %v766
        %1553 = vmatprep.subr.bf16.mxu0 0
        %1554 = vmatpush1.bf16.msra.mxu0 %v767
        %1555 = vmatprep.subr.bf16.mxu0 0
        %1556 = vmatpush1.bf16.msra.mxu0 %v768
        %1557 = vmatprep.subr.bf16.mxu0 0
        %1558 = vmatpush1.bf16.msra.mxu0 0
        %1559 = vmatprep.subr.bf16.mxu0 0
        %1560 = vmatpush1.bf16.msra.mxu0 0
        %1561 = vmatprep.subr.bf16.mxu0 0
        %1562 = vmatpush1.bf16.msra.mxu0 0
        %1563 = vmatprep.subr.bf16.mxu0 0
        %1564 = vmatpush1.bf16.msra.mxu0 0
        %1565 = vmatprep.subr.bf16.mxu0 0
        %1566 = vmatpush1.bf16.msra.mxu0 0
        %1567 = vmatprep.subr.bf16.mxu0 0
        %1568 = vmatpush1.bf16.msra.mxu0 0
        %1569 = vmatprep.subr.bf16.mxu0 0
        %1570 = vmatpush1.bf16.msra.mxu0 0
        %1571 = vmatprep.subr.bf16.mxu0 0
        %1572 = vmatpush1.bf16.msra.mxu0 0
        %1573 = vmatprep.mubr.bf16.mxu0 0
        %1574 = vmatmul.mubr.bf16.gmra.mrb[0].mxu0 %v1515
        %v1575 = vpop.f32.mrb[0].mxu0
        %v1576 = vadd.f32 0.0, %v1575
        %v1577 = vpop.f32.mrb[0].mxu0
        %v1578 = vpop.f32.mrb[0].mxu0
        %v1579 = vadd.f32 0.0, %v1578
        %v1580 = vpop.f32.mrb[0].mxu0
        %1581 = vmatprep.mubr.bf16.mxu0 0
        %1582 = vmatmul.mubr.bf16.gmra.mrb[0].mxu0 %v1516
        %v1583 = vpop.f32.mrb[0].mxu0
        %v1584 = vadd.f32 0.0, %v1583
        %v1585 = vpop.f32.mrb[0].mxu0
        %v1586 = vpop.f32.mrb[0].mxu0
        %v1587 = vadd.f32 0.0, %v1586
        %v1588 = vpop.f32.mrb[0].mxu0
        %1589 = vmatprep.mubr.bf16.mxu0 0
        %1590 = vmatmul.mubr.bf16.gmra.mrb[0].mxu0 %v1517
        %v1591 = vpop.f32.mrb[0].mxu0
        %v1592 = vadd.f32 0.0, %v1591
        %v1593 = vpop.f32.mrb[0].mxu0
        %v1594 = vpop.f32.mrb[0].mxu0
        %v1595 = vadd.f32 0.0, %v1594
        %v1596 = vpop.f32.mrb[0].mxu0
        %1597 = vmatprep.mubr.bf16.mxu0 0
        %1598 = vmatmul.mubr.bf16.gmra.mrb[0].mxu0 %v1518
        %v1599 = vpop.f32.mrb[0].mxu0
        %v1600 = vadd.f32 0.0, %v1599
        %v1601 = vpop.f32.mrb[0].mxu0
        %v1602 = vpop.f32.mrb[0].mxu0
        %v1603 = vadd.f32 0.0, %v1602
        %v1604 = vpop.f32.mrb[0].mxu0
        %1605 = vmatprep.mubr.bf16.mxu0 0
        %1606 = vmatmul.mubr.bf16.gmra.mrb[0].mxu0 %v1519
        %v1607 = vpop.f32.mrb[0].mxu0
        %v1608 = vadd.f32 0.0, %v1607
        %v1609 = vpop.f32.mrb[0].mxu0
        %v1610 = vpop.f32.mrb[0].mxu0
        %v1611 = vadd.f32 0.0, %v1610
        %v1612 = vpop.f32.mrb[0].mxu0
        %1613 = vmatprep.mubr.bf16.mxu0 0
        %1614 = vmatmul.mubr.bf16.gmra.mrb[0].mxu0 %v1520
        %v1615 = vpop.f32.mrb[0].mxu0
        %v1616 = vadd.f32 0.0, %v1615
        %v1617 = vpop.f32.mrb[0].mxu0
        %v1618 = vpop.f32.mrb[0].mxu0
        %v1619 = vadd.f32 0.0, %v1618
        %v1620 = vpop.f32.mrb[0].mxu0
        %1621 = vmatprep.mubr.bf16.mxu0 0
        %1622 = vmatmul.mubr.bf16.gmra.mrb[0].mxu0 %v1521
        %v1623 = vpop.f32.mrb[0].mxu0
        %v1624 = vadd.f32 0.0, %v1623
        %v1625 = vpop.f32.mrb[0].mxu0
        %v1626 = vpop.f32.mrb[0].mxu0
        %v1627 = vadd.f32 0.0, %v1626
        %v1628 = vpop.f32.mrb[0].mxu0
        %1629 = vmatprep.mubr.bf16.mxu0 0
        %1630 = vmatmul.mubr.bf16.gmra.mrb[0].mxu0 %v1522
        %v1631 = vpop.f32.mrb[0].mxu0
        %v1632 = vadd.f32 0.0, %v1631
        %v1633 = vpop.f32.mrb[0].mxu0
        %v1634 = vpop.f32.mrb[0].mxu0
        %v1635 = vadd.f32 0.0, %v1634
        %v1636 = vpop.f32.mrb[0].mxu0
        %1637 = vmatprep.mubr.bf16.mxu0 0
        %1638 = vmatmul.mubr.bf16.gmra.mrb[0].mxu0 %v1523
        %v1639 = vpop.f32.mrb[0].mxu0
        %v1640 = vadd.f32 0.0, %v1639
        %v1641 = vpop.f32.mrb[0].mxu0
        %v1642 = vpop.f32.mrb[0].mxu0
        %v1643 = vadd.f32 0.0, %v1642
        %v1644 = vpop.f32.mrb[0].mxu0
        %1645 = vmatprep.mubr.bf16.mxu0 0
        %1646 = vmatmul.mubr.bf16.gmra.mrb[0].mxu0 %v1524
        %v1647 = vpop.f32.mrb[0].mxu0
        %v1648 = vadd.f32 0.0, %v1647
        %v1649 = vpop.f32.mrb[0].mxu0
        %v1650 = vpop.f32.mrb[0].mxu0
        %v1651 = vadd.f32 0.0, %v1650
        %v1652 = vpop.f32.mrb[0].mxu0
        %1653 = vmatprep.mubr.bf16.mxu0 0
        %1654 = vmatmul.mubr.bf16.gmra.mrb[0].mxu0 %v1525
        %v1655 = vpop.f32.mrb[0].mxu0
        %v1656 = vadd.f32 0.0, %v1655
        %v1657 = vpop.f32.mrb[0].mxu0
        %v1658 = vpop.f32.mrb[0].mxu0
        %v1659 = vadd.f32 0.0, %v1658
        %v1660 = vpop.f32.mrb[0].mxu0
        %1661 = vmatprep.mubr.bf16.mxu0 0
        %1662 = vmatmul.mubr.bf16.gmra.mrb[0].mxu0 %v1526
        %v1663 = vpop.f32.mrb[0].mxu0
        %v1664 = vadd.f32 0.0, %v1663
        %v1665 = vpop.f32.mrb[0].mxu0
        %v1666 = vpop.f32.mrb[0].mxu0
        %v1667 = vadd.f32 0.0, %v1666
        %v1668 = vpop.f32.mrb[0].mxu0
        %1669 = vmatprep.mubr.bf16.mxu0 0
        %1670 = vmatmul.mubr.bf16.gmra.mrb[0].mxu0 %v1527
        %v1671 = vpop.f32.mrb[0].mxu0
        %v1672 = vadd.f32 0.0, %v1671
        %v1673 = vpop.f32.mrb[0].mxu0
        %v1674 = vpop.f32.mrb[0].mxu0
        %v1675 = vpop.f32.mrb[0].mxu0
        %1676 = vdwg.mxu0
        %v1677 = vmax.f32 %v1414, %v1576
        %v1678 = vmax.f32 %v1415, %v1579
        %v1679 = vmax.f32 %v1416, %v1584
        %v1680 = vmax.f32 %v1417, %v1587
        %v1681 = vmax.f32 %v1418, %v1592
        %v1682 = vmax.f32 %v1419, %v1595
        %v1683 = vmax.f32 %v1420, %v1600
        %v1684 = vmax.f32 %v1421, %v1603
        %v1685 = vmax.f32 %v1422, %v1608
        %v1686 = vmax.f32 %v1423, %v1611
        %v1687 = vmax.f32 %v1424, %v1616
        %v1688 = vmax.f32 %v1425, %v1619
        %v1689 = vmax.f32 %v1426, %v1624
        %v1690 = vmax.f32 %v1427, %v1627
        %v1691 = vmax.f32 %v1428, %v1632
        %v1692 = vmax.f32 %v1429, %v1635
        %v1693 = vmax.f32 %v1430, %v1640
        %v1694 = vmax.f32 %v1431, %v1643
        %v1695 = vmax.f32 %v1432, %v1648
        %v1696 = vmax.f32 %v1433, %v1651
        %v1697 = vmax.f32 %v1434, %v1656
        %v1698 = vmax.f32 %v1435, %v1659
        %v1699 = vmax.f32 %v1436, %v1664
        %v1700 = vmax.f32 %v1437, %v1667
        %v1701 = vmax.f32 %v1438, %v1672
        %v1702 = vld [vmem:[%s2] sm:$0x1]
        %v1704 = vlaneseq
        %v1705 = vshrl.u32 %v1704, 7
        %v1706 = vsub.s32 0, %v1705
        %v1707 = vrot.slane %v1702, %v1706
        %v1709 = vadd.f32 %v1677, %v1707
        %v1710 = vadd.f32 %v1678, %v1707
        %v1711 = vadd.f32 %v1679, %v1707
        %v1712 = vadd.f32 %v1680, %v1707
        %v1713 = vadd.f32 %v1681, %v1707
        %v1714 = vadd.f32 %v1682, %v1707
        %v1715 = vadd.f32 %v1683, %v1707
        %v1716 = vadd.f32 %v1684, %v1707
        %v1717 = vadd.f32 %v1685, %v1707
        %v1718 = vadd.f32 %v1686, %v1707
        %v1719 = vadd.f32 %v1687, %v1707
        %v1720 = vadd.f32 %v1688, %v1707
        %v1721 = vadd.f32 %v1689, %v1707
        %v1722 = vadd.f32 %v1690, %v1707
        %v1723 = vadd.f32 %v1691, %v1707
        %v1724 = vadd.f32 %v1692, %v1707
        %v1725 = vadd.f32 %v1693, %v1707
        %v1726 = vadd.f32 %v1694, %v1707
        %v1727 = vadd.f32 %v1695, %v1707
        %v1728 = vadd.f32 %v1696, %v1707
        %v1729 = vadd.f32 %v1697, %v1707
        %v1730 = vadd.f32 %v1698, %v1707
        %v1731 = vadd.f32 %v1699, %v1707
        %v1732 = vadd.f32 %v1700, %v1707
        %v1733 = vadd.f32 %v1701, %v1707
        %v1734 = vmax.f32 %v1709, 0.0
        %v1735 = vmax.f32 %v1710, 0.0
        %v1736 = vmax.f32 %v1711, 0.0
        %v1737 = vmax.f32 %v1712, 0.0
        %v1738 = vmax.f32 %v1713, 0.0
        %v1739 = vmax.f32 %v1714, 0.0
        %v1740 = vmax.f32 %v1715, 0.0
        %v1741 = vmax.f32 %v1716, 0.0
        %v1742 = vmax.f32 %v1717, 0.0
        %v1743 = vmax.f32 %v1718, 0.0
        %v1744 = vmax.f32 %v1719, 0.0
        %v1745 = vmax.f32 %v1720, 0.0
        %v1746 = vmax.f32 %v1721, 0.0
        %v1747 = vmax.f32 %v1722, 0.0
        %v1748 = vmax.f32 %v1723, 0.0
        %v1749 = vmax.f32 %v1724, 0.0
        %v1750 = vmax.f32 %v1725, 0.0
        %v1751 = vmax.f32 %v1726, 0.0
        %v1752 = vmax.f32 %v1727, 0.0
        %v1753 = vmax.f32 %v1728, 0.0
        %v1754 = vmax.f32 %v1729, 0.0
        %v1755 = vmax.f32 %v1730, 0.0
        %v1756 = vmax.f32 %v1731, 0.0
        %v1757 = vmax.f32 %v1732, 0.0
        %v1758 = vmax.f32 %v1733, 0.0
        %v1759 = vpack.c.bf16 %v1735, %v1734
        %v1760 = vpack.c.bf16 %v1737, %v1736
        %v1761 = vpack.c.bf16 %v1739, %v1738
        %v1762 = vpack.c.bf16 %v1741, %v1740
        %v1763 = vpack.c.bf16 %v1743, %v1742
        %v1764 = vpack.c.bf16 %v1745, %v1744
        %v1765 = vpack.c.bf16 %v1747, %v1746
        %v1766 = vpack.c.bf16 %v1749, %v1748
        %v1767 = vpack.c.bf16 %v1751, %v1750
        %v1768 = vpack.c.bf16 %v1753, %v1752
        %v1769 = vpack.c.bf16 %v1755, %v1754
        %v1770 = vpack.c.bf16 %v1757, %v1756
        %v1771 = vpack.c.bf16 %v1758, %v1758
        %v1785 = vunpack.c.l.b16 %v1759
        %v1786 = vunpack.c.h.b16 %v1759
        %v1787 = vunpack.c.l.b16 %v1760
        %v1788 = vunpack.c.h.b16 %v1760
        %v1789 = vunpack.c.l.b16 %v1761
        %v1790 = vunpack.c.h.b16 %v1761
        %v1791 = vunpack.c.l.b16 %v1762
        %v1792 = vunpack.c.h.b16 %v1762
        %v1793 = vunpack.c.l.b16 %v1763
        %v1794 = vunpack.c.h.b16 %v1763
        %v1795 = vunpack.c.l.b16 %v1764
        %v1796 = vunpack.c.h.b16 %v1764
        %v1797 = vunpack.c.l.b16 %v1765
        %v1798 = vunpack.c.h.b16 %v1765
        %v1799 = vunpack.c.l.b16 %v1766
        %v1800 = vunpack.c.h.b16 %v1766
        %v1801 = vunpack.c.l.b16 %v1767
        %v1802 = vunpack.c.h.b16 %v1767
        %v1803 = vunpack.c.l.b16 %v1768
        %v1804 = vunpack.c.h.b16 %v1768
        %v1805 = vunpack.c.l.b16 %v1769
        %v1806 = vunpack.c.h.b16 %v1769
        %v1807 = vunpack.c.l.b16 %v1770
        %v1808 = vunpack.c.h.b16 %v1770
        %v1809 = vunpack.c.l.b16 %v1771
        %v1810 = vpack.c.b16 %v1785, %v1785
        %v1811 = vpack.c.b16 %v1786, %v1786
        %v1812 = vpack.c.b16 %v1787, %v1787
        %v1813 = vpack.c.b16 %v1788, %v1788
        %v1814 = vpack.c.b16 %v1789, %v1789
        %v1815 = vpack.c.b16 %v1790, %v1790
        %v1816 = vpack.c.b16 %v1791, %v1791
        %v1817 = vpack.c.b16 %v1792, %v1792
        %v1818 = vpack.c.b16 %v1793, %v1793
        %v1819 = vpack.c.b16 %v1794, %v1794
        %v1820 = vpack.c.b16 %v1795, %v1795
        %v1821 = vpack.c.b16 %v1796, %v1796
        %v1822 = vpack.c.b16 %v1797, %v1797
        %v1823 = vpack.c.b16 %v1798, %v1798
        %v1824 = vpack.c.b16 %v1799, %v1799
        %v1825 = vpack.c.b16 %v1800, %v1800
        %v1826 = vpack.c.b16 %v1801, %v1801
        %v1827 = vpack.c.b16 %v1802, %v1802
        %v1828 = vpack.c.b16 %v1803, %v1803
        %v1829 = vpack.c.b16 %v1804, %v1804
        %v1830 = vpack.c.b16 %v1805, %v1805
        %v1831 = vpack.c.b16 %v1806, %v1806
        %v1832 = vpack.c.b16 %v1807, %v1807
        %v1833 = vpack.c.b16 %v1808, %v1808
        %v1834 = vpack.c.b16 %v1809, %v1809
        %1860 = vst [vmem:[%s609] sm:$0xf] %v1810
        %1861 = vst [vmem:[%s609 + $0x4] sm:$0xf] %v1811
        %1862 = vst [vmem:[%s609 + $0x8] sm:$0xf] %v1812
        %1863 = vst [vmem:[%s609 + $0xc] sm:$0xf] %v1813
        %1864 = vst [vmem:[%s609 + $0x10] sm:$0xf] %v1814
        %1865 = vst [vmem:[%s609 + $0x14] sm:$0xf] %v1815
        %1866 = vst [vmem:[%s609 + $0x18] sm:$0xf] %v1816
        %1867 = vst [vmem:[%s609 + $0x1c] sm:$0xf] %v1817
        %1868 = vst [vmem:[%s609 + $0x20] sm:$0xf] %v1818
        %1869 = vst [vmem:[%s609 + $0x24] sm:$0xf] %v1819
        %1870 = vst [vmem:[%s609 + $0x28] sm:$0xf] %v1820
        %1871 = vst [vmem:[%s609 + $0x2c] sm:$0xf] %v1821
        %1872 = vst [vmem:[%s609 + $0x30] sm:$0xf] %v1822
        %1873 = vst [vmem:[%s609 + $0x34] sm:$0xf] %v1823
        %1874 = vst [vmem:[%s609 + $0x38] sm:$0xf] %v1824
        %1875 = vst [vmem:[%s609 + $0x3c] sm:$0xf] %v1825
        %1876 = vst [vmem:[%s609 + $0x40] sm:$0xf] %v1826
        %1877 = vst [vmem:[%s609 + $0x44] sm:$0xf] %v1827
        %1878 = vst [vmem:[%s609 + $0x48] sm:$0xf] %v1828
        %1879 = vst [vmem:[%s609 + $0x4c] sm:$0xf] %v1829
        %1880 = vst [vmem:[%s609 + $0x50] sm:$0xf] %v1830
        %1881 = vst [vmem:[%s609 + $0x54] sm:$0xf] %v1831
        %1882 = vst [vmem:[%s609 + $0x58] sm:$0xf] %v1832
        %1883 = vst [vmem:[%s609 + $0x5c] sm:$0xf] %v1833
        %1884 = vst [vmem:[%s609 + $0x60] sm:$0xf] %v1834
        %s1885 = smul.u32 25, %s14
        %p1886 = scmp.lt.s32.totalorder %s1885, 49
        %s1887 = scalar_select %p1886, %s1885, 49
        %s1888 = smul.addr %s1887, 4
        %s1889 = scalar_lea.vmem %s3, %s1888
        // Predicated region
        $region74: #{net_forward.3} parent=68 // pred_check
          %p1890 = pneg %p100
        $region75: #{net_forward.3} parent=68 // pred_check_branch
          %1892 = sbr.rel (%p1890) target = $region77
        $region76: #{net_forward.3} parent=68 // pred_region
          %s1893 = smul.u32 25, %s14
        $region77: #{net_forward.3} parent=68 // pred_fallthru
          _
      $region69: #{net_forward.3} parent=5 // pred_fallthru
        _
      %p1894 = scmp.le.s32.totalorder 2, %s9
      // Predicated region
      $region78: #{net_forward.3} parent=5 // pred_check
        %p1895 = pneg %p1894
      $region79: #{net_forward.3} parent=5 // pred_check_branch
        %1897 = sbr.rel (%p1895) target = $region81
      $region80: #{net_forward.3} parent=5 // pred_region
        %s1898 = ssub.s32 %s9, 2
        // Predicated region
        $region82: #{net_forward.3} parent=80 // pred_check
          %p1899 = pneg %p106
        $region83: #{net_forward.3} parent=80 // pred_check_branch
          %1901 = sbr.rel (%p1899) target = $region85
        $region84: #{net_forward.3} parent=80 // pred_region
          %s1902 = smul.u32 25, %s15
          %p1903 = scmp.lt.s32.totalorder %s1902, 49
          %s1904 = scalar_select %p1903, %s1902, 49
          %s1905 = smul.addr %s1904, 4
          %s1906 = scalar_lea.vmem %s3, %s1905
        $region85: #{net_forward.3} parent=80 // pred_fallthru
          _
      $region81: #{net_forward.3} parent=5 // pred_fallthru
        _
    $region6: #{net_forward.3} parent=1 // loop_footer
      %s13 = sadd.s32 1, %s9
    $region7: #{net_forward.3} parent=1 // loop_footer_branch
      %8 = sbr.rel target = $region3
    $region8: #{net_forward.3} parent=1 // loop_exit
      _

// kernel: net_forward.4
$region0: #{net_forward.4}
  #allocation0 [shape = 'u32[]', space=smem, size = 0x4, offset = 0x4, fixed_abs, tag = 'smem constant byte address 0x4 - core index']
  #allocation1 [shape = 'u32[144,128]{1,0:T(1,128)}', space=vmem, size = 0x12000, scoped, tag = 'internal scratch']
  %s0 = inlined_call_operand.vmem [shape: bf16[4,64,384], index: 0, kind: input, shape index: {}]
  %s1 = inlined_call_operand.vmem [shape: bf16[384,128], index: 1, kind: input, shape index: {}]
  %s2 = inlined_call_operand.vmem [shape: f32[1,128], index: 2, kind: input, shape index: {}]
  %s3 = inlined_call_operand.vmem [shape: bf16[64,128], index: 3, kind: output, shape index: {}]
  %s4 = sld [smem:[#allocation0]]
  $region71: #{net_forward.4} parent=0
    _
  %s6 = ssub.s32 1, %s4
  %s7 = scalar_select 0, %s6, %s4
  $region1: #{net_forward.4} parent=0
    #allocation2 [shape = 'u8[196608]{0}', space=vmem, size = 0x30000, scoped, tag = 'input window, operand 0']
    loop: start=0, step=1, limit=4
    $region2: #{net_forward.4} parent=1 // loop_pre_header
      _
    $region3: #{net_forward.4} parent=1 // loop_header
      %s9 = sphi 0, %s13
      %p10 = scmp.ge.s32.totalorder %s9, 4
      %s19 = sphi 0, %s21
      %s22 = sphi 0, %s19
      %s23 = sphi 0, %s22
      %s39 = sphi 0, %s23
      %s43 = sphi 0, %s43
      %s45 = sphi 0, %s43
      %s46 = sphi 0, %s45
      %s60 = sphi 0, %s46
      %s64 = sphi 0, %s64
      %s66 = sphi 0, %s64
      %s67 = sphi 0, %s66
      %s81 = sphi 0, %s67
      %s87 = sphi 0, %s89
      %s90 = sphi 0, %s87
      %s91 = sphi 0, %s90
      %s107 = sphi 0, %s91
    $region4: #{net_forward.4} parent=1 // loop_header_branch
      %12 = sbr.rel (%p10) target = $region8
    $region5: #{net_forward.4} parent=1 // loop_body
      %s14 = ssub.s32 %s9, 1
      %s15 = ssub.s32 %s9, 2
      %s16 = sadd.s32 %s9, 1
      %s17 = ssub.s32 %s9, %s16
      %p18 = scmp.eq.s32.totalorder %s17, 0
      %s20 = sadd.s32 %s19, 1
      %s21 = scalar_select %p18, %s19, %s20
      %p24 = pneg %p18
      %p25 = scmp.eq.s32.totalorder %s9, 1
      %p26 = por %p24, %p25
      %p27 = scmp.ne.s32.totalorder %s19, %s22
      %p28 = scmp.eq.s32.totalorder %s9, 0
      %p29 = por %p27, %p28
      %p30 = scmp.ne.s32.totalorder %s19, %s22
      %p31 = scmp.eq.s32.totalorder %s14, 1
      %p32 = por %p30, %p31
      %p33 = scmp.ne.s32.totalorder %s22, %s23
      %p34 = scmp.eq.s32.totalorder %s14, 0
      %p35 = por %p33, %p34
      %p36 = scmp.ne.s32.totalorder %s22, %s23
      %p37 = scmp.eq.s32.totalorder %s15, 1
      %p38 = por %p36, %p37
      %p40 = scmp.ne.s32.totalorder %s23, %s39
      %p41 = scmp.eq.s32.totalorder %s15, 0
      %p42 = por %p40, %p41
      %s44 = sadd.s32 %s43, 1
      %p47 = scmp.eq.s32.totalorder %s9, 1
      %p48 = scmp.ne.s32.totalorder %s43, %s45
      %p49 = scmp.eq.s32.totalorder %s9, 0
      %p50 = por %p48, %p49
      %p51 = scmp.ne.s32.totalorder %s43, %s45
      %p52 = scmp.eq.s32.totalorder %s14, 1
      %p53 = por %p51, %p52
      %p54 = scmp.ne.s32.totalorder %s45, %s46
      %p55 = scmp.eq.s32.totalorder %s14, 0
      %p56 = por %p54, %p55
      %p57 = scmp.ne.s32.totalorder %s45, %s46
      %p58 = scmp.eq.s32.totalorder %s15, 1
      %p59 = por %p57, %p58
      %p61 = scmp.ne.s32.totalorder %s46, %s60
      %p62 = scmp.eq.s32.totalorder %s15, 0
      %p63 = por %p61, %p62
      %s65 = sadd.s32 %s64, 1
      %p68 = scmp.eq.s32.totalorder %s9, 1
      %p69 = scmp.ne.s32.totalorder %s64, %s66
      %p70 = scmp.eq.s32.totalorder %s9, 0
      %p71 = por %p69, %p70
      %p72 = scmp.ne.s32.totalorder %s64, %s66
      %p73 = scmp.eq.s32.totalorder %s14, 1
      %p74 = por %p72, %p73
      %p75 = scmp.ne.s32.totalorder %s66, %s67
      %p76 = scmp.eq.s32.totalorder %s14, 0
      %p77 = por %p75, %p76
      %p78 = scmp.ne.s32.totalorder %s66, %s67
      %p79 = scmp.eq.s32.totalorder %s15, 1
      %p80 = por %p78, %p79
      %p82 = scmp.ne.s32.totalorder %s67, %s81
      %p83 = scmp.eq.s32.totalorder %s15, 0
      %p84 = por %p82, %p83
      %s85 = ssub.s32 %s9, %s16
      %p86 = scmp.eq.s32.totalorder %s85, 0
      %s88 = sadd.s32 %s87, 1
      %s89 = scalar_select %p86, %s87, %s88
      %p92 = pneg %p86
      %p93 = scmp.eq.s32.totalorder %s9, 1
      %p94 = por %p92, %p93
      %p95 = scmp.ne.s32.totalorder %s87, %s90
      %p96 = scmp.eq.s32.totalorder %s9, 0
      %p97 = por %p95, %p96
      %p98 = scmp.ne.s32.totalorder %s87, %s90
      %p99 = scmp.eq.s32.totalorder %s14, 1
      %p100 = por %p98, %p99
      %p101 = scmp.ne.s32.totalorder %s90, %s91
      %p102 = scmp.eq.s32.totalorder %s14, 0
      %p103 = por %p101, %p102
      %p104 = scmp.ne.s32.totalorder %s90, %s91
      %p105 = scmp.eq.s32.totalorder %s15, 1
      %p106 = por %p104, %p105
      %p108 = scmp.ne.s32.totalorder %s91, %s107
      %p109 = scmp.eq.s32.totalorder %s15, 0
      %p110 = por %p108, %p109
      %p111 = scmp.le.s32.totalorder 1, %s9
      %p112 = scmp.lt.s32.totalorder %s9, 3
      %p113 = pnand %p111, %p112
      %p114 = pneg %p113
      // Predicated region
      $region9: #{net_forward.4} parent=5 // pred_check
        _
      $region10: #{net_forward.4} parent=5 // pred_check_branch
        %116 = sbr.rel (%p113) target = $region12
      $region11: #{net_forward.4} parent=5 // pred_region
        %s117 = ssub.s32 %s9, 1
        // Predicated region
        $region13: #{net_forward.4} parent=11 // pred_check
          %p118 = pneg %p56
        $region14: #{net_forward.4} parent=11 // pred_check_branch
          %120 = sbr.rel (%p118) target = $region16
        $region15: #{net_forward.4} parent=11 // pred_region
          _
        $region16: #{net_forward.4} parent=11 // pred_fallthru
          _
        // Predicated region
        $region17: #{net_forward.4} parent=11 // pred_check
          %p121 = pneg %p77
        $region18: #{net_forward.4} parent=11 // pred_check_branch
          %123 = sbr.rel (%p121) target = $region20
        $region19: #{net_forward.4} parent=11 // pred_region
          _
        $region20: #{net_forward.4} parent=11 // pred_fallthru
          _
      $region12: #{net_forward.4} parent=5 // pred_fallthru
        _
      %p124 = scmp.lt.s32.totalorder %s9, 2
      // Predicated region
      $region21: #{net_forward.4} parent=5 // pred_check
        %p125 = pneg %p124
      $region22: #{net_forward.4} parent=5 // pred_check_branch
        %127 = sbr.rel (%p125) target = $region24
      $region23: #{net_forward.4} parent=5 // pred_region
        // Predicated region
        $region25: #{net_forward.4} parent=23 // pred_check
          %p128 = pneg %p29
        $region26: #{net_forward.4} parent=23 // pred_check_branch
          %130 = sbr.rel (%p128) target = $region28
        $region27: #{net_forward.4} parent=23 // pred_region
          %s131 = sand.u32 %s19, 1
          %s132 = sand.u32 %s19, 1
          %s133 = smul.addr %s132, 192
          %s134 = scalar_lea.vmem [#allocation2], %s133
          %s135 = smul.u32 4, %s9
          %s136 = smul.addr %s135, 3
          %s137 = smul.addr %s136, 4
          %s138 = scalar_lea.vmem %s0, %s137
          // Predicated region
          $region29: #{net_forward.4} parent=27 // pred_check
            _
          $region30: #{net_forward.4} parent=27 // pred_check_branch
            %140 = sbr.rel (0) target = $region32
          $region31: #{net_forward.4} parent=27 // pred_region
            // Predicated region
            $region33: #{net_forward.4} parent=31 // pred_check
              _
            $region34: #{net_forward.4} parent=31 // pred_check_branch
              %142 = sbr.rel (0) target = $region36
            $region35: #{net_forward.4} parent=31 // pred_region
              %s143 = scalar_lea.vmem %s138, 8
              %s144 = scalar_lea.vmem %s134, 8 [#allocation2]
              loop: start=0, step=1, limit=1
              $region37: #{net_forward.4} parent=35 // loop_pre_header
                _
              $region38: #{net_forward.4} parent=35 // loop_header
                %s146 = sphi 0, %s150
                %p147 = scmp.ge.s32.totalorder %s146, 1
                %s151 = sphi %s138, %s138
                %s152 = sphi %s134, %s134
              $region39: #{net_forward.4} parent=35 // loop_header_branch
                %149 = sbr.rel (%p147) target = $region43
              $region40: #{net_forward.4} parent=35 // loop_body
                %v153 = vld [vmem:[%s151] sm:$0xff]
                %154 = vst [vmem:[%s152] sm:$0xff] %v153
                %v155 = vld [vmem:[%s151 + $0xc] sm:$0xff]
                %156 = vst [vmem:[%s152 + $0xc] sm:$0xff] %v155
                %v157 = vld [vmem:[%s151 + $0x18] sm:$0xff]
                %158 = vst [vmem:[%s152 + $0x18] sm:$0xff] %v157
                %v159 = vld [vmem:[%s151 + $0x24] sm:$0xff]
                %160 = vst [vmem:[%s152 + $0x24] sm:$0xff] %v159
                %v161 = vld [vmem:[%s151 + $0x60] sm:$0xff]
                %162 = vst [vmem:[%s152 + $0x30] sm:$0xff] %v161
                %v163 = vld [vmem:[%s151 + $0x6c] sm:$0xff]
                %164 = vst [vmem:[%s152 + $0x3c] sm:$0xff] %v163
                %v165 = vld [vmem:[%s151 + $0x78] sm:$0xff]
                %166 = vst [vmem:[%s152 + $0x48] sm:$0xff] %v165
                %v167 = vld [vmem:[%s151 + $0x84] sm:$0xff]
                %168 = vst [vmem:[%s152 + $0x54] sm:$0xff] %v167
                %v169 = vld [vmem:[%s151 + $0xc0] sm:$0xff]
                %170 = vst [vmem:[%s152 + $0x60] sm:$0xff] %v169
                %v171 = vld [vmem:[%s151 + $0xcc] sm:$0xff]
                %172 = vst [vmem:[%s152 + $0x6c] sm:$0xff] %v171
                %v173 = vld [vmem:[%s151 + $0xd8] sm:$0xff]
                %174 = vst [vmem:[%s152 + $0x78] sm:$0xff] %v173
                %v175 = vld [vmem:[%s151 + $0xe4] sm:$0xff]
                %176 = vst [vmem:[%s152 + $0x84] sm:$0xff] %v175
                %v177 = vld [vmem:[%s151 + $0x120] sm:$0xff]
                %178 = vst [vmem:[%s152 + $0x90] sm:$0xff] %v177
                %v179 = vld [vmem:[%s151 + $0x12c] sm:$0xff]
                %180 = vst [vmem:[%s152 + $0x9c] sm:$0xff] %v179
                %v181 = vld [vmem:[%s151 + $0x138] sm:$0xff]
                %182 = vst [vmem:[%s152 + $0xa8] sm:$0xff] %v181
                %v183 = vld [vmem:[%s151 + $0x144] sm:$0xff]
                %184 = vst [vmem:[%s152 + $0xb4] sm:$0xff] %v183
              $region41: #{net_forward.4} parent=35 // loop_footer
                %s150 = sadd.s32 1, %s146
              $region42: #{net_forward.4} parent=35 // loop_footer_branch
                %145 = sbr.rel target = $region38
              $region43: #{net_forward.4} parent=35 // loop_exit
                _
              loop: start=0, step=1, limit=1
              $region44: #{net_forward.4} parent=35 // loop_pre_header
                _
              $region45: #{net_forward.4} parent=35 // loop_header
                %s187 = sphi 0, %s191
                %p188 = scmp.ge.s32.totalorder %s187, 1
                %s192 = sphi %s143, %s143
                %s193 = sphi %s144, %s144
              $region46: #{net_forward.4} parent=35 // loop_header_branch
                %190 = sbr.rel (%p188) target = $region50
              $region47: #{net_forward.4} parent=35 // loop_body
                %v194 = vld [vmem:[%s192] sm:$0xf]
                %195 = vst [vmem:[%s193] sm:$0xf] %v194
                %v196 = vld [vmem:[%s192 + $0xc] sm:$0xf]
                %197 = vst [vmem:[%s193 + $0xc] sm:$0xf] %v196
                %v198 = vld [vmem:[%s192 + $0x18] sm:$0xf]
                %199 = vst [vmem:[%s193 + $0x18] sm:$0xf] %v198
                %v200 = vld [vmem:[%s192 + $0x24] sm:$0xf]
                %201 = vst [vmem:[%s193 + $0x24] sm:$0xf] %v200
                %v202 = vld [vmem:[%s192 + $0x60] sm:$0xf]
                %203 = vst [vmem:[%s193 + $0x30] sm:$0xf] %v202
                %v204 = vld [vmem:[%s192 + $0x6c] sm:$0xf]
                %205 = vst [vmem:[%s193 + $0x3c] sm:$0xf] %v204
                %v206 = vld [vmem:[%s192 + $0x78] sm:$0xf]
                %207 = vst [vmem:[%s193 + $0x48] sm:$0xf] %v206
                %v208 = vld [vmem:[%s192 + $0x84] sm:$0xf]
                %209 = vst [vmem:[%s193 + $0x54] sm:$0xf] %v208
                %v210 = vld [vmem:[%s192 + $0xc0] sm:$0xf]
                %211 = vst [vmem:[%s193 + $0x60] sm:$0xf] %v210
                %v212 = vld [vmem:[%s192 + $0xcc] sm:$0xf]
                %213 = vst [vmem:[%s193 + $0x6c] sm:$0xf] %v212
                %v214 = vld [vmem:[%s192 + $0xd8] sm:$0xf]
                %215 = vst [vmem:[%s193 + $0x78] sm:$0xf] %v214
                %v216 = vld [vmem:[%s192 + $0xe4] sm:$0xf]
                %217 = vst [vmem:[%s193 + $0x84] sm:$0xf] %v216
                %v218 = vld [vmem:[%s192 + $0x120] sm:$0xf]
                %219 = vst [vmem:[%s193 + $0x90] sm:$0xf] %v218
                %v220 = vld [vmem:[%s192 + $0x12c] sm:$0xf]
                %221 = vst [vmem:[%s193 + $0x9c] sm:$0xf] %v220
                %v222 = vld [vmem:[%s192 + $0x138] sm:$0xf]
                %223 = vst [vmem:[%s193 + $0xa8] sm:$0xf] %v222
                %v224 = vld [vmem:[%s192 + $0x144] sm:$0xf]
                %225 = vst [vmem:[%s193 + $0xb4] sm:$0xf] %v224
              $region48: #{net_forward.4} parent=35 // loop_footer
                %s191 = sadd.s32 1, %s187
              $region49: #{net_forward.4} parent=35 // loop_footer_branch
                %186 = sbr.rel target = $region45
              $region50: #{net_forward.4} parent=35 // loop_exit
                _
            $region36: #{net_forward.4} parent=31 // pred_fallthru
              _
          $region32: #{net_forward.4} parent=27 // pred_fallthru
            _
          %226 = vnop
        $region28: #{net_forward.4} parent=23 // pred_fallthru
          _
      $region24: #{net_forward.4} parent=5 // pred_fallthru
        _
      %p227 = scmp.le.s32.totalorder 1, %s9
      %p228 = scmp.lt.s32.totalorder %s9, 3
      %p229 = pnand %p227, %p228
      %p230 = pneg %p229
      // Predicated region
      $region51: #{net_forward.4} parent=5 // pred_check
        _
      $region52: #{net_forward.4} parent=5 // pred_check_branch
        %232 = sbr.rel (%p229) target = $region54
      $region53: #{net_forward.4} parent=5 // pred_region
        %s233 = ssub.s32 %s9, 1
        %s234 = sand.u32 %s22, 1
        %s235 = sand.u32 %s22, 1
        %s236 = smul.addr %s235, 192
        %s237 = scalar_lea.vmem [#allocation2], %s236
        // Predicated region
        $region55: #{net_forward.4} parent=53 // pred_check
          %p238 = pneg %p35
        $region56: #{net_forward.4} parent=53 // pred_check_branch
          %240 = sbr.rel (%p238) target = $region58
        $region57: #{net_forward.4} parent=53 // pred_region
          _
        $region58: #{net_forward.4} parent=53 // pred_fallthru
          _
        %s241 = sand.u32 %s22, 1
        %s242 = sand.u32 %s22, 1
        %s243 = smul.addr %s242, 192
        %s244 = scalar_lea.vmem [#allocation2], %s243
        %p245 = pneg %p35
        %p246 = pneg %p32
        %p247 = pneg %p56
        %p248 = pneg %p53
        %p249 = pneg %p77
        %p250 = pneg %p74
        %p251 = pneg %p103
        %p252 = pneg %p100
        %s253 = smul.u32 4, %s14
        %p254 = scmp.lt.s32.totalorder %s253, 7
        %s255 = scalar_select %p254, %s253, 7
        %s256 = smul.addr %s255, 4
        %s257 = scalar_lea.vmem %s3, %s256
        %s258 = smul.u32 4, %s14
        %s259 = smul.u32 4, %s14
        %p260 = scmp.lt.s32.totalorder %s259, 7
        %s261 = scalar_select %p260, %s259, 7
        %s262 = smul.addr %s261, 4
        %s263 = scalar_lea.vmem %s3, %s262
        %s264 = smul.u32 4, %s14
        %v266 = vld [vmem:[%s1] sm:$0xf]
        %v267 = vld [vmem:[%s1 + $0x4] sm:$0xf]
        %v268 = vld [vmem:[%s1 + $0x8] sm:$0xf]
        %v269 = vld [vmem:[%s1 + $0xc] sm:$0xf]
        %v270 = vld [vmem:[%s1 + $0x10] sm:$0xf]
        %v271 = vld [vmem:[%s1 + $0x14] sm:$0xf]
        %v272 = vld [vmem:[%s1 + $0x18] sm:$0xf]
        %v273 = vld [vmem:[%s1 + $0x1c] sm:$0xf]
        %v274 = vld [vmem:[%s1 + $0x20] sm:$0xf]
        %v275 = vld [vmem:[%s1 + $0x24] sm:$0xf]
        %v276 = vld [vmem:[%s1 + $0x28] sm:$0xf]
        %v277 = vld [vmem:[%s1 + $0x2c] sm:$0xf]
        %v278 = vld [vmem:[%s1 + $0x30] sm:$0xf]
        %v279 = vld [vmem:[%s1 + $0x34] sm:$0xf]
        %v280 = vld [vmem:[%s1 + $0x38] sm:$0xf]
        %v281 = vld [vmem:[%s1 + $0x3c] sm:$0xf]
        %v282 = vld [vmem:[%s1 + $0x40] sm:$0xf]
        %v283 = vld [vmem:[%s1 + $0x44] sm:$0xf]
        %v284 = vld [vmem:[%s1 + $0x48] sm:$0xf]
        %v285 = vld [vmem:[%s1 + $0x4c] sm:$0xf]
        %v286 = vld [vmem:[%s1 + $0x50] sm:$0xf]
        %v287 = vld [vmem:[%s1 + $0x54] sm:$0xf]
        %v288 = vld [vmem:[%s1 + $0x58] sm:$0xf]
        %v289 = vld [vmem:[%s1 + $0x5c] sm:$0xf]
        %v290 = vld [vmem:[%s1 + $0x60] sm:$0xf]
        %v291 = vld [vmem:[%s1 + $0x64] sm:$0xf]
        %v292 = vld [vmem:[%s1 + $0x68] sm:$0xf]
        %v293 = vld [vmem:[%s1 + $0x6c] sm:$0xf]
        %v294 = vld [vmem:[%s1 + $0x70] sm:$0xf]
        %v295 = vld [vmem:[%s1 + $0x74] sm:$0xf]
        %v296 = vld [vmem:[%s1 + $0x78] sm:$0xf]
        %v297 = vld [vmem:[%s1 + $0x7c] sm:$0xf]
        %v298 = vld [vmem:[%s1 + $0x80] sm:$0xf]
        %v299 = vld [vmem:[%s1 + $0x84] sm:$0xf]
        %v300 = vld [vmem:[%s1 + $0x88] sm:$0xf]
        %v301 = vld [vmem:[%s1 + $0x8c] sm:$0xf]
        %v302 = vld [vmem:[%s1 + $0x90] sm:$0xf]
        %v303 = vld [vmem:[%s1 + $0x94] sm:$0xf]
        %v304 = vld [vmem:[%s1 + $0x98] sm:$0xf]
        %v305 = vld [vmem:[%s1 + $0x9c] sm:$0xf]
        %v306 = vld [vmem:[%s1 + $0xa0] sm:$0xf]
        %v307 = vld [vmem:[%s1 + $0xa4] sm:$0xf]
        %v308 = vld [vmem:[%s1 + $0xa8] sm:$0xf]
        %v309 = vld [vmem:[%s1 + $0xac] sm:$0xf]
        %v310 = vld [vmem:[%s1 + $0xb0] sm:$0xf]
        %v311 = vld [vmem:[%s1 + $0xb4] sm:$0xf]
        %v312 = vld [vmem:[%s1 + $0xb8] sm:$0xf]
        %v313 = vld [vmem:[%s1 + $0xbc] sm:$0xf]
        %v314 = vld [vmem:[%s237] sm:$0xff]
        %v315 = vld [vmem:[%s237 + $0x8] sm:$0xf]
        %v316 = vld [vmem:[%s237 + $0xc] sm:$0xff]
        %v317 = vld [vmem:[%s237 + $0x14] sm:$0xf]
        %v318 = vld [vmem:[%s237 + $0x18] sm:$0xff]
        %v319 = vld [vmem:[%s237 + $0x20] sm:$0xf]
        %v320 = vld [vmem:[%s237 + $0x24] sm:$0xff]
        %v321 = vld [vmem:[%s237 + $0x2c] sm:$0xf]
        %v330 = vunpack.c.l.b16 %v314
        %v331 = vunpack.c.h.b16 %v314
        %v332 = vunpack.c.l.b16 %v315
        %v333 = vunpack.c.l.b16 %v316
        %v334 = vunpack.c.h.b16 %v316
        %v335 = vunpack.c.l.b16 %v317
        %v336 = vunpack.c.l.b16 %v318
        %v337 = vunpack.c.h.b16 %v318
        %v338 = vunpack.c.l.b16 %v319
        %v339 = vunpack.c.l.b16 %v320
        %v340 = vunpack.c.h.b16 %v320
        %v341 = vunpack.c.l.b16 %v321
        %v342 = vpack.c.b16 %v333, %v330
        %v343 = vpack.c.b16 %v334, %v331
        %v344 = vpack.c.b16 %v335, %v332
        %v345 = vpack.c.b16 %v339, %v336
        %v346 = vpack.c.b16 %v340, %v337
        %v347 = vpack.c.b16 %v341, %v338
        %v402 = vunpack.c.l.b16 %v266
        %v403 = vunpack.c.l.b16 %v267
        %v404 = vunpack.c.l.b16 %v268
        %v405 = vunpack.c.l.b16 %v269
        %v406 = vunpack.c.l.b16 %v270
        %v407 = vunpack.c.l.b16 %v271
        %v408 = vunpack.c.l.b16 %v272
        %v409 = vunpack.c.l.b16 %v273
        %v410 = vunpack.c.l.b16 %v274
        %v411 = vunpack.c.l.b16 %v275
        %v412 = vunpack.c.l.b16 %v276
        %v413 = vunpack.c.l.b16 %v277
        %v414 = vunpack.c.l.b16 %v278
        %v415 = vunpack.c.l.b16 %v279
        %v416 = vunpack.c.l.b16 %v280
        %v417 = vunpack.c.l.b16 %v281
        %v418 = vunpack.c.l.b16 %v282
        %v419 = vunpack.c.l.b16 %v283
        %v420 = vunpack.c.l.b16 %v284
        %v421 = vunpack.c.l.b16 %v285
        %v422 = vunpack.c.l.b16 %v286
        %v423 = vunpack.c.l.b16 %v287
        %v424 = vunpack.c.l.b16 %v288
        %v425 = vunpack.c.l.b16 %v289
        %v426 = vunpack.c.l.b16 %v290
        %v427 = vunpack.c.l.b16 %v291
        %v428 = vunpack.c.l.b16 %v292
        %v429 = vunpack.c.l.b16 %v293
        %v430 = vunpack.c.l.b16 %v294
        %v431 = vunpack.c.l.b16 %v295
        %v432 = vunpack.c.l.b16 %v296
        %v433 = vunpack.c.l.b16 %v297
        %v434 = vunpack.c.l.b16 %v298
        %v435 = vunpack.c.l.b16 %v299
        %v436 = vunpack.c.l.b16 %v300
        %v437 = vunpack.c.l.b16 %v301
        %v438 = vunpack.c.l.b16 %v302
        %v439 = vunpack.c.l.b16 %v303
        %v440 = vunpack.c.l.b16 %v304
        %v441 = vunpack.c.l.b16 %v305
        %v442 = vunpack.c.l.b16 %v306
        %v443 = vunpack.c.l.b16 %v307
        %v444 = vunpack.c.l.b16 %v308
        %v445 = vunpack.c.l.b16 %v309
        %v446 = vunpack.c.l.b16 %v310
        %v447 = vunpack.c.l.b16 %v311
        %v448 = vunpack.c.l.b16 %v312
        %v449 = vunpack.c.l.b16 %v313
        %v450 = vpack.c.b16 %v403, %v402
        %v451 = vpack.c.b16 %v405, %v404
        %v452 = vpack.c.b16 %v407, %v406
        %v453 = vpack.c.b16 %v409, %v408
        %v454 = vpack.c.b16 %v411, %v410
        %v455 = vpack.c.b16 %v413, %v412
        %v456 = vpack.c.b16 %v415, %v414
        %v457 = vpack.c.b16 %v417, %v416
        %v458 = vpack.c.b16 %v419, %v418
        %v459 = vpack.c.b16 %v421, %v420
        %v460 = vpack.c.b16 %v423, %v422
        %v461 = vpack.c.b16 %v425, %v424
        %v462 = vpack.c.b16 %v427, %v426
        %v463 = vpack.c.b16 %v429, %v428
        %v464 = vpack.c.b16 %v431, %v430
        %v465 = vpack.c.b16 %v433, %v432
        %v466 = vpack.c.b16 %v435, %v434
        %v467 = vpack.c.b16 %v437, %v436
        %v468 = vpack.c.b16 %v439, %v438
        %v469 = vpack.c.b16 %v441, %v440
        %v470 = vpack.c.b16 %v443, %v442
        %v471 = vpack.c.b16 %v445, %v444
        %v472 = vpack.c.b16 %v447, %v446
        %v473 = vpack.c.b16 %v449, %v448
        %498 = vmatprep.subr.bf16.mxu0 0
        %499 = vmatpush1.bf16.msra.mxu0 %v450
        %500 = vmatprep.subr.bf16.mxu0 0
        %501 = vmatpush1.bf16.msra.mxu0 %v451
        %502 = vmatprep.subr.bf16.mxu0 0
        %503 = vmatpush1.bf16.msra.mxu0 %v452
        %504 = vmatprep.subr.bf16.mxu0 0
        %505 = vmatpush1.bf16.msra.mxu0 %v453
        %506 = vmatprep.subr.bf16.mxu0 0
        %507 = vmatpush1.bf16.msra.mxu0 %v454
        %508 = vmatprep.subr.bf16.mxu0 0
        %509 = vmatpush1.bf16.msra.mxu0 %v455
        %510 = vmatprep.subr.bf16.mxu0 0
        %511 = vmatpush1.bf16.msra.mxu0 %v456
        %512 = vmatprep.subr.bf16.mxu0 0
        %513 = vmatpush1.bf16.msra.mxu0 %v457
        %514 = vmatprep.subr.bf16.mxu0 0
        %515 = vmatpush1.bf16.msra.mxu0 %v458
        %516 = vmatprep.subr.bf16.mxu0 0
        %517 = vmatpush1.bf16.msra.mxu0 %v459
        %518 = vmatprep.subr.bf16.mxu0 0
        %519 = vmatpush1.bf16.msra.mxu0 %v460
        %520 = vmatprep.subr.bf16.mxu0 0
        %521 = vmatpush1.bf16.msra.mxu0 %v461
        %522 = vmatprep.subr.bf16.mxu0 0
        %523 = vmatpush1.bf16.msra.mxu0 %v462
        %524 = vmatprep.subr.bf16.mxu0 0
        %525 = vmatpush1.bf16.msra.mxu0 %v463
        %526 = vmatprep.subr.bf16.mxu0 0
        %527 = vmatpush1.bf16.msra.mxu0 %v464
        %528 = vmatprep.subr.bf16.mxu0 0
        %529 = vmatpush1.bf16.msra.mxu0 %v465
        %530 = vmatprep.mubr.bf16.mxu0 %v343
        %531 = vmatmul.mubr.bf16.gmra.mrb[0].mxu0 %v342
        %v532 = vpop.f32.mrb[0].mxu0
        %v533 = vadd.f32 0.0, %v532
        %v534 = vpop.f32.mrb[0].mxu0
        %v535 = vpop.f32.mrb[0].mxu0
        %v536 = vadd.f32 0.0, %v535
        %v537 = vpop.f32.mrb[0].mxu0
        %538 = vmatprep.mubr.bf16.mxu0 %v346
        %539 = vmatmul.mubr.bf16.gmra.mrb[0].mxu0 %v345
        %v540 = vpop.f32.mrb[0].mxu0
        %v541 = vadd.f32 0.0, %v540
        %v542 = vpop.f32.mrb[0].mxu0
        %v543 = vpop.f32.mrb[0].mxu0
        %v544 = vadd.f32 0.0, %v543
        %v545 = vpop.f32.mrb[0].mxu0
        %546 = vdwg.mxu0
        %547 = vmatprep.subr.bf16.mxu0 0
        %548 = vmatpush1.bf16.msra.mxu0 %v466
        %549 = vmatprep.subr.bf16.mxu0 0
        %550 = vmatpush1.bf16.msra.mxu0 %v467
        %551 = vmatprep.subr.bf16.mxu0 0
        %552 = vmatpush1.bf16.msra.mxu0 %v468
        %553 = vmatprep.subr.bf16.mxu0 0
        %554 = vmatpush1.bf16.msra.mxu0 %v469
        %555 = vmatprep.subr.bf16.mxu0 0
        %556 = vmatpush1.bf16.msra.mxu0 %v470
        %557 = vmatprep.subr.bf16.mxu0 0
        %558 = vmatpush1.bf16.msra.mxu0 %v471
        %559 = vmatprep.subr.bf16.mxu0 0
        %560 = vmatpush1.bf16.msra.mxu0 %v472
        %561 = vmatprep.subr.bf16.mxu0 0
        %562 = vmatpush1.bf16.msra.mxu0 %v473
        %563 = vmatprep.subr.bf16.mxu0 0
        %564 = vmatpush1.bf16.msra.mxu0 0
        %565 = vmatprep.subr.bf16.mxu0 0
        %566 = vmatpush1.bf16.msra.mxu0 0
        %567 = vmatprep.subr.bf16.mxu0 0
        %568 = vmatpush1.bf16.msra.mxu0 0
        %569 = vmatprep.subr.bf16.mxu0 0
        %570 = vmatpush1.bf16.msra.mxu0 0
        %571 = vmatprep.subr.bf16.mxu0 0
        %572 = vmatpush1.bf16.msra.mxu0 0
        %573 = vmatprep.subr.bf16.mxu0 0
        %574 = vmatpush1.bf16.msra.mxu0 0
        %575 = vmatprep.subr.bf16.mxu0 0
        %576 = vmatpush1.bf16.msra.mxu0 0
        %577 = vmatprep.subr.bf16.mxu0 0
        %578 = vmatpush1.bf16.msra.mxu0 0
        %579 = vmatprep.mubr.bf16.mxu0 0
        %580 = vmatmul.mubr.bf16.gmra.mrb[0].mxu0 %v344
        %v581 = vpop.f32.mrb[0].mxu0
        %v582 = vadd.f32 %v533, %v581
        %v583 = vpop.f32.mrb[0].mxu0
        %v584 = vpop.f32.mrb[0].mxu0
        %v585 = vadd.f32 %v536, %v584
        %v586 = vpop.f32.mrb[0].mxu0
        %587 = vmatprep.mubr.bf16.mxu0 0
        %588 = vmatmul.mubr.bf16.gmra.mrb[0].mxu0 %v347
        %v589 = vpop.f32.mrb[0].mxu0
        %v590 = vadd.f32 %v541, %v589
        %v591 = vpop.f32.mrb[0].mxu0
        %v592 = vpop.f32.mrb[0].mxu0
        %v593 = vadd.f32 %v544, %v592
        %v594 = vpop.f32.mrb[0].mxu0
        %595 = vdwg.mxu0
        %s596 = scalar_lea.vmem %s237, 48 [#allocation2]
        %v597 = vld [vmem:[%s596] sm:$0xff]
        %v598 = vld [vmem:[%s596 + $0x8] sm:$0xf]
        %v599 = vld [vmem:[%s596 + $0xc] sm:$0xff]
        %v600 = vld [vmem:[%s596 + $0x14] sm:$0xf]
        %v601 = vld [vmem:[%s596 + $0x18] sm:$0xff]
        %v602 = vld [vmem:[%s596 + $0x20] sm:$0xf]
        %v603 = vld [vmem:[%s596 + $0x24] sm:$0xff]
        %v604 = vld [vmem:[%s596 + $0x2c] sm:$0xf]
        %v613 = vunpack.c.l.b16 %v597
        %v614 = vunpack.c.h.b16 %v597
        %v615 = vunpack.c.l.b16 %v598
        %v616 = vunpack.c.l.b16 %v599
        %v617 = vunpack.c.h.b16 %v599
        %v618 = vunpack.c.l.b16 %v600
        %v619 = vunpack.c.l.b16 %v601
        %v620 = vunpack.c.h.b16 %v601
        %v621 = vunpack.c.l.b16 %v602
        %v622 = vunpack.c.l.b16 %v603
        %v623 = vunpack.c.h.b16 %v603
        %v624 = vunpack.c.l.b16 %v604
        %v625 = vpack.c.b16 %v616, %v613
        %v626 = vpack.c.b16 %v617, %v614
        %v627 = vpack.c.b16 %v618, %v615
        %v628 = vpack.c.b16 %v622, %v619
        %v629 = vpack.c.b16 %v623, %v620
        %v630 = vpack.c.b16 %v624, %v621
        %637 = vmatprep.subr.bf16.mxu0 0
        %638 = vmatpush1.bf16.msra.mxu0 %v450
        %639 = vmatprep.subr.bf16.mxu0 0
        %640 = vmatpush1.bf16.msra.mxu0 %v451
        %641 = vmatprep.subr.bf16.mxu0 0
        %642 = vmatpush1.bf16.msra.mxu0 %v452
        %643 = vmatprep.subr.bf16.mxu0 0
        %644 = vmatpush1.bf16.msra.mxu0 %v453
        %645 = vmatprep.subr.bf16.mxu0 0
        %646 = vmatpush1.bf16.msra.mxu0 %v454
        %647 = vmatprep.subr.bf16.mxu0 0
        %648 = vmatpush1.bf16.msra.mxu0 %v455
        %649 = vmatprep.subr.bf16.mxu0 0
        %650 = vmatpush1.bf16.msra.mxu0 %v456
        %651 = vmatprep.subr.bf16.mxu0 0
        %652 = vmatpush1.bf16.msra.mxu0 %v457
        %653 = vmatprep.subr.bf16.mxu0 0
        %654 = vmatpush1.bf16.msra.mxu0 %v458
        %655 = vmatprep.subr.bf16.mxu0 0
        %656 = vmatpush1.bf16.msra.mxu0 %v459
        %657 = vmatprep.subr.bf16.mxu0 0
        %658 = vmatpush1.bf16.msra.mxu0 %v460
        %659 = vmatprep.subr.bf16.mxu0 0
        %660 = vmatpush1.bf16.msra.mxu0 %v461
        %661 = vmatprep.subr.bf16.mxu0 0
        %662 = vmatpush1.bf16.msra.mxu0 %v462
        %663 = vmatprep.subr.bf16.mxu0 0
        %664 = vmatpush1.bf16.msra.mxu0 %v463
        %665 = vmatprep.subr.bf16.mxu0 0
        %666 = vmatpush1.bf16.msra.mxu0 %v464
        %667 = vmatprep.subr.bf16.mxu0 0
        %668 = vmatpush1.bf16.msra.mxu0 %v465
        %669 = vmatprep.mubr.bf16.mxu0 %v626
        %670 = vmatmul.mubr.bf16.gmra.mrb[0].mxu0 %v625
        %v671 = vpop.f32.mrb[0].mxu0
        %v672 = vadd.f32 0.0, %v671
        %v673 = vpop.f32.mrb[0].mxu0
        %v674 = vpop.f32.mrb[0].mxu0
        %v675 = vadd.f32 0.0, %v674
        %v676 = vpop.f32.mrb[0].mxu0
        %677 = vmatprep.mubr.bf16.mxu0 %v629
        %678 = vmatmul.mubr.bf16.gmra.mrb[0].mxu0 %v628
        %v679 = vpop.f32.mrb[0].mxu0
        %v680 = vadd.f32 0.0, %v679
        %v681 = vpop.f32.mrb[0].mxu0
        %v682 = vpop.f32.mrb[0].mxu0
        %v683 = vadd.f32 0.0, %v682
        %v684 = vpop.f32.mrb[0].mxu0
        %685 = vdwg.mxu0
        %686 = vmatprep.subr.bf16.mxu0 0
        %687 = vmatpush1.bf16.msra.mxu0 %v466
        %688 = vmatprep.subr.bf16.mxu0 0
        %689 = vmatpush1.bf16.msra.mxu0 %v467
        %690 = vmatprep.subr.bf16.mxu0 0
        %691 = vmatpush1.bf16.msra.mxu0 %v468
        %692 = vmatprep.subr.bf16.mxu0 0
        %693 = vmatpush1.bf16.msra.mxu0 %v469
        %694 = vmatprep.subr.bf16.mxu0 0
        %695 = vmatpush1.bf16.msra.mxu0 %v470
        %696 = vmatprep.subr.bf16.mxu0 0
        %697 = vmatpush1.bf16.msra.mxu0 %v471
        %698 = vmatprep.subr.bf16.mxu0 0
        %699 = vmatpush1.bf16.msra.mxu0 %v472
        %700 = vmatprep.subr.bf16.mxu0 0
        %701 = vmatpush1.bf16.msra.mxu0 %v473
        %702 = vmatprep.subr.bf16.mxu0 0
        %703 = vmatpush1.bf16.msra.mxu0 0
        %704 = vmatprep.subr.bf16.mxu0 0
        %705 = vmatpush1.bf16.msra.mxu0 0
        %706 = vmatprep.subr.bf16.mxu0 0
        %707 = vmatpush1.bf16.msra.mxu0 0
        %708 = vmatprep.subr.bf16.mxu0 0
        %709 = vmatpush1.bf16.msra.mxu0 0
        %710 = vmatprep.subr.bf16.mxu0 0
        %711 = vmatpush1.bf16.msra.mxu0 0
        %712 = vmatprep.subr.bf16.mxu0 0
        %713 = vmatpush1.bf16.msra.mxu0 0
        %714 = vmatprep.subr.bf16.mxu0 0
        %715 = vmatpush1.bf16.msra.mxu0 0
        %716 = vmatprep.subr.bf16.mxu0 0
        %717 = vmatpush1.bf16.msra.mxu0 0
        %718 = vmatprep.mubr.bf16.mxu0 0
        %719 = vmatmul.mubr.bf16.gmra.mrb[0].mxu0 %v627
        %v720 = vpop.f32.mrb[0].mxu0
        %v721 = vadd.f32 %v672, %v720
        %v722 = vpop.f32.mrb[0].mxu0
        %v723 = vpop.f32.mrb[0].mxu0
        %v724 = vadd.f32 %v675, %v723
        %v725 = vpop.f32.mrb[0].mxu0
        %726 = vmatprep.mubr.bf16.mxu0 0
        %727 = vmatmul.mubr.bf16.gmra.mrb[0].mxu0 %v630
        %v728 = vpop.f32.mrb[0].mxu0
        %v729 = vadd.f32 %v680, %v728
        %v730 = vpop.f32.mrb[0].mxu0
        %v731 = vpop.f32.mrb[0].mxu0
        %v732 = vadd.f32 %v683, %v731
        %v733 = vpop.f32.mrb[0].mxu0
        %734 = vdwg.mxu0
        %v735 = vmax.f32 %v582, %v721
        %v736 = vmax.f32 %v585, %v724
        %v737 = vmax.f32 %v590, %v729
        %v738 = vmax.f32 %v593, %v732
        %s739 = scalar_lea.vmem %s237, 96 [#allocation2]
        %v740 = vld [vmem:[%s739] sm:$0xff]
        %v741 = vld [vmem:[%s739 + $0x8] sm:$0xf]
        %v742 = vld [vmem:[%s739 + $0xc] sm:$0xff]
        %v743 = vld [vmem:[%s739 + $0x14] sm:$0xf]
        %v744 = vld [vmem:[%s739 + $0x18] sm:$0xff]
        %v745 = vld [vmem:[%s739 + $0x20] sm:$0xf]
        %v746 = vld [vmem:[%s739 + $0x24] sm:$0xff]
        %v747 = vld [vmem:[%s739 + $0x2c] sm:$0xf]
        %v756 = vunpack.c.l.b16 %v740
        %v757 = vunpack.c.h.b16 %v740
        %v758 = vunpack.c.l.b16 %v741
        %v759 = vunpack.c.l.b16 %v742
        %v760 = vunpack.c.h.b16 %v742
        %v761 = vunpack.c.l.b16 %v743
        %v762 = vunpack.c.l.b16 %v744
        %v763 = vunpack.c.h.b16 %v744
        %v764 = vunpack.c.l.b16 %v745
        %v765 = vunpack.c.l.b16 %v746
        %v766 = vunpack.c.h.b16 %v746
        %v767 = vunpack.c.l.b16 %v747
        %v768 = vpack.c.b16 %v759, %v756
        %v769 = vpack.c.b16 %v760, %v757
        %v770 = vpack.c.b16 %v761, %v758
        %v771 = vpack.c.b16 %v765, %v762
        %v772 = vpack.c.b16 %v766, %v763
        %v773 = vpack.c.b16 %v767, %v764
        %780 = vmatprep.subr.bf16.mxu0 0
        %781 = vmatpush1.bf16.msra.mxu0 %v450
        %782 = vmatprep.subr.bf16.mxu0 0
        %783 = vmatpush1.bf16.msra.mxu0 %v451
        %784 = vmatprep.subr.bf16.mxu0 0
        %785 = vmatpush1.bf16.msra.mxu0 %v452
        %786 = vmatprep.subr.bf16.mxu0 0
        %787 = vmatpush1.bf16.msra.mxu0 %v453
        %788 = vmatprep.subr.bf16.mxu0 0
        %789 = vmatpush1.bf16.msra.mxu0 %v454
        %790 = vmatprep.subr.bf16.mxu0 0
        %791 = vmatpush1.bf16.msra.mxu0 %v455
        %792 = vmatprep.subr.bf16.mxu0 0
        %793 = vmatpush1.bf16.msra.mxu0 %v456
        %794 = vmatprep.subr.bf16.mxu0 0
        %795 = vmatpush1.bf16.msra.mxu0 %v457
        %796 = vmatprep.subr.bf16.mxu0 0
        %797 = vmatpush1.bf16.msra.mxu0 %v458
        %798 = vmatprep.subr.bf16.mxu0 0
        %799 = vmatpush1.bf16.msra.mxu0 %v459
        %800 = vmatprep.subr.bf16.mxu0 0
        %801 = vmatpush1.bf16.msra.mxu0 %v460
        %802 = vmatprep.subr.bf16.mxu0 0
        %803 = vmatpush1.bf16.msra.mxu0 %v461
        %804 = vmatprep.subr.bf16.mxu0 0
        %805 = vmatpush1.bf16.msra.mxu0 %v462
        %806 = vmatprep.subr.bf16.mxu0 0
        %807 = vmatpush1.bf16.msra.mxu0 %v463
        %808 = vmatprep.subr.bf16.mxu0 0
        %809 = vmatpush1.bf16.msra.mxu0 %v464
        %810 = vmatprep.subr.bf16.mxu0 0
        %811 = vmatpush1.bf16.msra.mxu0 %v465
        %812 = vmatprep.mubr.bf16.mxu0 %v769
        %813 = vmatmul.mubr.bf16.gmra.mrb[0].mxu0 %v768
        %v814 = vpop.f32.mrb[0].mxu0
        %v815 = vadd.f32 0.0, %v814
        %v816 = vpop.f32.mrb[0].mxu0
        %v817 = vpop.f32.mrb[0].mxu0
        %v818 = vadd.f32 0.0, %v817
        %v819 = vpop.f32.mrb[0].mxu0
        %820 = vmatprep.mubr.bf16.mxu0 %v772
        %821 = vmatmul.mubr.bf16.gmra.mrb[0].mxu0 %v771
        %v822 = vpop.f32.mrb[0].mxu0
        %v823 = vadd.f32 0.0, %v822
        %v824 = vpop.f32.mrb[0].mxu0
        %v825 = vpop.f32.mrb[0].mxu0
        %v826 = vadd.f32 0.0, %v825
        %v827 = vpop.f32.mrb[0].mxu0
        %828 = vdwg.mxu0
        %829 = vmatprep.subr.bf16.mxu0 0
        %830 = vmatpush1.bf16.msra.mxu0 %v466
        %831 = vmatprep.subr.bf16.mxu0 0
        %832 = vmatpush1.bf16.msra.mxu0 %v467
        %833 = vmatprep.subr.bf16.mxu0 0
        %834 = vmatpush1.bf16.msra.mxu0 %v468
        %835 = vmatprep.subr.bf16.mxu0 0
        %836 = vmatpush1.bf16.msra.mxu0 %v469
        %837 = vmatprep.subr.bf16.mxu0 0
        %838 = vmatpush1.bf16.msra.mxu0 %v470
        %839 = vmatprep.subr.bf16.mxu0 0
        %840 = vmatpush1.bf16.msra.mxu0 %v471
        %841 = vmatprep.subr.bf16.mxu0 0
        %842 = vmatpush1.bf16.msra.mxu0 %v472
        %843 = vmatprep.subr.bf16.mxu0 0
        %844 = vmatpush1.bf16.msra.mxu0 %v473
        %845 = vmatprep.subr.bf16.mxu0 0
        %846 = vmatpush1.bf16.msra.mxu0 0
        %847 = vmatprep.subr.bf16.mxu0 0
        %848 = vmatpush1.bf16.msra.mxu0 0
        %849 = vmatprep.subr.bf16.mxu0 0
        %850 = vmatpush1.bf16.msra.mxu0 0
        %851 = vmatprep.subr.bf16.mxu0 0
        %852 = vmatpush1.bf16.msra.mxu0 0
        %853 = vmatprep.subr.bf16.mxu0 0
        %854 = vmatpush1.bf16.msra.mxu0 0
        %855 = vmatprep.subr.bf16.mxu0 0
        %856 = vmatpush1.bf16.msra.mxu0 0
        %857 = vmatprep.subr.bf16.mxu0 0
        %858 = vmatpush1.bf16.msra.mxu0 0
        %859 = vmatprep.subr.bf16.mxu0 0
        %860 = vmatpush1.bf16.msra.mxu0 0
        %861 = vmatprep.mubr.bf16.mxu0 0
        %862 = vmatmul.mubr.bf16.gmra.mrb[0].mxu0 %v770
        %v863 = vpop.f32.mrb[0].mxu0
        %v864 = vadd.f32 %v815, %v863
        %v865 = vpop.f32.mrb[0].mxu0
        %v866 = vpop.f32.mrb[0].mxu0
        %v867 = vadd.f32 %v818, %v866
        %v868 = vpop.f32.mrb[0].mxu0
        %869 = vmatprep.mubr.bf16.mxu0 0
        %870 = vmatmul.mubr.bf16.gmra.mrb[0].mxu0 %v773
        %v871 = vpop.f32.mrb[0].mxu0
        %v872 = vadd.f32 %v823, %v871
        %v873 = vpop.f32.mrb[0].mxu0
        %v874 = vpop.f32.mrb[0].mxu0
        %v875 = vadd.f32 %v826, %v874
        %v876 = vpop.f32.mrb[0].mxu0
        %877 = vdwg.mxu0
        %v878 = vmax.f32 %v735, %v864
        %v879 = vmax.f32 %v736, %v867
        %v880 = vmax.f32 %v737, %v872
        %v881 = vmax.f32 %v738, %v875
        %s882 = scalar_lea.vmem %s237, 144 [#allocation2]
        %v883 = vld [vmem:[%s882] sm:$0xff]
        %v884 = vld [vmem:[%s882 + $0x8] sm:$0xf]
        %v885 = vld [vmem:[%s882 + $0xc] sm:$0xff]
        %v886 = vld [vmem:[%s882 + $0x14] sm:$0xf]
        %v887 = vld [vmem:[%s882 + $0x18] sm:$0xff]
        %v888 = vld [vmem:[%s882 + $0x20] sm:$0xf]
        %v889 = vld [vmem:[%s882 + $0x24] sm:$0xff]
        %v890 = vld [vmem:[%s882 + $0x2c] sm:$0xf]
        %v899 = vunpack.c.l.b16 %v883
        %v900 = vunpack.c.h.b16 %v883
        %v901 = vunpack.c.l.b16 %v884
        %v902 = vunpack.c.l.b16 %v885
        %v903 = vunpack.c.h.b16 %v885
        %v904 = vunpack.c.l.b16 %v886
        %v905 = vunpack.c.l.b16 %v887
        %v906 = vunpack.c.h.b16 %v887
        %v907 = vunpack.c.l.b16 %v888
        %v908 = vunpack.c.l.b16 %v889
        %v909 = vunpack.c.h.b16 %v889
        %v910 = vunpack.c.l.b16 %v890
        %v911 = vpack.c.b16 %v902, %v899
        %v912 = vpack.c.b16 %v903, %v900
        %v913 = vpack.c.b16 %v904, %v901
        %v914 = vpack.c.b16 %v908, %v905
        %v915 = vpack.c.b16 %v909, %v906
        %v916 = vpack.c.b16 %v910, %v907
        %923 = vmatprep.subr.bf16.mxu0 0
        %924 = vmatpush1.bf16.msra.mxu0 %v450
        %925 = vmatprep.subr.bf16.mxu0 0
        %926 = vmatpush1.bf16.msra.mxu0 %v451
        %927 = vmatprep.subr.bf16.mxu0 0
        %928 = vmatpush1.bf16.msra.mxu0 %v452
        %929 = vmatprep.subr.bf16.mxu0 0
        %930 = vmatpush1.bf16.msra.mxu0 %v453
        %931 = vmatprep.subr.bf16.mxu0 0
        %932 = vmatpush1.bf16.msra.mxu0 %v454
        %933 = vmatprep.subr.bf16.mxu0 0
        %934 = vmatpush1.bf16.msra.mxu0 %v455
        %935 = vmatprep.subr.bf16.mxu0 0
        %936 = vmatpush1.bf16.msra.mxu0 %v456
        %937 = vmatprep.subr.bf16.mxu0 0
        %938 = vmatpush1.bf16.msra.mxu0 %v457
        %939 = vmatprep.subr.bf16.mxu0 0
        %940 = vmatpush1.bf16.msra.mxu0 %v458
        %941 = vmatprep.subr.bf16.mxu0 0
        %942 = vmatpush1.bf16.msra.mxu0 %v459
        %943 = vmatprep.subr.bf16.mxu0 0
        %944 = vmatpush1.bf16.msra.mxu0 %v460
        %945 = vmatprep.subr.bf16.mxu0 0
        %946 = vmatpush1.bf16.msra.mxu0 %v461
        %947 = vmatprep.subr.bf16.mxu0 0
        %948 = vmatpush1.bf16.msra.mxu0 %v462
        %949 = vmatprep.subr.bf16.mxu0 0
        %950 = vmatpush1.bf16.msra.mxu0 %v463
        %951 = vmatprep.subr.bf16.mxu0 0
        %952 = vmatpush1.bf16.msra.mxu0 %v464
        %953 = vmatprep.subr.bf16.mxu0 0
        %954 = vmatpush1.bf16.msra.mxu0 %v465
        %955 = vmatprep.mubr.bf16.mxu0 %v912
        %956 = vmatmul.mubr.bf16.gmra.mrb[0].mxu0 %v911
        %v957 = vpop.f32.mrb[0].mxu0
        %v958 = vadd.f32 0.0, %v957
        %v959 = vpop.f32.mrb[0].mxu0
        %v960 = vpop.f32.mrb[0].mxu0
        %v961 = vadd.f32 0.0, %v960
        %v962 = vpop.f32.mrb[0].mxu0
        %963 = vmatprep.mubr.bf16.mxu0 %v915
        %964 = vmatmul.mubr.bf16.gmra.mrb[0].mxu0 %v914
        %v965 = vpop.f32.mrb[0].mxu0
        %v966 = vadd.f32 0.0, %v965
        %v967 = vpop.f32.mrb[0].mxu0
        %v968 = vpop.f32.mrb[0].mxu0
        %v969 = vadd.f32 0.0, %v968
        %v970 = vpop.f32.mrb[0].mxu0
        %971 = vdwg.mxu0
        %972 = vmatprep.subr.bf16.mxu0 0
        %973 = vmatpush1.bf16.msra.mxu0 %v466
        %974 = vmatprep.subr.bf16.mxu0 0
        %975 = vmatpush1.bf16.msra.mxu0 %v467
        %976 = vmatprep.subr.bf16.mxu0 0
        %977 = vmatpush1.bf16.msra.mxu0 %v468
        %978 = vmatprep.subr.bf16.mxu0 0
        %979 = vmatpush1.bf16.msra.mxu0 %v469
        %980 = vmatprep.subr.bf16.mxu0 0
        %981 = vmatpush1.bf16.msra.mxu0 %v470
        %982 = vmatprep.subr.bf16.mxu0 0
        %983 = vmatpush1.bf16.msra.mxu0 %v471
        %984 = vmatprep.subr.bf16.mxu0 0
        %985 = vmatpush1.bf16.msra.mxu0 %v472
        %986 = vmatprep.subr.bf16.mxu0 0
        %987 = vmatpush1.bf16.msra.mxu0 %v473
        %988 = vmatprep.subr.bf16.mxu0 0
        %989 = vmatpush1.bf16.msra.mxu0 0
        %990 = vmatprep.subr.bf16.mxu0 0
        %991 = vmatpush1.bf16.msra.mxu0 0
        %992 = vmatprep.subr.bf16.mxu0 0
        %993 = vmatpush1.bf16.msra.mxu0 0
        %994 = vmatprep.subr.bf16.mxu0 0
        %995 = vmatpush1.bf16.msra.mxu0 0
        %996 = vmatprep.subr.bf16.mxu0 0
        %997 = vmatpush1.bf16.msra.mxu0 0
        %998 = vmatprep.subr.bf16.mxu0 0
        %999 = vmatpush1.bf16.msra.mxu0 0
        %1000 = vmatprep.subr.bf16.mxu0 0
        %1001 = vmatpush1.bf16.msra.mxu0 0
        %1002 = vmatprep.subr.bf16.mxu0 0
        %1003 = vmatpush1.bf16.msra.mxu0 0
        %1004 = vmatprep.mubr.bf16.mxu0 0
        %1005 = vmatmul.mubr.bf16.gmra.mrb[0].mxu0 %v913
        %v1006 = vpop.f32.mrb[0].mxu0
        %v1007 = vadd.f32 %v958, %v1006
        %v1008 = vpop.f32.mrb[0].mxu0
        %v1009 = vpop.f32.mrb[0].mxu0
        %v1010 = vadd.f32 %v961, %v1009
        %v1011 = vpop.f32.mrb[0].mxu0
        %1012 = vmatprep.mubr.bf16.mxu0 0
        %1013 = vmatmul.mubr.bf16.gmra.mrb[0].mxu0 %v916
        %v1014 = vpop.f32.mrb[0].mxu0
        %v1015 = vadd.f32 %v966, %v1014
        %v1016 = vpop.f32.mrb[0].mxu0
        %v1017 = vpop.f32.mrb[0].mxu0
        %v1018 = vadd.f32 %v969, %v1017
        %v1019 = vpop.f32.mrb[0].mxu0
        %1020 = vdwg.mxu0
        %v1021 = vmax.f32 %v878, %v1007
        %v1022 = vmax.f32 %v879, %v1010
        %v1023 = vmax.f32 %v880, %v1015
        %v1024 = vmax.f32 %v881, %v1018
        %v1025 = vld [vmem:[%s2] sm:$0x1]
        %v1027 = vlaneseq
        %v1028 = vshrl.u32 %v1027, 7
        %v1029 = vsub.s32 0, %v1028
        %v1030 = vrot.slane %v1025, %v1029
        %v1032 = vadd.f32 %v1021, %v1030
        %v1033 = vadd.f32 %v1022, %v1030
        %v1034 = vadd.f32 %v1023, %v1030
        %v1035 = vadd.f32 %v1024, %v1030
        %v1036 = vmax.f32 %v1032, 0.0
        %v1037 = vmax.f32 %v1033, 0.0
        %v1038 = vmax.f32 %v1034, 0.0
        %v1039 = vmax.f32 %v1035, 0.0
        %v1040 = vpack.c.bf16 %v1037, %v1036
        %v1041 = vpack.c.bf16 %v1039, %v1038
        %v1044 = vunpack.c.l.b16 %v1040
        %v1045 = vunpack.c.h.b16 %v1040
        %v1046 = vunpack.c.l.b16 %v1041
        %v1047 = vunpack.c.h.b16 %v1041
        %v1048 = vpack.c.b16 %v1044, %v1044
        %v1049 = vpack.c.b16 %v1045, %v1045
        %v1050 = vpack.c.b16 %v1046, %v1046
        %v1051 = vpack.c.b16 %v1047, %v1047
        %1056 = vst [vmem:[%s263] sm:$0xf] %v1048
        %1057 = vst [vmem:[%s263 + $0x4] sm:$0xf] %v1049
        %1058 = vst [vmem:[%s263 + $0x8] sm:$0xf] %v1050
        %1059 = vst [vmem:[%s263 + $0xc] sm:$0xf] %v1051
        %s1060 = smul.u32 4, %s14
        %p1061 = scmp.lt.s32.totalorder %s1060, 7
        %s1062 = scalar_select %p1061, %s1060, 7
        %s1063 = smul.addr %s1062, 4
        %s1064 = scalar_lea.vmem %s3, %s1063
        // Predicated region
        $region59: #{net_forward.4} parent=53 // pred_check
          %p1065 = pneg %p100
        $region60: #{net_forward.4} parent=53 // pred_check_branch
          %1067 = sbr.rel (%p1065) target = $region62
        $region61: #{net_forward.4} parent=53 // pred_region
          %s1068 = smul.u32 4, %s14
        $region62: #{net_forward.4} parent=53 // pred_fallthru
          _
      $region54: #{net_forward.4} parent=5 // pred_fallthru
        _
      %p1069 = scmp.le.s32.totalorder 2, %s9
      // Predicated region
      $region63: #{net_forward.4} parent=5 // pred_check
        %p1070 = pneg %p1069
      $region64: #{net_forward.4} parent=5 // pred_check_branch
        %1072 = sbr.rel (%p1070) target = $region66
      $region65: #{net_forward.4} parent=5 // pred_region
        %s1073 = ssub.s32 %s9, 2
        // Predicated region
        $region67: #{net_forward.4} parent=65 // pred_check
          %p1074 = pneg %p106
        $region68: #{net_forward.4} parent=65 // pred_check_branch
          %1076 = sbr.rel (%p1074) target = $region70
        $region69: #{net_forward.4} parent=65 // pred_region
          %s1077 = smul.u32 4, %s15
          %p1078 = scmp.lt.s32.totalorder %s1077, 7
          %s1079 = scalar_select %p1078, %s1077, 7
          %s1080 = smul.addr %s1079, 4
          %s1081 = scalar_lea.vmem %s3, %s1080
        $region70: #{net_forward.4} parent=65 // pred_fallthru
          _
      $region66: #{net_forward.4} parent=5 // pred_fallthru
        _
    $region6: #{net_forward.4} parent=1 // loop_footer
      %s13 = sadd.s32 1, %s9
    $region7: #{net_forward.4} parent=1 // loop_footer_branch
      %8 = sbr.rel target = $region3
    $region8: #{net_forward.4} parent=1 // loop_exit
      _

// kernel: net_forward.5
$region0: #{net_forward.5}
  #allocation0 [shape = 'u32[]', space=smem, size = 0x4, offset = 0x4, fixed_abs, tag = 'smem constant byte address 0x4 - core index']
  #allocation1 [shape = 'u32[144,128]{1,0:T(1,128)}', space=vmem, size = 0x12000, scoped, tag = 'internal scratch']
  %s0 = inlined_call_operand.vmem [shape: bf16[8,512], index: 0, kind: input, shape index: {}]
  %s1 = inlined_call_operand.vmem [shape: bf16[512,128], index: 1, kind: input, shape index: {}]
  %s2 = inlined_call_operand.vmem [shape: f32[1,128], index: 2, kind: input, shape index: {}]
  %s3 = inlined_call_operand.vmem [shape: bf16[128,128], index: 3, kind: input, shape index: {}]
  %s4 = inlined_call_operand.vmem [shape: f32[1,128], index: 4, kind: input, shape index: {}]
  %s5 = inlined_call_operand.vmem [shape: bf16[128,128], index: 5, kind: input, shape index: {}]
  %s6 = inlined_call_operand.vmem [shape: f32[1,128], index: 6, kind: input, shape index: {}]
  %s7 = inlined_call_operand.vmem [shape: f32[8,128], index: 7, kind: output, shape index: {}]
  %s8 = sld [smem:[#allocation0]]
  $region38: #{net_forward.5} parent=0
    _
  %s10 = ssub.s32 1, %s8
  %s11 = scalar_select 0, %s10, %s8
  // Predicated region
  $region2: #{net_forward.5} parent=0 // pred_check
    _
  $region3: #{net_forward.5} parent=0 // pred_check_branch
    %13 = sbr.rel (0) target = $region5
  $region4: #{net_forward.5} parent=0 // pred_region
    _
  $region5: #{net_forward.5} parent=0 // pred_fallthru
    _
  // Predicated region
  $region6: #{net_forward.5} parent=0 // pred_check
    _
  $region7: #{net_forward.5} parent=0 // pred_check_branch
    %15 = sbr.rel (0) target = $region9
  $region8: #{net_forward.5} parent=0 // pred_region
    _
  $region9: #{net_forward.5} parent=0 // pred_fallthru
    _
  // Predicated region
  $region10: #{net_forward.5} parent=0 // pred_check
    _
  $region11: #{net_forward.5} parent=0 // pred_check_branch
    %17 = sbr.rel (0) target = $region13
  $region12: #{net_forward.5} parent=0 // pred_region
    _
  $region13: #{net_forward.5} parent=0 // pred_fallthru
    _
  // Predicated region
  $region14: #{net_forward.5} parent=0 // pred_check
    _
  $region15: #{net_forward.5} parent=0 // pred_check_branch
    %19 = sbr.rel (0) target = $region17
  $region16: #{net_forward.5} parent=0 // pred_region
    _
  $region17: #{net_forward.5} parent=0 // pred_fallthru
    _
  // Predicated region
  $region18: #{net_forward.5} parent=0 // pred_check
    _
  $region19: #{net_forward.5} parent=0 // pred_check_branch
    %21 = sbr.rel (0) target = $region21
  $region20: #{net_forward.5} parent=0 // pred_region
    _
  $region21: #{net_forward.5} parent=0 // pred_fallthru
    _
  // Predicated region
  $region22: #{net_forward.5} parent=0 // pred_check
    _
  $region23: #{net_forward.5} parent=0 // pred_check_branch
    %23 = sbr.rel (0) target = $region25
  $region24: #{net_forward.5} parent=0 // pred_region
    _
  $region25: #{net_forward.5} parent=0 // pred_fallthru
    _
  // Predicated region
  $region26: #{net_forward.5} parent=0 // pred_check
    _
  $region27: #{net_forward.5} parent=0 // pred_check_branch
    %25 = sbr.rel (0) target = $region29
  $region28: #{net_forward.5} parent=0 // pred_region
    _
  $region29: #{net_forward.5} parent=0 // pred_fallthru
    _
  %v27 = vld [vmem:[%s0] sm:$0xff]
  %v28 = vld [vmem:[%s0 + $0x8] sm:$0xff]
  %v29 = vld [vmem:[%s1] sm:$0xf]
  %v30 = vld [vmem:[%s1 + $0x4] sm:$0xf]
  %v31 = vld [vmem:[%s1 + $0x8] sm:$0xf]
  %v32 = vld [vmem:[%s1 + $0xc] sm:$0xf]
  %v33 = vld [vmem:[%s1 + $0x10] sm:$0xf]
  %v34 = vld [vmem:[%s1 + $0x14] sm:$0xf]
  %v35 = vld [vmem:[%s1 + $0x18] sm:$0xf]
  %v36 = vld [vmem:[%s1 + $0x1c] sm:$0xf]
  %v37 = vld [vmem:[%s1 + $0x20] sm:$0xf]
  %v38 = vld [vmem:[%s1 + $0x24] sm:$0xf]
  %v39 = vld [vmem:[%s1 + $0x28] sm:$0xf]
  %v40 = vld [vmem:[%s1 + $0x2c] sm:$0xf]
  %v41 = vld [vmem:[%s1 + $0x30] sm:$0xf]
  %v42 = vld [vmem:[%s1 + $0x34] sm:$0xf]
  %v43 = vld [vmem:[%s1 + $0x38] sm:$0xf]
  %v44 = vld [vmem:[%s1 + $0x3c] sm:$0xf]
  %v45 = vld [vmem:[%s1 + $0x40] sm:$0xf]
  %v46 = vld [vmem:[%s1 + $0x44] sm:$0xf]
  %v47 = vld [vmem:[%s1 + $0x48] sm:$0xf]
  %v48 = vld [vmem:[%s1 + $0x4c] sm:$0xf]
  %v49 = vld [vmem:[%s1 + $0x50] sm:$0xf]
  %v50 = vld [vmem:[%s1 + $0x54] sm:$0xf]
  %v51 = vld [vmem:[%s1 + $0x58] sm:$0xf]
  %v52 = vld [vmem:[%s1 + $0x5c] sm:$0xf]
  %v53 = vld [vmem:[%s1 + $0x60] sm:$0xf]
  %v54 = vld [vmem:[%s1 + $0x64] sm:$0xf]
  %v55 = vld [vmem:[%s1 + $0x68] sm:$0xf]
  %v56 = vld [vmem:[%s1 + $0x6c] sm:$0xf]
  %v57 = vld [vmem:[%s1 + $0x70] sm:$0xf]
  %v58 = vld [vmem:[%s1 + $0x74] sm:$0xf]
  %v59 = vld [vmem:[%s1 + $0x78] sm:$0xf]
  %v60 = vld [vmem:[%s1 + $0x7c] sm:$0xf]
  %v61 = vld [vmem:[%s1 + $0x80] sm:$0xf]
  %v62 = vld [vmem:[%s1 + $0x84] sm:$0xf]
  %v63 = vld [vmem:[%s1 + $0x88] sm:$0xf]
  %v64 = vld [vmem:[%s1 + $0x8c] sm:$0xf]
  %v65 = vld [vmem:[%s1 + $0x90] sm:$0xf]
  %v66 = vld [vmem:[%s1 + $0x94] sm:$0xf]
  %v67 = vld [vmem:[%s1 + $0x98] sm:$0xf]
  %v68 = vld [vmem:[%s1 + $0x9c] sm:$0xf]
  %v69 = vld [vmem:[%s1 + $0xa0] sm:$0xf]
  %v70 = vld [vmem:[%s1 + $0xa4] sm:$0xf]
  %v71 = vld [vmem:[%s1 + $0xa8] sm:$0xf]
  %v72 = vld [vmem:[%s1 + $0xac] sm:$0xf]
  %v73 = vld [vmem:[%s1 + $0xb0] sm:$0xf]
  %v74 = vld [vmem:[%s1 + $0xb4] sm:$0xf]
  %v75 = vld [vmem:[%s1 + $0xb8] sm:$0xf]
  %v76 = vld [vmem:[%s1 + $0xbc] sm:$0xf]
  %v77 = vld [vmem:[%s1 + $0xc0] sm:$0xf]
  %v78 = vld [vmem:[%s1 + $0xc4] sm:$0xf]
  %v79 = vld [vmem:[%s1 + $0xc8] sm:$0xf]
  %v80 = vld [vmem:[%s1 + $0xcc] sm:$0xf]
  %v81 = vld [vmem:[%s1 + $0xd0] sm:$0xf]
  %v82 = vld [vmem:[%s1 + $0xd4] sm:$0xf]
  %v83 = vld [vmem:[%s1 + $0xd8] sm:$0xf]
  %v84 = vld [vmem:[%s1 + $0xdc] sm:$0xf]
  %v85 = vld [vmem:[%s1 + $0xe0] sm:$0xf]
  %v86 = vld [vmem:[%s1 + $0xe4] sm:$0xf]
  %v87 = vld [vmem:[%s1 + $0xe8] sm:$0xf]
  %v88 = vld [vmem:[%s1 + $0xec] sm:$0xf]
  %v89 = vld [vmem:[%s1 + $0xf0] sm:$0xf]
  %v90 = vld [vmem:[%s1 + $0xf4] sm:$0xf]
  %v91 = vld [vmem:[%s1 + $0xf8] sm:$0xf]
  %v92 = vld [vmem:[%s1 + $0xfc] sm:$0xf]
  %v93 = vld [vmem:[%s2] sm:$0x1]
  %v95 = vlaneseq
  %v96 = vshrl.u32 %v95, 7
  %v97 = vsub.s32 0, %v96
  %v98 = vrot.slane %v93, %v97
  %v102 = vunpack.c.l.b16 %v27
  %v103 = vunpack.c.h.b16 %v27
  %v104 = vunpack.c.l.b16 %v28
  %v105 = vunpack.c.h.b16 %v28
  %v106 = vpack.c.b16 %v102, %v102
  %v107 = vpack.c.b16 %v103, %v103
  %v108 = vpack.c.b16 %v104, %v104
  %v109 = vpack.c.b16 %v105, %v105
  %v178 = vunpack.c.l.b16 %v29
  %v179 = vunpack.c.l.b16 %v30
  %v180 = vunpack.c.l.b16 %v31
  %v181 = vunpack.c.l.b16 %v32
  %v182 = vunpack.c.l.b16 %v33
  %v183 = vunpack.c.l.b16 %v34
  %v184 = vunpack.c.l.b16 %v35
  %v185 = vunpack.c.l.b16 %v36
  %v186 = vunpack.c.l.b16 %v37
  %v187 = vunpack.c.l.b16 %v38
  %v188 = vunpack.c.l.b16 %v39
  %v189 = vunpack.c.l.b16 %v40
  %v190 = vunpack.c.l.b16 %v41
  %v191 = vunpack.c.l.b16 %v42
  %v192 = vunpack.c.l.b16 %v43
  %v193 = vunpack.c.l.b16 %v44
  %v194 = vunpack.c.l.b16 %v45
  %v195 = vunpack.c.l.b16 %v46
  %v196 = vunpack.c.l.b16 %v47
  %v197 = vunpack.c.l.b16 %v48
  %v198 = vunpack.c.l.b16 %v49
  %v199 = vunpack.c.l.b16 %v50
  %v200 = vunpack.c.l.b16 %v51
  %v201 = vunpack.c.l.b16 %v52
  %v202 = vunpack.c.l.b16 %v53
  %v203 = vunpack.c.l.b16 %v54
  %v204 = vunpack.c.l.b16 %v55
  %v205 = vunpack.c.l.b16 %v56
  %v206 = vunpack.c.l.b16 %v57
  %v207 = vunpack.c.l.b16 %v58
  %v208 = vunpack.c.l.b16 %v59
  %v209 = vunpack.c.l.b16 %v60
  %v210 = vunpack.c.l.b16 %v61
  %v211 = vunpack.c.l.b16 %v62
  %v212 = vunpack.c.l.b16 %v63
  %v213 = vunpack.c.l.b16 %v64
  %v214 = vunpack.c.l.b16 %v65
  %v215 = vunpack.c.l.b16 %v66
  %v216 = vunpack.c.l.b16 %v67
  %v217 = vunpack.c.l.b16 %v68
  %v218 = vunpack.c.l.b16 %v69
  %v219 = vunpack.c.l.b16 %v70
  %v220 = vunpack.c.l.b16 %v71
  %v221 = vunpack.c.l.b16 %v72
  %v222 = vunpack.c.l.b16 %v73
  %v223 = vunpack.c.l.b16 %v74
  %v224 = vunpack.c.l.b16 %v75
  %v225 = vunpack.c.l.b16 %v76
  %v226 = vunpack.c.l.b16 %v77
  %v227 = vunpack.c.l.b16 %v78
  %v228 = vunpack.c.l.b16 %v79
  %v229 = vunpack.c.l.b16 %v80
  %v230 = vunpack.c.l.b16 %v81
  %v231 = vunpack.c.l.b16 %v82
  %v232 = vunpack.c.l.b16 %v83
  %v233 = vunpack.c.l.b16 %v84
  %v234 = vunpack.c.l.b16 %v85
  %v235 = vunpack.c.l.b16 %v86
  %v236 = vunpack.c.l.b16 %v87
  %v237 = vunpack.c.l.b16 %v88
  %v238 = vunpack.c.l.b16 %v89
  %v239 = vunpack.c.l.b16 %v90
  %v240 = vunpack.c.l.b16 %v91
  %v241 = vunpack.c.l.b16 %v92
  %v242 = vpack.c.b16 %v179, %v178
  %v243 = vpack.c.b16 %v181, %v180
  %v244 = vpack.c.b16 %v183, %v182
  %v245 = vpack.c.b16 %v185, %v184
  %v246 = vpack.c.b16 %v187, %v186
  %v247 = vpack.c.b16 %v189, %v188
  %v248 = vpack.c.b16 %v191, %v190
  %v249 = vpack.c.b16 %v193, %v192
  %v250 = vpack.c.b16 %v195, %v194
  %v251 = vpack.c.b16 %v197, %v196
  %v252 = vpack.c.b16 %v199, %v198
  %v253 = vpack.c.b16 %v201, %v200
  %v254 = vpack.c.b16 %v203, %v202
  %v255 = vpack.c.b16 %v205, %v204
  %v256 = vpack.c.b16 %v207, %v206
  %v257 = vpack.c.b16 %v209, %v208
  %v258 = vpack.c.b16 %v211, %v210
  %v259 = vpack.c.b16 %v213, %v212
  %v260 = vpack.c.b16 %v215, %v214
  %v261 = vpack.c.b16 %v217, %v216
  %v262 = vpack.c.b16 %v219, %v218
  %v263 = vpack.c.b16 %v221, %v220
  %v264 = vpack.c.b16 %v223, %v222
  %v265 = vpack.c.b16 %v225, %v224
  %v266 = vpack.c.b16 %v227, %v226
  %v267 = vpack.c.b16 %v229, %v228
  %v268 = vpack.c.b16 %v231, %v230
  %v269 = vpack.c.b16 %v233, %v232
  %v270 = vpack.c.b16 %v235, %v234
  %v271 = vpack.c.b16 %v237, %v236
  %v272 = vpack.c.b16 %v239, %v238
  %v273 = vpack.c.b16 %v241, %v240
  %306 = vmatprep.subr.bf16.mxu0 0
  %307 = vmatpush1.bf16.msra.mxu0 %v242
  %308 = vmatprep.subr.bf16.mxu0 0
  %309 = vmatpush1.bf16.msra.mxu0 %v243
  %310 = vmatprep.subr.bf16.mxu0 0
  %311 = vmatpush1.bf16.msra.mxu0 %v244
  %312 = vmatprep.subr.bf16.mxu0 0
  %313 = vmatpush1.bf16.msra.mxu0 %v245
  %314 = vmatprep.subr.bf16.mxu0 0
  %315 = vmatpush1.bf16.msra.mxu0 %v246
  %316 = vmatprep.subr.bf16.mxu0 0
  %317 = vmatpush1.bf16.msra.mxu0 %v247
  %318 = vmatprep.subr.bf16.mxu0 0
  %319 = vmatpush1.bf16.msra.mxu0 %v248
  %320 = vmatprep.subr.bf16.mxu0 0
  %321 = vmatpush1.bf16.msra.mxu0 %v249
  %322 = vmatprep.subr.bf16.mxu0 0
  %323 = vmatpush1.bf16.msra.mxu0 %v250
  %324 = vmatprep.subr.bf16.mxu0 0
  %325 = vmatpush1.bf16.msra.mxu0 %v251
  %326 = vmatprep.subr.bf16.mxu0 0
  %327 = vmatpush1.bf16.msra.mxu0 %v252
  %328 = vmatprep.subr.bf16.mxu0 0
  %329 = vmatpush1.bf16.msra.mxu0 %v253
  %330 = vmatprep.subr.bf16.mxu0 0
  %331 = vmatpush1.bf16.msra.mxu0 %v254
  %332 = vmatprep.subr.bf16.mxu0 0
  %333 = vmatpush1.bf16.msra.mxu0 %v255
  %334 = vmatprep.subr.bf16.mxu0 0
  %335 = vmatpush1.bf16.msra.mxu0 %v256
  %336 = vmatprep.subr.bf16.mxu0 0
  %337 = vmatpush1.bf16.msra.mxu0 %v257
  %338 = vmatprep.mubr.bf16.mxu0 %v107
  %339 = vmatmul.mubr.bf16.gmra.mrb[0].mxu0 %v106
  %v340 = vpop.f32.mrb[0].mxu0
  %v341 = vadd.f32 %v98, %v340
  %v342 = vpop.f32.mrb[0].mxu0
  %v343 = vpop.f32.mrb[0].mxu0
  %v344 = vpop.f32.mrb[0].mxu0
  %345 = vdwg.mxu0
  %346 = vmatprep.subr.bf16.mxu0 0
  %347 = vmatpush1.bf16.msra.mxu0 %v258
  %348 = vmatprep.subr.bf16.mxu0 0
  %349 = vmatpush1.bf16.msra.mxu0 %v259
  %350 = vmatprep.subr.bf16.mxu0 0
  %351 = vmatpush1.bf16.msra.mxu0 %v260
  %352 = vmatprep.subr.bf16.mxu0 0
  %353 = vmatpush1.bf16.msra.mxu0 %v261
  %354 = vmatprep.subr.bf16.mxu0 0
  %355 = vmatpush1.bf16.msra.mxu0 %v262
  %356 = vmatprep.subr.bf16.mxu0 0
  %357 = vmatpush1.bf16.msra.mxu0 %v263
  %358 = vmatprep.subr.bf16.mxu0 0
  %359 = vmatpush1.bf16.msra.mxu0 %v264
  %360 = vmatprep.subr.bf16.mxu0 0
  %361 = vmatpush1.bf16.msra.mxu0 %v265
  %362 = vmatprep.subr.bf16.mxu0 0
  %363 = vmatpush1.bf16.msra.mxu0 %v266
  %364 = vmatprep.subr.bf16.mxu0 0
  %365 = vmatpush1.bf16.msra.mxu0 %v267
  %366 = vmatprep.subr.bf16.mxu0 0
  %367 = vmatpush1.bf16.msra.mxu0 %v268
  %368 = vmatprep.subr.bf16.mxu0 0
  %369 = vmatpush1.bf16.msra.mxu0 %v269
  %370 = vmatprep.subr.bf16.mxu0 0
  %371 = vmatpush1.bf16.msra.mxu0 %v270
  %372 = vmatprep.subr.bf16.mxu0 0
  %373 = vmatpush1.bf16.msra.mxu0 %v271
  %374 = vmatprep.subr.bf16.mxu0 0
  %375 = vmatpush1.bf16.msra.mxu0 %v272
  %376 = vmatprep.subr.bf16.mxu0 0
  %377 = vmatpush1.bf16.msra.mxu0 %v273
  %378 = vmatprep.mubr.bf16.mxu0 %v109
  %379 = vmatmul.mubr.bf16.gmra.mrb[0].mxu0 %v108
  %v380 = vpop.f32.mrb[0].mxu0
  %v381 = vadd.f32 %v341, %v380
  %v382 = vpop.f32.mrb[0].mxu0
  %v383 = vpop.f32.mrb[0].mxu0
  %v384 = vpop.f32.mrb[0].mxu0
  %385 = vdwg.mxu0
  %v386 = vmax.f32 %v381, 0.0
  %v387 = vpack.c.bf16 %v386, %v386
  %v388 = vld [vmem:[%s3] sm:$0xf]
  %v389 = vld [vmem:[%s3 + $0x4] sm:$0xf]
  %v390 = vld [vmem:[%s3 + $0x8] sm:$0xf]
  %v391 = vld [vmem:[%s3 + $0xc] sm:$0xf]
  %v392 = vld [vmem:[%s3 + $0x10] sm:$0xf]
  %v393 = vld [vmem:[%s3 + $0x14] sm:$0xf]
  %v394 = vld [vmem:[%s3 + $0x18] sm:$0xf]
  %v395 = vld [vmem:[%s3 + $0x1c] sm:$0xf]
  %v396 = vld [vmem:[%s3 + $0x20] sm:$0xf]
  %v397 = vld [vmem:[%s3 + $0x24] sm:$0xf]
  %v398 = vld [vmem:[%s3 + $0x28] sm:$0xf]
  %v399 = vld [vmem:[%s3 + $0x2c] sm:$0xf]
  %v400 = vld [vmem:[%s3 + $0x30] sm:$0xf]
  %v401 = vld [vmem:[%s3 + $0x34] sm:$0xf]
  %v402 = vld [vmem:[%s3 + $0x38] sm:$0xf]
  %v403 = vld [vmem:[%s3 + $0x3c] sm:$0xf]
  %v404 = vld [vmem:[%s4] sm:$0x1]
  %v406 = vlaneseq
  %v407 = vshrl.u32 %v406, 7
  %v408 = vsub.s32 0, %v407
  %v409 = vrot.slane %v404, %v408
  %v427 = vunpack.c.l.b16 %v388
  %v428 = vunpack.c.l.b16 %v389
  %v429 = vunpack.c.l.b16 %v390
  %v430 = vunpack.c.l.b16 %v391
  %v431 = vunpack.c.l.b16 %v392
  %v432 = vunpack.c.l.b16 %v393
  %v433 = vunpack.c.l.b16 %v394
  %v434 = vunpack.c.l.b16 %v395
  %v435 = vunpack.c.l.b16 %v396
  %v436 = vunpack.c.l.b16 %v397
  %v437 = vunpack.c.l.b16 %v398
  %v438 = vunpack.c.l.b16 %v399
  %v439 = vunpack.c.l.b16 %v400
  %v440 = vunpack.c.l.b16 %v401
  %v441 = vunpack.c.l.b16 %v402
  %v442 = vunpack.c.l.b16 %v403
  %v443 = vpack.c.b16 %v428, %v427
  %v444 = vpack.c.b16 %v430, %v429
  %v445 = vpack.c.b16 %v432, %v431
  %v446 = vpack.c.b16 %v434, %v433
  %v447 = vpack.c.b16 %v436, %v435
  %v448 = vpack.c.b16 %v438, %v437
  %v449 = vpack.c.b16 %v440, %v439
  %v450 = vpack.c.b16 %v442, %v441
  %459 = vmatprep.subr.bf16.mxu0 0
  %460 = vmatpush1.bf16.msra.mxu0 %v443
  %461 = vmatprep.subr.bf16.mxu0 0
  %462 = vmatpush1.bf16.msra.mxu0 %v444
  %463 = vmatprep.subr.bf16.mxu0 0
  %464 = vmatpush1.bf16.msra.mxu0 %v445
  %465 = vmatprep.subr.bf16.mxu0 0
  %466 = vmatpush1.bf16.msra.mxu0 %v446
  %467 = vmatprep.subr.bf16.mxu0 0
  %468 = vmatpush1.bf16.msra.mxu0 %v447
  %469 = vmatprep.subr.bf16.mxu0 0
  %470 = vmatpush1.bf16.msra.mxu0 %v448
  %471 = vmatprep.subr.bf16.mxu0 0
  %472 = vmatpush1.bf16.msra.mxu0 %v449
  %473 = vmatprep.subr.bf16.mxu0 0
  %474 = vmatpush1.bf16.msra.mxu0 %v450
  %475 = vmatprep.subr.bf16.mxu0 0
  %476 = vmatpush1.bf16.msra.mxu0 0
  %477 = vmatprep.subr.bf16.mxu0 0
  %478 = vmatpush1.bf16.msra.mxu0 0
  %479 = vmatprep.subr.bf16.mxu0 0
  %480 = vmatpush1.bf16.msra.mxu0 0
  %481 = vmatprep.subr.bf16.mxu0 0
  %482 = vmatpush1.bf16.msra.mxu0 0
  %483 = vmatprep.subr.bf16.mxu0 0
  %484 = vmatpush1.bf16.msra.mxu0 0
  %485 = vmatprep.subr.bf16.mxu0 0
  %486 = vmatpush1.bf16.msra.mxu0 0
  %487 = vmatprep.subr.bf16.mxu0 0
  %488 = vmatpush1.bf16.msra.mxu0 0
  %489 = vmatprep.subr.bf16.mxu0 0
  %490 = vmatpush1.bf16.msra.mxu0 0
  %491 = vmatprep.mubr.bf16.mxu0 0
  %492 = vmatmul.mubr.bf16.gmra.mrb[0].mxu0 %v387
  %v493 = vpop.f32.mrb[0].mxu0
  %v494 = vadd.f32 %v409, %v493
  %v495 = vpop.f32.mrb[0].mxu0
  %v496 = vpop.f32.mrb[0].mxu0
  %v497 = vpop.f32.mrb[0].mxu0
  %498 = vdwg.mxu0
  %v499 = vmax.f32 %v494, 0.0
  %v500 = vpack.c.bf16 %v499, %v499
  %v501 = vld [vmem:[%s5] sm:$0xf]
  %v502 = vld [vmem:[%s5 + $0x4] sm:$0xf]
  %v503 = vld [vmem:[%s5 + $0x8] sm:$0xf]
  %v504 = vld [vmem:[%s5 + $0xc] sm:$0xf]
  %v505 = vld [vmem:[%s5 + $0x10] sm:$0xf]
  %v506 = vld [vmem:[%s5 + $0x14] sm:$0xf]
  %v507 = vld [vmem:[%s5 + $0x18] sm:$0xf]
  %v508 = vld [vmem:[%s5 + $0x1c] sm:$0xf]
  %v509 = vld [vmem:[%s5 + $0x20] sm:$0xf]
  %v510 = vld [vmem:[%s5 + $0x24] sm:$0xf]
  %v511 = vld [vmem:[%s5 + $0x28] sm:$0xf]
  %v512 = vld [vmem:[%s5 + $0x2c] sm:$0xf]
  %v513 = vld [vmem:[%s5 + $0x30] sm:$0xf]
  %v514 = vld [vmem:[%s5 + $0x34] sm:$0xf]
  %v515 = vld [vmem:[%s5 + $0x38] sm:$0xf]
  %v516 = vld [vmem:[%s5 + $0x3c] sm:$0xf]
  %v517 = vld [vmem:[%s6] sm:$0x1]
  %v519 = vlaneseq
  %v520 = vshrl.u32 %v519, 7
  %v521 = vsub.s32 0, %v520
  %v522 = vrot.slane %v517, %v521
  %v540 = vunpack.c.l.b16 %v501
  %v541 = vunpack.c.l.b16 %v502
  %v542 = vunpack.c.l.b16 %v503
  %v543 = vunpack.c.l.b16 %v504
  %v544 = vunpack.c.l.b16 %v505
  %v545 = vunpack.c.l.b16 %v506
  %v546 = vunpack.c.l.b16 %v507
  %v547 = vunpack.c.l.b16 %v508
  %v548 = vunpack.c.l.b16 %v509
  %v549 = vunpack.c.l.b16 %v510
  %v550 = vunpack.c.l.b16 %v511
  %v551 = vunpack.c.l.b16 %v512
  %v552 = vunpack.c.l.b16 %v513
  %v553 = vunpack.c.l.b16 %v514
  %v554 = vunpack.c.l.b16 %v515
  %v555 = vunpack.c.l.b16 %v516
  %v556 = vpack.c.b16 %v541, %v540
  %v557 = vpack.c.b16 %v543, %v542
  %v558 = vpack.c.b16 %v545, %v544
  %v559 = vpack.c.b16 %v547, %v546
  %v560 = vpack.c.b16 %v549, %v548
  %v561 = vpack.c.b16 %v551, %v550
  %v562 = vpack.c.b16 %v553, %v552
  %v563 = vpack.c.b16 %v555, %v554
  %572 = vmatprep.subr.bf16.mxu0 0
  %573 = vmatpush1.bf16.msra.mxu0 %v556
  %574 = vmatprep.subr.bf16.mxu0 0
  %575 = vmatpush1.bf16.msra.mxu0 %v557
  %576 = vmatprep.subr.bf16.mxu0 0
  %577 = vmatpush1.bf16.msra.mxu0 %v558
  %578 = vmatprep.subr.bf16.mxu0 0
  %579 = vmatpush1.bf16.msra.mxu0 %v559
  %580 = vmatprep.subr.bf16.mxu0 0
  %581 = vmatpush1.bf16.msra.mxu0 %v560
  %582 = vmatprep.subr.bf16.mxu0 0
  %583 = vmatpush1.bf16.msra.mxu0 %v561
  %584 = vmatprep.subr.bf16.mxu0 0
  %585 = vmatpush1.bf16.msra.mxu0 %v562
  %586 = vmatprep.subr.bf16.mxu0 0
  %587 = vmatpush1.bf16.msra.mxu0 %v563
  %588 = vmatprep.subr.bf16.mxu0 0
  %589 = vmatpush1.bf16.msra.mxu0 0
  %590 = vmatprep.subr.bf16.mxu0 0
  %591 = vmatpush1.bf16.msra.mxu0 0
  %592 = vmatprep.subr.bf16.mxu0 0
  %593 = vmatpush1.bf16.msra.mxu0 0
  %594 = vmatprep.subr.bf16.mxu0 0
  %595 = vmatpush1.bf16.msra.mxu0 0
  %596 = vmatprep.subr.bf16.mxu0 0
  %597 = vmatpush1.bf16.msra.mxu0 0
  %598 = vmatprep.subr.bf16.mxu0 0
  %599 = vmatpush1.bf16.msra.mxu0 0
  %600 = vmatprep.subr.bf16.mxu0 0
  %601 = vmatpush1.bf16.msra.mxu0 0
  %602 = vmatprep.subr.bf16.mxu0 0
  %603 = vmatpush1.bf16.msra.mxu0 0
  %604 = vmatprep.mubr.bf16.mxu0 0
  %605 = vmatmul.mubr.bf16.gmra.mrb[0].mxu0 %v500
  %v606 = vpop.f32.mrb[0].mxu0
  %v607 = vadd.f32 %v522, %v606
  %v608 = vpop.f32.mrb[0].mxu0
  %v609 = vpop.f32.mrb[0].mxu0
  %v610 = vpop.f32.mrb[0].mxu0
  %611 = vdwg.mxu0
  %612 = vst [vmem:[%s7] sm:$0xff] %v607
  // Predicated region
  $region30: #{net_forward.5} parent=0 // pred_check
    _
  $region31: #{net_forward.5} parent=0 // pred_check_branch
    %614 = sbr.rel (0) target = $region33
  $region32: #{net_forward.5} parent=0 // pred_region
    _
  $region33: #{net_forward.5} parent=0 // pred_fallthru
    _
  // Predicated region
  $region34: #{net_forward.5} parent=0 // pred_check
    _
  $region35: #{net_forward.5} parent=0 // pred_check_branch
    %616 = sbr.rel (0) target = $region37
  $region36: #{net_forward.5} parent=0 // pred_region
    _
  $region37: #{net_forward.5} parent=0 // pred_fallthru
    _

</llo_original>
